<compile_context>
chip_gen: v7x
topology: tpu7x:2x2x1
jax: 0.10.0
libtpu: 0.0.40
codegen_flags: <defaults>
</compile_context>

<pallas_src>
import functools
import math

import jax
import jax.numpy as jnp
from jax import lax
from jax.experimental import pallas as pl
from jax.experimental.pallas import tpu as pltpu

BIG_NEG = -1e30        # additive mask value (stands in for -inf), kept in f32
NAN_FILL = -100000.0   # value the PyTorch model writes over NaN rows
LN_EPS = 1e-5          # nn.LayerNorm default eps


# --------------------------------------------------------------------------
# Generation-aware knobs
# --------------------------------------------------------------------------
def _vmem_limit_bytes():
    """~51 MiB on v7x (64 MiB/TC), ~100 MiB on v5e/v6e (128 MiB)."""
    try:
        cap = int(pltpu.get_tpu_info().vmem_capacity_bytes)
    except Exception:
        cap = 128 * 1024 * 1024
    return int(min(cap * 0.8, 100 * 1024 * 1024))


def _pick_kv_tile(S):
    """Largest lane-friendly KV tile that divides S (S itself for short seqs)."""
    for t in (512, 256, 128):
        if S % t == 0:
            return t
    return S


def _pick_batch_tile(B, S, target_rows=256):
    """Smallest divisor of B giving >=256 rows per matmul (MXU fill); if that
    is impossible, keep >=2 grid steps so both v7x TensorCores get work."""
    divisors = [d for d in range(1, B + 1) if B % d == 0]
    for d in divisors:
        if d * S >= target_rows:
            return d
    two_step = [d for d in divisors if B // d >= 2]
    return two_step[-1] if two_step else B


# --------------------------------------------------------------------------
# Fused encoder stack kernel: grid = (batch tiles, layers).
# Activations live in VMEM scratch across the layer axis; weights are indexed
# by the layer grid axis so their DMA pipelines with compute.
# --------------------------------------------------------------------------
def _encoder_stack_kernel(n_heads,
                          x_ref, padt_ref, dead_ref,
                          wq_ref, bq_ref, wk_ref, bk_ref, wv_ref, bv_ref,
                          wo_ref, bo_ref,
                          g1_ref, be1_ref,
                          w1_ref, bb1_ref, w2_ref, bb2_ref,
                          g2_ref, be2_ref,
                          o_ref,
                          xs_ref, ks_ref, vs_ref):
    layer = pl.program_id(1)
    n_layers = pl.num_programs(1)

    Bt, S, E = x_ref.shape
    num_kv, Tk = padt_ref.shape[1], padt_ref.shape[2]
    H = n_heads
    Dh = E // H
    BH = Bt * H
    R = Bt * S

    # layer 0: load the (token + positional) embedding block into scratch
    @pl.when(layer == 0)
    def _():
        xs_ref[...] = x_ref[...]

    x = xs_ref[...]                                    # (Bt, S, E) f32
    x2d = x.reshape(R, E)
    xb = x2d.astype(jnp.bfloat16)

    # ---- Q/K/V projections: (Bt*S, E) @ (E, E), bf16 -> f32 MXU ------------
    # 1/sqrt(Dh) is folded into wq/bq at parameter-construction time.
    q = jnp.dot(xb, wq_ref[0], preferred_element_type=jnp.float32) + bq_ref[0]
    k = jnp.dot(xb, wk_ref[0], preferred_element_type=jnp.float32) + bk_ref[0]
    v = jnp.dot(xb, wv_ref[0], preferred_element_type=jnp.float32) + bv_ref[0]

    def heads(t):                                      # (R,E) -> (Bt*H, S, Dh)
        return jnp.swapaxes(t.reshape(Bt, S, H, Dh), 1, 2).reshape(BH, S, Dh)

    qh = heads(q).astype(jnp.bfloat16)
    ks_ref[...] = heads(k).astype(jnp.bfloat16)        # K/V parked in VMEM
    vs_ref[...] = heads(v).astype(jnp.bfloat16)        # scratch for KV tiling

    # ---- KV-tiled online-softmax attention ---------------------------------
    row = lax.broadcasted_iota(jnp.int32, (S, Tk), 0)   # query index
    col0 = lax.broadcasted_iota(jnp.int32, (S, Tk), 1)  # key index within tile

    def kv_step(t, carry):
        acc, m, l = carry
        start = pl.multiple_of(t * Tk, Tk)
        kb = ks_ref[:, pl.ds(start, Tk), :]              # (BH, Tk, Dh) bf16
        vb = vs_ref[:, pl.ds(start, Tk), :]
        padk = padt_ref[:, pl.ds(t, 1), :]               # (Bt, 1, Tk) f32

        s = jnp.einsum('bqd,bkd->bqk', qh, kb,
                       preferred_element_type=jnp.float32)       # (BH, S, Tk)
        s = s.reshape(Bt, H, S, Tk)
        causal = jnp.where(col0 + start > row, BIG_NEG, 0.0)     # (S, Tk)
        keybias = jnp.where(padk > 0.5, BIG_NEG, 0.0)            # (Bt, 1, Tk)
        s = s + causal[None, None, :, :] + keybias[:, :, None, :]

        m_new = jnp.maximum(m, jnp.max(s, axis=-1, keepdims=True))
        alpha = jnp.exp(m - m_new)
        p = jnp.exp(s - m_new)
        l_new = alpha * l + jnp.sum(p, axis=-1, keepdims=True)
        pv = jnp.einsum('bqk,bkd->bqd',
                        p.reshape(BH, S, Tk).astype(jnp.bfloat16), vb,
                        preferred_element_type=jnp.float32)      # (BH, S, Dh)
        acc_new = alpha * acc + pv.reshape(Bt, H, S, Dh)
        return acc_new, m_new, l_new

    acc0 = jnp.zeros((Bt, H, S, Dh), jnp.float32)
    m0 = jnp.full((Bt, H, S, 1), -jnp.inf, jnp.float32)
    l0 = jnp.zeros((Bt, H, S, 1), jnp.float32)
    acc, _, l_fin = lax.fori_loop(0, num_kv, kv_step, (acc0, m0, l0),
                                  unroll=(num_kv <= 4))

    # normalize AFTER the PV matmul (EUP reciprocal, no (H,S,S) multiply)
    ctx = acc * pl.reciprocal(l_fin, approx=True)                # (Bt,H,S,Dh)
    ctx = jnp.swapaxes(ctx, 1, 2).reshape(R, E)

    attn_out = jnp.dot(ctx.astype(jnp.bfloat16), wo_ref[0],
                       preferred_element_type=jnp.float32) + bo_ref[0]

    # ---- residual + LayerNorm 1 (f32) ---------------------------------------
    x1 = x2d + attn_out
    mu1 = jnp.mean(x1, axis=-1, keepdims=True)
    var1 = jnp.mean((x1 - mu1) ** 2, axis=-1, keepdims=True)
    ln1 = (x1 - mu1) * lax.rsqrt(var1 + LN_EPS) * g1_ref[0] + be1_ref[0]

    # ---- feed forward (ReLU) + residual + LayerNorm 2 ------------------------
    h1 = jnp.dot(ln1.astype(jnp.bfloat16), w1_ref[0],
                 preferred_element_type=jnp.float32) + bb1_ref[0]
    h1 = jnp.maximum(h1, 0.0)
    ff = jnp.dot(h1.astype(jnp.bfloat16), w2_ref[0],
                 preferred_element_type=jnp.float32) + bb2_ref[0]

    x2 = ln1 + ff
    mu2 = jnp.mean(x2, axis=-1, keepdims=True)
    var2 = jnp.mean((x2 - mu2) ** 2, axis=-1, keepdims=True)
    ln2 = (x2 - mu2) * lax.rsqrt(var2 + LN_EPS) * g2_ref[0] + be2_ref[0]

    # fully-masked query rows -> NaN in PyTorch -> overwritten with -100000
    dead = dead_ref[...].reshape(R, 1) > 0.5
    y = (jnp.where(dead, NAN_FILL, ln2)).reshape(Bt, S, E)

    xs_ref[...] = y                                    # feeds the next layer

    @pl.when(layer == n_layers - 1)
    def _():
        o_ref[...] = y


def encoder_stack(x, padt, dead, lp, *, n_heads, batch_tile):
    B, S, E = x.shape
    L = lp['wq'].shape[0]
    Hff = lp['w1'].shape[2]
    num_kv, Tk = padt.shape[1], padt.shape[2]
    Bt = batch_tile
    nb = B // Bt
    H = n_heads
    Dh = E // H
    vmem_limit = _vmem_limit_bytes()

    def act_spec(shape):
        return pl.BlockSpec(shape, lambda b, l: (b, 0, 0))

    def w_spec(shape):
        return pl.BlockSpec((1,) + shape, lambda b, l: (l, 0, 0))

    in_specs = [
        act_spec((Bt, S, E)),                        # x (token+pos embedding)
        act_spec((Bt, num_kv, Tk)),                  # key-pad bits, per KV tile
        act_spec((Bt, S, 1)),                        # dead-row predicate
        w_spec((E, E)), w_spec((1, E)),              # wq, bq
        w_spec((E, E)), w_spec((1, E)),              # wk, bk
        w_spec((E, E)), w_spec((1, E)),              # wv, bv
        w_spec((E, E)), w_spec((1, E)),              # wo, bo
        w_spec((1, E)), w_spec((1, E)),              # g1, be1
        w_spec((E, Hff)), w_spec((1, Hff)),          # w1, bb1
        w_spec((Hff, E)), w_spec((1, E)),            # w2, bb2
        w_spec((1, E)), w_spec((1, E)),              # g2, be2
    ]
    out_spec = pl.BlockSpec((Bt, S, E), lambda b, l: (b, 0, 0))

    flops = B * L * (8 * S * E * E + 4 * S * S * E + 4 * S * E * Hff)
    transcendentals = B * L * (n_heads * S * S + 2 * S)
    bytes_accessed = (2 * B * S * E * 4                       # x in / out
                      + nb * L * (4 * E * E + 2 * E * Hff) * 2  # bf16 weights
                      + nb * L * (7 * E + Hff) * 4              # biases / LN
                      + 2 * B * S * 4)                          # pad / dead
    cost = pl.CostEstimate(flops=flops, transcendentals=transcendentals,
                           bytes_accessed=bytes_accessed)

    scratch = [
        pltpu.VMEM((Bt, S, E), jnp.float32),         # resident activations
        pltpu.VMEM((Bt * H, S, Dh), jnp.bfloat16),   # K for KV tiling
        pltpu.VMEM((Bt * H, S, Dh), jnp.bfloat16),   # V for KV tiling
    ]

    return pl.pallas_call(
        functools.partial(_encoder_stack_kernel, n_heads),
        out_shape=jax.ShapeDtypeStruct((B, S, E), jnp.float32),
        grid=(nb, L),
        in_specs=in_specs,
        out_specs=out_spec,
        scratch_shapes=scratch,
        compiler_params=pltpu.CompilerParams(
            dimension_semantics=("parallel", "arbitrary"),
            vmem_limit_bytes=vmem_limit),
        cost_estimate=cost,
    )(x, padt, dead,
      lp['wq'], lp['bq'], lp['wk'], lp['bk'], lp['wv'], lp['bv'],
      lp['wo'], lp['bo'], lp['g1'], lp['be1'],
      lp['w1'], lp['bb1'], lp['w2'], lp['bb2'], lp['g2'], lp['be2'])


# --------------------------------------------------------------------------
# Final vocab projection: gridded over (row tiles, vocab tiles), V fastest.
# --------------------------------------------------------------------------
def _vocab_proj_kernel(x_ref, w_ref, b_ref, o_ref):
    o_ref[...] = (jnp.dot(x_ref[...], w_ref[...],
                          preferred_element_type=jnp.float32)
                  + b_ref[...]).astype(o_ref.dtype)


def _select_final_tiles(M, E, V, vmem_limit, tm, tv):
    """Lane-dense output tiles that fit the per-generation VMEM budget."""
    budget = vmem_limit // 2   # leave room for pipelining slack

    def need(m, v):            # double-buffered bf16 x/w tiles + f32 out tile
        return 2 * (m * E * 2 + E * v * 2 + v * 4 + m * v * 4)

    tm, tv = min(tm, M), min(tv, V)
    while need(tm, tv) > budget and tv > 128:
        tv = max(128, tv // 2)
    while need(tm, tv) > budget and tm > 8:
        tm = max(8, tm // 2)
    if tm < M:
        tm = max(8, (tm // 8) * 8)
    if tv < V:
        tv = max(128, (tv // 128) * 128)
    return tm, tv


def final_linear(x2d, w, b, *, tm=None, tv=None):
    M, E = x2d.shape
    V = w.shape[1]
    vmem_limit = _vmem_limit_bytes()
    if tm is None:
        tm = 1024 if vmem_limit >= 96 * 1024 * 1024 else 512   # v5e/v6e vs v7x
    if tv is None:
        tv = 1024
    tm, tv = _select_final_tiles(M, E, V, vmem_limit, tm, tv)

    grid = (pl.cdiv(M, tm), pl.cdiv(V, tv))   # V fastest: x tile resident over j
    cost = pl.CostEstimate(
        flops=2 * M * E * V, transcendentals=0,
        bytes_accessed=(M * E * 2                 # bf16 x, read once per row tile
                        + E * V * 2 * grid[0]     # bf16 w, re-read per row tile
                        + V * 4 * grid[0]
                        + M * V * 4))             # f32 logits writeback

    return pl.pallas_call(
        _vocab_proj_kernel,
        out_shape=jax.ShapeDtypeStruct((M, V), jnp.float32),
        grid=grid,
        in_specs=[pl.BlockSpec((tm, E), lambda i, j: (i, 0)),
                  pl.BlockSpec((E, tv), lambda i, j: (0, j)),
                  pl.BlockSpec((1, tv), lambda i, j: (0, j))],
        out_specs=pl.BlockSpec((tm, tv), lambda i, j: (i, j)),
        compiler_params=pltpu.CompilerParams(
            dimension_semantics=("parallel", "parallel"),
            vmem_limit_bytes=vmem_limit),
        cost_estimate=cost,
    )(x2d, w, b)


# --------------------------------------------------------------------------
# Parameters + forward
# --------------------------------------------------------------------------
def init_gpt_params(key, *, vocab_size, embedding_size, sequence_length,
                    hidden_size, n_heads, n_transformers, padding_idx):
    E, Hff, V, L = embedding_size, hidden_size, vocab_size, n_transformers
    scale = 1.0 / math.sqrt(E // n_heads)   # folded into wq/bq (query scaling)

    def nrm(k, shape, s=0.02):
        return s * jax.random.normal(k, shape, dtype=jnp.float32)

    keys = jax.random.split(key, 3 + 6 * L)
    ki = iter(keys)

    emb = nrm(next(ki), (V, E)).at[padding_idx].set(0.0)   # nn.Embedding pad row
    pos = nrm(next(ki), (sequence_length, E))

    wq, wk, wv, wo, w1, w2 = [], [], [], [], [], []
    for _ in range(L):
        # NOTE: when importing PyTorch weights, wq AND bq must both be
        #       pre-multiplied by 1/sqrt(head_dim) (the kernel does not scale).
        wq.append((nrm(next(ki), (E, E)) * scale).astype(jnp.bfloat16))
        wk.append(nrm(next(ki), (E, E)).astype(jnp.bfloat16))
        wv.append(nrm(next(ki), (E, E)).astype(jnp.bfloat16))
        wo.append(nrm(next(ki), (E, E)).astype(jnp.bfloat16))
        w1.append(nrm(next(ki), (E, Hff)).astype(jnp.bfloat16))
        w2.append(nrm(next(ki), (Hff, E)).astype(jnp.bfloat16))

    layers = dict(
        wq=jnp.stack(wq), bq=jnp.zeros((L, 1, E), jnp.float32),
        wk=jnp.stack(wk), bk=jnp.zeros((L, 1, E), jnp.float32),
        wv=jnp.stack(wv), bv=jnp.zeros((L, 1, E), jnp.float32),
        wo=jnp.stack(wo), bo=jnp.zeros((L, 1, E), jnp.float32),
        g1=jnp.ones((L, 1, E), jnp.float32),
        be1=jnp.zeros((L, 1, E), jnp.float32),
        w1=jnp.stack(w1), bb1=jnp.zeros((L, 1, Hff), jnp.float32),
        w2=jnp.stack(w2), bb2=jnp.zeros((L, 1, E), jnp.float32),
        g2=jnp.ones((L, 1, E), jnp.float32),
        be2=jnp.zeros((L, 1, E), jnp.float32),
    )

    wout = nrm(next(ki), (E, V)).astype(jnp.bfloat16)
    bout = jnp.zeros((1, V), jnp.float32)
    return dict(emb=emb, pos=pos, layers=layers, wout=wout, bout=bout)


def gpt_forward(params, input_ids, *, n_heads, padding_idx, tm=None, tv=None):
    """GPTModel forward. input_ids: [B, S] int32 -> logits [B, S, V]."""
    B, S = input_ids.shape
    E = params['emb'].shape[1]
    assert E % n_heads == 0

    # glue (outside kernels): embedding gather + positional embedding
    pad = (input_ids == padding_idx)
    x = jnp.take(params['emb'], input_ids, axis=0) + params['pos'][None, :S, :]
    x = x.astype(jnp.float32)

    pad_f = pad.astype(jnp.float32)
    Tk = _pick_kv_tile(S)
    padt = pad_f.reshape(B, S // Tk, Tk)            # key-pad bits per KV tile
    # query row is "dead" iff every key in its causal window is padding
    dead = (jnp.cumprod(pad_f, axis=1) > 0.5).astype(jnp.float32)[:, :, None]

    bt = _pick_batch_tile(B, S)
    x = encoder_stack(x, padt, dead, params['layers'],
                      n_heads=n_heads, batch_tile=bt)

    logits = final_linear(x.reshape(B * S, E).astype(jnp.bfloat16),
                          params['wout'], params['bout'], tm=tm, tv=tv)
    return logits.reshape(B, S, -1)


if __name__ == "__main__":
    # small, lane-friendly shapes (head_dim = 128, vocab multiple of 128)
    VOCAB = 256
    EMBED = 256
    SEQ = 8
    HIDDEN = 512
    N_HEADS = 2
    N_LAYERS = 2
    PAD_IDX = VOCAB - 1
    BATCH = 2

    key = jax.random.PRNGKey(0)
    pkey, ikey = jax.random.split(key)

    params = init_gpt_params(pkey, vocab_size=VOCAB, embedding_size=EMBED,
                             sequence_length=SEQ, hidden_size=HIDDEN,
                             n_heads=N_HEADS, n_transformers=N_LAYERS,
                             padding_idx=PAD_IDX)

    input_sequence = jax.random.randint(ikey, (BATCH, SEQ), 0, VOCAB - 1,
                                        dtype=jnp.int32)
    input_sequence = input_sequence.at[:, -2:].set(PAD_IDX)  # trailing padding
    input_sequence = input_sequence.at[0, 0].set(PAD_IDX)    # fully-masked row

    fwd = jax.jit(functools.partial(gpt_forward, n_heads=N_HEADS,
                                    padding_idx=PAD_IDX))
    logits = fwd(params, input_sequence)
    jax.block_until_ready(logits)

    assert logits.shape == (BATCH, SEQ, VOCAB)
    assert bool(jnp.all(jnp.isfinite(logits)))
    print("KERNEL_OK")
</pallas_src>

<mosaic_0001>
module attributes {stable_mosaic.version = 11 : i64} {
  func.func @_vocab_proj_kernel(%arg0: i32, %arg1: i32, %arg2: memref<16x256xbf16, #tpu.memory_space<vmem>>, %arg3: memref<256x256xbf16, #tpu.memory_space<vmem>>, %arg4: memref<1x256xf32, #tpu.memory_space<vmem>>, %arg5: memref<16x256xf32, #tpu.memory_space<vmem>>) attributes {dimension_semantics = [#tpu.dimension_semantics<parallel>, #tpu.dimension_semantics<parallel>], iteration_bounds = array<i64: 1, 1>, scalar_prefetch = 0 : i64, scratch_operands = 0 : i64, tpu.core_type = #tpu.core_type<tc>, window_params = [{transform_indices = @transform_0, window_bounds = array<i64: 16, 256>}, {transform_indices = @transform_1, window_bounds = array<i64: 256, 256>}, {transform_indices = @transform_2, window_bounds = array<i64: 1, 256>}, {transform_indices = @transform_3, window_bounds = array<i64: 16, 256>}]} {
    %c0 = arith.constant 0 : index
    %c0_0 = arith.constant 0 : index
    %0 = vector.load %arg2[%c0, %c0_0] : memref<16x256xbf16, #tpu.memory_space<vmem>>, vector<16x256xbf16>
    %c0_1 = arith.constant 0 : index
    %c0_2 = arith.constant 0 : index
    %1 = vector.load %arg3[%c0_1, %c0_2] : memref<256x256xbf16, #tpu.memory_space<vmem>>, vector<256x256xbf16>
    %cst = arith.constant dense<0.000000e+00> : vector<16x256xf32>
    %2 = tpu.matmul %0, %1, %cst {dimension_numbers = #tpu.dot_dimension_numbers<[1], [0], [0], [1], [0, 0, 1, 1], [], []>} : vector<16x256xbf16>, vector<256x256xbf16>, vector<16x256xf32> -> vector<16x256xf32>
    %c0_3 = arith.constant 0 : index
    %c0_4 = arith.constant 0 : index
    %3 = vector.load %arg4[%c0_3, %c0_4] : memref<1x256xf32, #tpu.memory_space<vmem>>, vector<1x256xf32>
    %4 = vector.broadcast %3 : vector<1x256xf32> to vector<16x256xf32>
    %5 = arith.addf %2, %4 : vector<16x256xf32>
    %c0_5 = arith.constant 0 : index
    %c0_6 = arith.constant 0 : index
    %6 = vector.load %arg5[%c0_5, %c0_6] : memref<16x256xf32, #tpu.memory_space<vmem>>, vector<16x256xf32>
    tpu.vector_store %arg5[%c0_5, %c0_6], %5 {strides = array<i32>} : memref<16x256xf32, #tpu.memory_space<vmem>>, vector<16x256xf32>,
    return
  }
  func.func @transform_0(%arg0: i32, %arg1: i32) -> (i32, i32) {
    %c0_i32 = arith.constant 0 : i32
    %c0_i32_0 = arith.constant 0 : i32
    return %arg0, %c0_i32 : i32, i32
  }
  func.func @transform_1(%arg0: i32, %arg1: i32) -> (i32, i32) {
    %c0_i32 = arith.constant 0 : i32
    %c0_i32_0 = arith.constant 0 : i32
    return %c0_i32, %arg1 : i32, i32
  }
  func.func @transform_2(%arg0: i32, %arg1: i32) -> (i32, i32) {
    %c0_i32 = arith.constant 0 : i32
    %c0_i32_0 = arith.constant 0 : i32
    return %c0_i32, %arg1 : i32, i32
  }
  func.func @transform_3(%arg0: i32, %arg1: i32) -> (i32, i32) {
    %c0_i32 = arith.constant 0 : i32
    return %arg0, %arg1 : i32, i32
  }
}

module attributes {stable_mosaic.version = 11 : i64} {
  func.func @_encoder_stack_kernel(%arg0: i32, %arg1: i32, %arg2: memref<1x8x256xf32, #tpu.memory_space<vmem>>, %arg3: memref<1x1x8xf32, #tpu.memory_space<vmem>>, %arg4: memref<1x8x1xf32, #tpu.memory_space<vmem>>, %arg5: memref<1x256x256xbf16, #tpu.memory_space<vmem>>, %arg6: memref<1x1x256xf32, #tpu.memory_space<vmem>>, %arg7: memref<1x256x256xbf16, #tpu.memory_space<vmem>>, %arg8: memref<1x1x256xf32, #tpu.memory_space<vmem>>, %arg9: memref<1x256x256xbf16, #tpu.memory_space<vmem>>, %arg10: memref<1x1x256xf32, #tpu.memory_space<vmem>>, %arg11: memref<1x256x256xbf16, #tpu.memory_space<vmem>>, %arg12: memref<1x1x256xf32, #tpu.memory_space<vmem>>, %arg13: memref<1x1x256xf32, #tpu.memory_space<vmem>>, %arg14: memref<1x1x256xf32, #tpu.memory_space<vmem>>, %arg15: memref<1x256x512xbf16, #tpu.memory_space<vmem>>, %arg16: memref<1x1x512xf32, #tpu.memory_space<vmem>>, %arg17: memref<1x512x256xbf16, #tpu.memory_space<vmem>>, %arg18: memref<1x1x256xf32, #tpu.memory_space<vmem>>, %arg19: memref<1x1x256xf32, #tpu.memory_space<vmem>>, %arg20: memref<1x1x256xf32, #tpu.memory_space<vmem>>, %arg21: memref<1x8x256xf32, #tpu.memory_space<vmem>>, %arg22: memref<1x8x256xf32, #tpu.memory_space<vmem>>, %arg23: memref<2x8x128xbf16, #tpu.memory_space<vmem>>, %arg24: memref<2x8x128xbf16, #tpu.memory_space<vmem>>) attributes {dimension_semantics = [#tpu.dimension_semantics<parallel>, #tpu.dimension_semantics<arbitrary>], iteration_bounds = array<i64: 2, 2>, scalar_prefetch = 0 : i64, scratch_operands = 3 : i64, tpu.core_type = #tpu.core_type<tc>, window_params = [{transform_indices = @transform_0, window_bounds = array<i64: 1, 8, 256>}, {transform_indices = @transform_1, window_bounds = array<i64: 1, 1, 8>}, {transform_indices = @transform_2, window_bounds = array<i64: 1, 8, 1>}, {transform_indices = @transform_3, window_bounds = array<i64: 1, 256, 256>}, {transform_indices = @transform_4, window_bounds = array<i64: 1, 1, 256>}, {transform_indices = @transform_5, window_bounds = array<i64: 1, 256, 256>}, {transform_indices = @transform_6, window_bounds = array<i64: 1, 1, 256>}, {transform_indices = @transform_7, window_bounds = array<i64: 1, 256, 256>}, {transform_indices = @transform_8, window_bounds = array<i64: 1, 1, 256>}, {transform_indices = @transform_9, window_bounds = array<i64: 1, 256, 256>}, {transform_indices = @transform_10, window_bounds = array<i64: 1, 1, 256>}, {transform_indices = @transform_11, window_bounds = array<i64: 1, 1, 256>}, {transform_indices = @transform_12, window_bounds = array<i64: 1, 1, 256>}, {transform_indices = @transform_13, window_bounds = array<i64: 1, 256, 512>}, {transform_indices = @transform_14, window_bounds = array<i64: 1, 1, 512>}, {transform_indices = @transform_15, window_bounds = array<i64: 1, 512, 256>}, {transform_indices = @transform_16, window_bounds = array<i64: 1, 1, 256>}, {transform_indices = @transform_17, window_bounds = array<i64: 1, 1, 256>}, {transform_indices = @transform_18, window_bounds = array<i64: 1, 1, 256>}, {transform_indices = @transform_19, window_bounds = array<i64: 1, 8, 256>}]} {
    %c0_i32 = arith.constant 0 : i32
    %0 = arith.cmpi eq, %arg1, %c0_i32 : i32
    %1 = arith.extui %0 : i1 to i32
    %c0_i32_0 = arith.constant 0 : i32
    %2 = arith.cmpi ne, %1, %c0_i32_0 : i32
    scf.if %2 {
      %c0_102 = arith.constant 0 : index
      %c0_103 = arith.constant 0 : index
      %c0_104 = arith.constant 0 : index
      %190 = vector.load %arg2[%c0_102, %c0_103, %c0_104] : memref<1x8x256xf32, #tpu.memory_space<vmem>>, vector<1x8x256xf32>
      %c0_105 = arith.constant 0 : index
      %c0_106 = arith.constant 0 : index
      %c0_107 = arith.constant 0 : index
      %191 = vector.load %arg22[%c0_105, %c0_106, %c0_107] : memref<1x8x256xf32, #tpu.memory_space<vmem>>, vector<1x8x256xf32>
      tpu.vector_store %arg22[%c0_105, %c0_106, %c0_107], %190 {strides = array<i32>} : memref<1x8x256xf32, #tpu.memory_space<vmem>>, vector<1x8x256xf32>,
    } else {
    }
    %c0 = arith.constant 0 : index
    %c0_1 = arith.constant 0 : index
    %c0_2 = arith.constant 0 : index
    %3 = vector.load %arg22[%c0, %c0_1, %c0_2] : memref<1x8x256xf32, #tpu.memory_space<vmem>>, vector<1x8x256xf32>
    %4 = vector.shape_cast %3 : vector<1x8x256xf32> to vector<8x256xf32>
    %5 = arith.truncf %4 : vector<8x256xf32> to vector<8x256xbf16>
    %c0_3 = arith.constant 0 : index
    %c0_4 = arith.constant 0 : index
    %c0_5 = arith.constant 0 : index
    %6 = vector.load %arg5[%c0_3, %c0_4, %c0_5] : memref<1x256x256xbf16, #tpu.memory_space<vmem>>, vector<1x256x256xbf16>
    %7 = vector.shape_cast %6 : vector<1x256x256xbf16> to vector<256x256xbf16>
    %cst = arith.constant dense<0.000000e+00> : vector<8x256xf32>
    %8 = tpu.matmul %5, %7, %cst {dimension_numbers = #tpu.dot_dimension_numbers<[1], [0], [0], [1], [0, 0, 1, 1], [], []>} : vector<8x256xbf16>, vector<256x256xbf16>, vector<8x256xf32> -> vector<8x256xf32>
    %c0_6 = arith.constant 0 : index
    %c0_7 = arith.constant 0 : index
    %c0_8 = arith.constant 0 : index
    %9 = vector.load %arg6[%c0_6, %c0_7, %c0_8] : memref<1x1x256xf32, #tpu.memory_space<vmem>>, vector<1x1x256xf32>
    %10 = vector.shape_cast %9 : vector<1x1x256xf32> to vector<1x256xf32>
    %11 = vector.broadcast %10 : vector<1x256xf32> to vector<8x256xf32>
    %12 = arith.addf %8, %11 : vector<8x256xf32>
    %c0_9 = arith.constant 0 : index
    %c0_10 = arith.constant 0 : index
    %c0_11 = arith.constant 0 : index
    %13 = vector.load %arg7[%c0_9, %c0_10, %c0_11] : memref<1x256x256xbf16, #tpu.memory_space<vmem>>, vector<1x256x256xbf16>
    %14 = vector.shape_cast %13 : vector<1x256x256xbf16> to vector<256x256xbf16>
    %cst_12 = arith.constant dense<0.000000e+00> : vector<8x256xf32>
    %15 = tpu.matmul %5, %14, %cst_12 {dimension_numbers = #tpu.dot_dimension_numbers<[1], [0], [0], [1], [0, 0, 1, 1], [], []>} : vector<8x256xbf16>, vector<256x256xbf16>, vector<8x256xf32> -> vector<8x256xf32>
    %c0_13 = arith.constant 0 : index
    %c0_14 = arith.constant 0 : index
    %c0_15 = arith.constant 0 : index
    %16 = vector.load %arg8[%c0_13, %c0_14, %c0_15] : memref<1x1x256xf32, #tpu.memory_space<vmem>>, vector<1x1x256xf32>
    %17 = vector.shape_cast %16 : vector<1x1x256xf32> to vector<1x256xf32>
    %18 = vector.broadcast %17 : vector<1x256xf32> to vector<8x256xf32>
    %19 = arith.addf %15, %18 : vector<8x256xf32>
    %c0_16 = arith.constant 0 : index
    %c0_17 = arith.constant 0 : index
    %c0_18 = arith.constant 0 : index
    %20 = vector.load %arg9[%c0_16, %c0_17, %c0_18] : memref<1x256x256xbf16, #tpu.memory_space<vmem>>, vector<1x256x256xbf16>
    %21 = vector.shape_cast %20 : vector<1x256x256xbf16> to vector<256x256xbf16>
    %cst_19 = arith.constant dense<0.000000e+00> : vector<8x256xf32>
    %22 = tpu.matmul %5, %21, %cst_19 {dimension_numbers = #tpu.dot_dimension_numbers<[1], [0], [0], [1], [0, 0, 1, 1], [], []>} : vector<8x256xbf16>, vector<256x256xbf16>, vector<8x256xf32> -> vector<8x256xf32>
    %c0_20 = arith.constant 0 : index
    %c0_21 = arith.constant 0 : index
    %c0_22 = arith.constant 0 : index
    %23 = vector.load %arg10[%c0_20, %c0_21, %c0_22] : memref<1x1x256xf32, #tpu.memory_space<vmem>>, vector<1x1x256xf32>
    %24 = vector.shape_cast %23 : vector<1x1x256xf32> to vector<1x256xf32>
    %25 = vector.broadcast %24 : vector<1x256xf32> to vector<8x256xf32>
    %26 = arith.addf %22, %25 : vector<8x256xf32>
    %27 = vector.shape_cast %12 : vector<8x256xf32> to vector<1x8x2x128xf32>
    %28 = tpu.transpose %27, [0, 2, 1, 3] : vector<1x8x2x128xf32> -> vector<1x2x8x128xf32>
    %29 = vector.shape_cast %28 : vector<1x2x8x128xf32> to vector<2x8x128xf32>
    %30 = arith.truncf %29 : vector<2x8x128xf32> to vector<2x8x128xbf16>
    %31 = vector.shape_cast %19 : vector<8x256xf32> to vector<1x8x2x128xf32>
    %32 = tpu.transpose %31, [0, 2, 1, 3] : vector<1x8x2x128xf32> -> vector<1x2x8x128xf32>
    %33 = vector.shape_cast %32 : vector<1x2x8x128xf32> to vector<2x8x128xf32>
    %34 = arith.truncf %33 : vector<2x8x128xf32> to vector<2x8x128xbf16>
    %c0_23 = arith.constant 0 : index
    %c0_24 = arith.constant 0 : index
    %c0_25 = arith.constant 0 : index
    %35 = vector.load %arg23[%c0_23, %c0_24, %c0_25] : memref<2x8x128xbf16, #tpu.memory_space<vmem>>, vector<2x8x128xbf16>
    tpu.vector_store %arg23[%c0_23, %c0_24, %c0_25], %34 {strides = array<i32>} : memref<2x8x128xbf16, #tpu.memory_space<vmem>>, vector<2x8x128xbf16>,
    %36 = vector.shape_cast %26 : vector<8x256xf32> to vector<1x8x2x128xf32>
    %37 = tpu.transpose %36, [0, 2, 1, 3] : vector<1x8x2x128xf32> -> vector<1x2x8x128xf32>
    %38 = vector.shape_cast %37 : vector<1x2x8x128xf32> to vector<2x8x128xf32>
    %39 = arith.truncf %38 : vector<2x8x128xf32> to vector<2x8x128xbf16>
    %c0_26 = arith.constant 0 : index
    %c0_27 = arith.constant 0 : index
    %c0_28 = arith.constant 0 : index
    %40 = vector.load %arg24[%c0_26, %c0_27, %c0_28] : memref<2x8x128xbf16, #tpu.memory_space<vmem>>, vector<2x8x128xbf16>
    tpu.vector_store %arg24[%c0_26, %c0_27, %c0_28], %39 {strides = array<i32>} : memref<2x8x128xbf16, #tpu.memory_space<vmem>>, vector<2x8x128xbf16>,
    %41 = tpu.iota {dimensions = array<i32: 0>} : vector<8x8xi32>
    %42 = tpu.iota {dimensions = array<i32: 1>} : vector<8x8xi32>
    %cst_29 = arith.constant 0.000000e+00 : f32
    %43 = vector.broadcast %cst_29 : f32 to vector<1x2x8x128xf32>
    %cst_30 = arith.constant 0xFF800000 : f32
    %44 = vector.broadcast %cst_30 : f32 to vector<1x2x8x1xf32>
    %cst_31 = arith.constant 0.000000e+00 : f32
    %45 = vector.broadcast %cst_31 : f32 to vector<1x2x8x1xf32>
    %c0_i32_32 = arith.constant 0 : i32
    %c8_i32 = arith.constant 8 : i32
    %46 = arith.muli %c0_i32_32, %c8_i32 : i32
    %47 = tpu.assume_multiple %46, 8 : i32
    %c0_33 = arith.constant 0 : index
    %48 = arith.index_cast %47 : i32 to index
    %c0_34 = arith.constant 0 : index
    %49 = vector.load %arg23[%c0_33, %48, %c0_34] : memref<2x8x128xbf16, #tpu.memory_space<vmem>>, vector<2x8x128xbf16>
    %c0_35 = arith.constant 0 : index
    %50 = arith.index_cast %47 : i32 to index
    %c0_36 = arith.constant 0 : index
    %51 = vector.load %arg24[%c0_35, %50, %c0_36] : memref<2x8x128xbf16, #tpu.memory_space<vmem>>, vector<2x8x128xbf16>
    %c0_37 = arith.constant 0 : index
    %52 = arith.index_cast %c0_i32_32 : i32 to index
    %c0_38 = arith.constant 0 : index
    %53 = vector.load %arg3[%c0_37, %52, %c0_38] : memref<1x1x8xf32, #tpu.memory_space<vmem>>, vector<1x1x8xf32>
    "tpu.trace_start"() <{level = 10 : i32, message = "bqd,bkd->bqk"}> : () -> ()
    %cst_39 = arith.constant dense<0.000000e+00> : vector<2x8x8xf32>
    %54 = tpu.matmul %30, %49, %cst_39 {dimension_numbers = #tpu.dot_dimension_numbers<[2], [2], [1], [1], [0, 0, 0, 1, 1, 1], [0], [0]>} : vector<2x8x128xbf16>, vector<2x8x128xbf16>, vector<2x8x8xf32> -> vector<2x8x8xf32>
    "tpu.trace_stop"() : () -> ()
    %55 = vector.shape_cast %54 : vector<2x8x8xf32> to vector<1x2x8x8xf32>
    %56 = vector.broadcast %47 : i32 to vector<8x8xi32>
    %57 = arith.addi %42, %56 : vector<8x8xi32>
    %58 = arith.cmpi sgt, %57, %41 : vector<8x8xi32>
    %cst_40 = arith.constant -1.000000e+30 : f32
    %cst_41 = arith.constant 0.000000e+00 : f32
    %59 = vector.broadcast %cst_40 : f32 to vector<8x8xf32>
    %60 = vector.broadcast %cst_41 : f32 to vector<8x8xf32>
    %61 = arith.select %58, %59, %60 : vector<8x8xi1>, vector<8x8xf32>
    %cst_42 = arith.constant 5.000000e-01 : f32
    %62 = vector.broadcast %cst_42 : f32 to vector<1x1x8xf32>
    %63 = arith.cmpf ogt, %53, %62 : vector<1x1x8xf32>
    %cst_43 = arith.constant -1.000000e+30 : f32
    %cst_44 = arith.constant 0.000000e+00 : f32
    %64 = vector.broadcast %cst_43 : f32 to vector<1x1x8xf32>
    %65 = vector.broadcast %cst_44 : f32 to vector<1x1x8xf32>
    %66 = arith.select %63, %64, %65 : vector<1x1x8xi1>, vector<1x1x8xf32>
    %67 = vector.shape_cast %61 : vector<8x8xf32> to vector<1x1x8x8xf32>
    %68 = vector.broadcast %67 : vector<1x1x8x8xf32> to vector<1x2x8x8xf32>
    %69 = arith.addf %55, %68 : vector<1x2x8x8xf32>
    %70 = vector.shape_cast %66 : vector<1x1x8xf32> to vector<1x1x1x8xf32>
    %71 = vector.broadcast %70 : vector<1x1x1x8xf32> to vector<1x2x8x8xf32>
    %72 = arith.addf %69, %71 : vector<1x2x8x8xf32>
    %cst_45 = arith.constant dense<0xFF800000> : vector<1x2x8xf32>
    %73 = vector.multi_reduction <maximumf>, %72, %cst_45 [3] : vector<1x2x8x8xf32> to vector<1x2x8xf32>
    %74 = vector.shape_cast %73 : vector<1x2x8xf32> to vector<1x2x8x1xf32>
    %75 = arith.maximumf %44, %74 : vector<1x2x8x1xf32>
    %76 = arith.subf %44, %75 : vector<1x2x8x1xf32>
    %77 = math.exp %76 : vector<1x2x8x1xf32>
    %78 = vector.broadcast %75 : vector<1x2x8x1xf32> to vector<1x2x8x8xf32>
    %79 = arith.subf %72, %78 : vector<1x2x8x8xf32>
    %80 = math.exp %79 : vector<1x2x8x8xf32>
    %81 = arith.mulf %77, %45 : vector<1x2x8x1xf32>
    %cst_46 = arith.constant dense<0.000000e+00> : vector<1x2x8xf32>
    %82 = vector.multi_reduction <add>, %80, %cst_46 [3] : vector<1x2x8x8xf32> to vector<1x2x8xf32>
    %83 = vector.shape_cast %82 : vector<1x2x8xf32> to vector<1x2x8x1xf32>
    %84 = arith.addf %81, %83 : vector<1x2x8x1xf32>
    %85 = vector.shape_cast %80 : vector<1x2x8x8xf32> to vector<2x8x8xf32>
    %86 = arith.truncf %85 : vector<2x8x8xf32> to vector<2x8x8xbf16>
    "tpu.trace_start"() <{level = 10 : i32, message = "bqk,bkd->bqd"}> : () -> ()
    %cst_47 = arith.constant dense<0.000000e+00> : vector<2x8x128xf32>
    %87 = tpu.matmul %86, %51, %cst_47 {dimension_numbers = #tpu.dot_dimension_numbers<[2], [1], [1], [2], [0, 0, 0, 1, 1, 2], [0], [0]>} : vector<2x8x8xbf16>, vector<2x8x128xbf16>, vector<2x8x128xf32> -> vector<2x8x128xf32>
    "tpu.trace_stop"() : () -> ()
    %88 = vector.broadcast %77 : vector<1x2x8x1xf32> to vector<1x2x8x128xf32>
    %89 = arith.mulf %88, %43 : vector<1x2x8x128xf32>
    %90 = vector.shape_cast %87 : vector<2x8x128xf32> to vector<1x2x8x128xf32>
    %91 = arith.addf %89, %90 : vector<1x2x8x128xf32>
    %c1_i32 = arith.constant 1 : i32
    %92 = tpu.reciprocal %84 {approx = true} : vector<1x2x8x1xf32> -> vector<1x2x8x1xf32>
    %93 = vector.broadcast %92 : vector<1x2x8x1xf32> to vector<1x2x8x128xf32>
    %94 = arith.mulf %91, %93 : vector<1x2x8x128xf32>
    %95 = tpu.transpose %94, [0, 2, 1, 3] : vector<1x2x8x128xf32> -> vector<1x8x2x128xf32>
    %96 = vector.shape_cast %95 : vector<1x8x2x128xf32> to vector<8x256xf32>
    %97 = arith.truncf %96 : vector<8x256xf32> to vector<8x256xbf16>
    %c0_48 = arith.constant 0 : index
    %c0_49 = arith.constant 0 : index
    %c0_50 = arith.constant 0 : index
    %98 = vector.load %arg11[%c0_48, %c0_49, %c0_50] : memref<1x256x256xbf16, #tpu.memory_space<vmem>>, vector<1x256x256xbf16>
    %99 = vector.shape_cast %98 : vector<1x256x256xbf16> to vector<256x256xbf16>
    %cst_51 = arith.constant dense<0.000000e+00> : vector<8x256xf32>
    %100 = tpu.matmul %97, %99, %cst_51 {dimension_numbers = #tpu.dot_dimension_numbers<[1], [0], [0], [1], [0, 0, 1, 1], [], []>} : vector<8x256xbf16>, vector<256x256xbf16>, vector<8x256xf32> -> vector<8x256xf32>
    %c0_52 = arith.constant 0 : index
    %c0_53 = arith.constant 0 : index
    %c0_54 = arith.constant 0 : index
    %101 = vector.load %arg12[%c0_52, %c0_53, %c0_54] : memref<1x1x256xf32, #tpu.memory_space<vmem>>, vector<1x1x256xf32>
    %102 = vector.shape_cast %101 : vector<1x1x256xf32> to vector<1x256xf32>
    %103 = vector.broadcast %102 : vector<1x256xf32> to vector<8x256xf32>
    %104 = arith.addf %100, %103 : vector<8x256xf32>
    %105 = arith.addf %4, %104 : vector<8x256xf32>
    %cst_55 = arith.constant dense<0.000000e+00> : vector<8xf32>
    %106 = vector.multi_reduction <add>, %105, %cst_55 [1] : vector<8x256xf32> to vector<8xf32>
    %107 = vector.shape_cast %106 : vector<8xf32> to vector<8x1xf32>
    %cst_56 = arith.constant 2.560000e+02 : f32
    %108 = vector.broadcast %cst_56 : f32 to vector<8x1xf32>
    %109 = arith.divf %107, %108 : vector<8x1xf32>
    %110 = vector.broadcast %109 : vector<8x1xf32> to vector<8x256xf32>
    %111 = arith.subf %105, %110 : vector<8x256xf32>
    %112 = arith.mulf %111, %111 : vector<8x256xf32>
    %cst_57 = arith.constant dense<0.000000e+00> : vector<8xf32>
    %113 = vector.multi_reduction <add>, %112, %cst_57 [1] : vector<8x256xf32> to vector<8xf32>
    %114 = vector.shape_cast %113 : vector<8xf32> to vector<8x1xf32>
    %cst_58 = arith.constant 2.560000e+02 : f32
    %115 = vector.broadcast %cst_58 : f32 to vector<8x1xf32>
    %116 = arith.divf %114, %115 : vector<8x1xf32>
    %117 = vector.broadcast %109 : vector<8x1xf32> to vector<8x256xf32>
    %118 = arith.subf %105, %117 : vector<8x256xf32>
    %cst_59 = arith.constant 9.99999974E-6 : f32
    %119 = vector.broadcast %cst_59 : f32 to vector<8x1xf32>
    %120 = arith.addf %116, %119 : vector<8x1xf32>
    %121 = math.rsqrt %120 : vector<8x1xf32>
    %122 = vector.broadcast %121 : vector<8x1xf32> to vector<8x256xf32>
    %123 = arith.mulf %118, %122 : vector<8x256xf32>
    %c0_60 = arith.constant 0 : index
    %c0_61 = arith.constant 0 : index
    %c0_62 = arith.constant 0 : index
    %124 = vector.load %arg13[%c0_60, %c0_61, %c0_62] : memref<1x1x256xf32, #tpu.memory_space<vmem>>, vector<1x1x256xf32>
    %125 = vector.shape_cast %124 : vector<1x1x256xf32> to vector<1x256xf32>
    %126 = vector.broadcast %125 : vector<1x256xf32> to vector<8x256xf32>
    %127 = arith.mulf %123, %126 : vector<8x256xf32>
    %c0_63 = arith.constant 0 : index
    %c0_64 = arith.constant 0 : index
    %c0_65 = arith.constant 0 : index
    %128 = vector.load %arg14[%c0_63, %c0_64, %c0_65] : memref<1x1x256xf32, #tpu.memory_space<vmem>>, vector<1x1x256xf32>
    %129 = vector.shape_cast %128 : vector<1x1x256xf32> to vector<1x256xf32>
    %130 = vector.broadcast %129 : vector<1x256xf32> to vector<8x256xf32>
    %131 = arith.addf %127, %130 : vector<8x256xf32>
    %132 = arith.truncf %131 : vector<8x256xf32> to vector<8x256xbf16>
    %c0_66 = arith.constant 0 : index
    %c0_67 = arith.constant 0 : index
    %c0_68 = arith.constant 0 : index
    %133 = vector.load %arg15[%c0_66, %c0_67, %c0_68] : memref<1x256x512xbf16, #tpu.memory_space<vmem>>, vector<1x256x512xbf16>
    %134 = vector.shape_cast %133 : vector<1x256x512xbf16> to vector<256x512xbf16>
    %cst_69 = arith.constant dense<0.000000e+00> : vector<8x512xf32>
    %135 = tpu.matmul %132, %134, %cst_69 {dimension_numbers = #tpu.dot_dimension_numbers<[1], [0], [0], [1], [0, 0, 1, 1], [], []>} : vector<8x256xbf16>, vector<256x512xbf16>, vector<8x512xf32> -> vector<8x512xf32>
    %c0_70 = arith.constant 0 : index
    %c0_71 = arith.constant 0 : index
    %c0_72 = arith.constant 0 : index
    %136 = vector.load %arg16[%c0_70, %c0_71, %c0_72] : memref<1x1x512xf32, #tpu.memory_space<vmem>>, vector<1x1x512xf32>
    %137 = vector.shape_cast %136 : vector<1x1x512xf32> to vector<1x512xf32>
    %138 = vector.broadcast %137 : vector<1x512xf32> to vector<8x512xf32>
    %139 = arith.addf %135, %138 : vector<8x512xf32>
    %cst_73 = arith.constant 0.000000e+00 : f32
    %140 = vector.broadcast %cst_73 : f32 to vector<8x512xf32>
    %141 = arith.maximumf %139, %140 : vector<8x512xf32>
    %142 = arith.truncf %141 : vector<8x512xf32> to vector<8x512xbf16>
    %c0_74 = arith.constant 0 : index
    %c0_75 = arith.constant 0 : index
    %c0_76 = arith.constant 0 : index
    %143 = vector.load %arg17[%c0_74, %c0_75, %c0_76] : memref<1x512x256xbf16, #tpu.memory_space<vmem>>, vector<1x512x256xbf16>
    %144 = vector.shape_cast %143 : vector<1x512x256xbf16> to vector<512x256xbf16>
    %cst_77 = arith.constant dense<0.000000e+00> : vector<8x256xf32>
    %145 = tpu.matmul %142, %144, %cst_77 {dimension_numbers = #tpu.dot_dimension_numbers<[1], [0], [0], [1], [0, 0, 1, 1], [], []>} : vector<8x512xbf16>, vector<512x256xbf16>, vector<8x256xf32> -> vector<8x256xf32>
    %c0_78 = arith.constant 0 : index
    %c0_79 = arith.constant 0 : index
    %c0_80 = arith.constant 0 : index
    %146 = vector.load %arg18[%c0_78, %c0_79, %c0_80] : memref<1x1x256xf32, #tpu.memory_space<vmem>>, vector<1x1x256xf32>
    %147 = vector.shape_cast %146 : vector<1x1x256xf32> to vector<1x256xf32>
    %148 = vector.broadcast %147 : vector<1x256xf32> to vector<8x256xf32>
    %149 = arith.addf %145, %148 : vector<8x256xf32>
    %150 = arith.addf %131, %149 : vector<8x256xf32>
    %cst_81 = arith.constant dense<0.000000e+00> : vector<8xf32>
    %151 = vector.multi_reduction <add>, %150, %cst_81 [1] : vector<8x256xf32> to vector<8xf32>
    %152 = vector.shape_cast %151 : vector<8xf32> to vector<8x1xf32>
    %cst_82 = arith.constant 2.560000e+02 : f32
    %153 = vector.broadcast %cst_82 : f32 to vector<8x1xf32>
    %154 = arith.divf %152, %153 : vector<8x1xf32>
    %155 = vector.broadcast %154 : vector<8x1xf32> to vector<8x256xf32>
    %156 = arith.subf %150, %155 : vector<8x256xf32>
    %157 = arith.mulf %156, %156 : vector<8x256xf32>
    %cst_83 = arith.constant dense<0.000000e+00> : vector<8xf32>
    %158 = vector.multi_reduction <add>, %157, %cst_83 [1] : vector<8x256xf32> to vector<8xf32>
    %159 = vector.shape_cast %158 : vector<8xf32> to vector<8x1xf32>
    %cst_84 = arith.constant 2.560000e+02 : f32
    %160 = vector.broadcast %cst_84 : f32 to vector<8x1xf32>
    %161 = arith.divf %159, %160 : vector<8x1xf32>
    %162 = vector.broadcast %154 : vector<8x1xf32> to vector<8x256xf32>
    %163 = arith.subf %150, %162 : vector<8x256xf32>
    %cst_85 = arith.constant 9.99999974E-6 : f32
    %164 = vector.broadcast %cst_85 : f32 to vector<8x1xf32>
    %165 = arith.addf %161, %164 : vector<8x1xf32>
    %166 = math.rsqrt %165 : vector<8x1xf32>
    %167 = vector.broadcast %166 : vector<8x1xf32> to vector<8x256xf32>
    %168 = arith.mulf %163, %167 : vector<8x256xf32>
    %c0_86 = arith.constant 0 : index
    %c0_87 = arith.constant 0 : index
    %c0_88 = arith.constant 0 : index
    %169 = vector.load %arg19[%c0_86, %c0_87, %c0_88] : memref<1x1x256xf32, #tpu.memory_space<vmem>>, vector<1x1x256xf32>
    %170 = vector.shape_cast %169 : vector<1x1x256xf32> to vector<1x256xf32>
    %171 = vector.broadcast %170 : vector<1x256xf32> to vector<8x256xf32>
    %172 = arith.mulf %168, %171 : vector<8x256xf32>
    %c0_89 = arith.constant 0 : index
    %c0_90 = arith.constant 0 : index
    %c0_91 = arith.constant 0 : index
    %173 = vector.load %arg20[%c0_89, %c0_90, %c0_91] : memref<1x1x256xf32, #tpu.memory_space<vmem>>, vector<1x1x256xf32>
    %174 = vector.shape_cast %173 : vector<1x1x256xf32> to vector<1x256xf32>
    %175 = vector.broadcast %174 : vector<1x256xf32> to vector<8x256xf32>
    %176 = arith.addf %172, %175 : vector<8x256xf32>
    %c0_92 = arith.constant 0 : index
    %c0_93 = arith.constant 0 : index
    %c0_94 = arith.constant 0 : index
    %177 = vector.load %arg4[%c0_92, %c0_93, %c0_94] : memref<1x8x1xf32, #tpu.memory_space<vmem>>, vector<1x8x1xf32>
    %178 = vector.shape_cast %177 : vector<1x8x1xf32> to vector<8x1xf32>
    %cst_95 = arith.constant 5.000000e-01 : f32
    %179 = vector.broadcast %cst_95 : f32 to vector<8x1xf32>
    %180 = arith.cmpf ogt, %178, %179 : vector<8x1xf32>
    %cst_96 = arith.constant -1.000000e+05 : f32
    %181 = vector.shape_cast %180 : vector<8x1xi1> to vector<8x1xi1>
    %182 = vector.broadcast %181 : vector<8x1xi1> to vector<8x256xi1>
    %183 = vector.broadcast %cst_96 : f32 to vector<8x256xf32>
    %184 = arith.select %182, %183, %176 : vector<8x256xi1>, vector<8x256xf32>
    %185 = vector.shape_cast %184 : vector<8x256xf32> to vector<1x8x256xf32>
    %c0_97 = arith.constant 0 : index
    %c0_98 = arith.constant 0 : index
    %c0_99 = arith.constant 0 : index
    %186 = vector.load %arg22[%c0_97, %c0_98, %c0_99] : memref<1x8x256xf32, #tpu.memory_space<vmem>>, vector<1x8x256xf32>
    tpu.vector_store %arg22[%c0_97, %c0_98, %c0_99], %185 {strides = array<i32>} : memref<1x8x256xf32, #tpu.memory_space<vmem>>, vector<1x8x256xf32>,
    %c1_i32_100 = arith.constant 1 : i32
    %187 = arith.cmpi eq, %arg1, %c1_i32_100 : i32
    %188 = arith.extui %187 : i1 to i32
    %c0_i32_101 = arith.constant 0 : i32
    %189 = arith.cmpi ne, %188, %c0_i32_101 : i32
    scf.if %189 {
      %c0_102 = arith.constant 0 : index
      %c0_103 = arith.constant 0 : index
      %c0_104 = arith.constant 0 : index
      %190 = vector.load %arg21[%c0_102, %c0_103, %c0_104] : memref<1x8x256xf32, #tpu.memory_space<vmem>>, vector<1x8x256xf32>
      tpu.vector_store %arg21[%c0_102, %c0_103, %c0_104], %185 {strides = array<i32>} : memref<1x8x256xf32, #tpu.memory_space<vmem>>, vector<1x8x256xf32>,
    } else {
    }
    return
  }
  func.func @transform_0(%arg0: i32, %arg1: i32) -> (i32, i32, i32) {
    %c0_i32 = arith.constant 0 : i32
    %c0_i32_0 = arith.constant 0 : i32
    %c0_i32_1 = arith.constant 0 : i32
    return %arg0, %c0_i32, %c0_i32_0 : i32, i32, i32
  }
  func.func @transform_1(%arg0: i32, %arg1: i32) -> (i32, i32, i32) {
    %c0_i32 = arith.constant 0 : i32
    %c0_i32_0 = arith.constant 0 : i32
    %c0_i32_1 = arith.constant 0 : i32
    return %arg0, %c0_i32, %c0_i32_0 : i32, i32, i32
  }
  func.func @transform_2(%arg0: i32, %arg1: i32) -> (i32, i32, i32) {
    %c0_i32 = arith.constant 0 : i32
    %c0_i32_0 = arith.constant 0 : i32
    %c0_i32_1 = arith.constant 0 : i32
    return %arg0, %c0_i32, %c0_i32_0 : i32, i32, i32
  }
  func.func @transform_3(%arg0: i32, %arg1: i32) -> (i32, i32, i32) {
    %c0_i32 = arith.constant 0 : i32
    %c0_i32_0 = arith.constant 0 : i32
    %c0_i32_1 = arith.constant 0 : i32
    return %arg1, %c0_i32, %c0_i32_0 : i32, i32, i32
  }
  func.func @transform_4(%arg0: i32, %arg1: i32) -> (i32, i32, i32) {
    %c0_i32 = arith.constant 0 : i32
    %c0_i32_0 = arith.constant 0 : i32
    %c0_i32_1 = arith.constant 0 : i32
    return %arg1, %c0_i32, %c0_i32_0 : i32, i32, i32
  }
  func.func @transform_5(%arg0: i32, %arg1: i32) -> (i32, i32, i32) {
    %c0_i32 = arith.constant 0 : i32
    %c0_i32_0 = arith.constant 0 : i32
    %c0_i32_1 = arith.constant 0 : i32
    return %arg1, %c0_i32, %c0_i32_0 : i32, i32, i32
  }
  func.func @transform_6(%arg0: i32, %arg1: i32) -> (i32, i32, i32) {
    %c0_i32 = arith.constant 0 : i32
    %c0_i32_0 = arith.constant 0 : i32
    %c0_i32_1 = arith.constant 0 : i32
    return %arg1, %c0_i32, %c0_i32_0 : i32, i32, i32
  }
  func.func @transform_7(%arg0: i32, %arg1: i32) -> (i32, i32, i32) {
    %c0_i32 = arith.constant 0 : i32
    %c0_i32_0 = arith.constant 0 : i32
    %c0_i32_1 = arith.constant 0 : i32
    return %arg1, %c0_i32, %c0_i32_0 : i32, i32, i32
  }
  func.func @transform_8(%arg0: i32, %arg1: i32) -> (i32, i32, i32) {
    %c0_i32 = arith.constant 0 : i32
    %c0_i32_0 = arith.constant 0 : i32
    %c0_i32_1 = arith.constant 0 : i32
    return %arg1, %c0_i32, %c0_i32_0 : i32, i32, i32
  }
  func.func @transform_9(%arg0: i32, %arg1: i32) -> (i32, i32, i32) {
    %c0_i32 = arith.constant 0 : i32
    %c0_i32_0 = arith.constant 0 : i32
    %c0_i32_1 = arith.constant 0 : i32
    return %arg1, %c0_i32, %c0_i32_0 : i32, i32, i32
  }
  func.func @transform_10(%arg0: i32, %arg1: i32) -> (i32, i32, i32) {
    %c0_i32 = arith.constant 0 : i32
    %c0_i32_0 = arith.constant 0 : i32
    %c0_i32_1 = arith.constant 0 : i32
    return %arg1, %c0_i32, %c0_i32_0 : i32, i32, i32
  }
  func.func @transform_11(%arg0: i32, %arg1: i32) -> (i32, i32, i32) {
    %c0_i32 = arith.constant 0 : i32
    %c0_i32_0 = arith.constant 0 : i32
    %c0_i32_1 = arith.constant 0 : i32
    return %arg1, %c0_i32, %c0_i32_0 : i32, i32, i32
  }
  func.func @transform_12(%arg0: i32, %arg1: i32) -> (i32, i32, i32) {
    %c0_i32 = arith.constant 0 : i32
    %c0_i32_0 = arith.constant 0 : i32
    %c0_i32_1 = arith.constant 0 : i32
    return %arg1, %c0_i32, %c0_i32_0 : i32, i32, i32
  }
  func.func @transform_13(%arg0: i32, %arg1: i32) -> (i32, i32, i32) {
    %c0_i32 = arith.constant 0 : i32
    %c0_i32_0 = arith.constant 0 : i32
    %c0_i32_1 = arith.constant 0 : i32
    return %arg1, %c0_i32, %c0_i32_0 : i32, i32, i32
  }
  func.func @transform_14(%arg0: i32, %arg1: i32) -> (i32, i32, i32) {
    %c0_i32 = arith.constant 0 : i32
    %c0_i32_0 = arith.constant 0 : i32
    %c0_i32_1 = arith.constant 0 : i32
    return %arg1, %c0_i32, %c0_i32_0 : i32, i32, i32
  }
  func.func @transform_15(%arg0: i32, %arg1: i32) -> (i32, i32, i32) {
    %c0_i32 = arith.constant 0 : i32
    %c0_i32_0 = arith.constant 0 : i32
    %c0_i32_1 = arith.constant 0 : i32
    return %arg1, %c0_i32, %c0_i32_0 : i32, i32, i32
  }
  func.func @transform_16(%arg0: i32, %arg1: i32) -> (i32, i32, i32) {
    %c0_i32 = arith.constant 0 : i32
    %c0_i32_0 = arith.constant 0 : i32
    %c0_i32_1 = arith.constant 0 : i32
    return %arg1, %c0_i32, %c0_i32_0 : i32, i32, i32
  }
  func.func @transform_17(%arg0: i32, %arg1: i32) -> (i32, i32, i32) {
    %c0_i32 = arith.constant 0 : i32
    %c0_i32_0 = arith.constant 0 : i32
    %c0_i32_1 = arith.constant 0 : i32
    return %arg1, %c0_i32, %c0_i32_0 : i32, i32, i32
  }
  func.func @transform_18(%arg0: i32, %arg1: i32) -> (i32, i32, i32) {
    %c0_i32 = arith.constant 0 : i32
    %c0_i32_0 = arith.constant 0 : i32
    %c0_i32_1 = arith.constant 0 : i32
    return %arg1, %c0_i32, %c0_i32_0 : i32, i32, i32
  }
  func.func @transform_19(%arg0: i32, %arg1: i32) -> (i32, i32, i32) {
    %c0_i32 = arith.constant 0 : i32
    %c0_i32_0 = arith.constant 0 : i32
    %c0_i32_1 = arith.constant 0 : i32
    return %arg0, %c0_i32, %c0_i32_0 : i32, i32, i32
  }
}

</mosaic_0001>

<llo_original>
// kernel: gpt_forward.3
$region0: #{gpt_forward.3}
  #allocation0 [shape = 'u32[]', space=smem, size = 0x4, offset = 0x4, fixed_abs, tag = 'smem constant byte address 0x4 - core index']
  #allocation1 [shape = 'u32[144,128]{1,0:T(1,128)}', space=vmem, size = 0x12000, scoped, tag = 'internal scratch']
  %s0 = inlined_call_operand.hbm [shape: bf16[16,256], index: 0, kind: input, shape index: {}]
  %s1 = inlined_call_operand.hbm [shape: bf16[256,256], index: 1, kind: input, shape index: {}]
  %s2 = inlined_call_operand.hbm [shape: f32[1,256], index: 2, kind: input, shape index: {}]
  %s3 = inlined_call_operand.hbm [shape: f32[16,256], index: 3, kind: output, shape index: {}]
  %s4 = sld [smem:[#allocation0]]
  $region34: #{gpt_forward.3} parent=0
    _
  %s6 = ssub.s32 1, %s4
  %s7 = scalar_select 0, %s6, %s4
  $region1: #{gpt_forward.3} parent=0
    #allocation2 [shape = 'u8[8192]{0}', space=vmem, size = 0x2000, scoped, tag = 'input window, operand 0, single buffered']
    #allocation3 [shape = 's32[1]{0}', space=sflag, size = 0x4, scoped, tag = 'scoped memory for gpt_forward.3']
    #allocation4 [shape = 's32[1]{0}', space=sflag, size = 0x4, scoped, tag = 'scoped memory for gpt_forward.3']
    #allocation5 [shape = 'u8[131072]{0}', space=vmem, size = 0x20000, scoped, tag = 'input window, operand 1, single buffered']
    #allocation6 [shape = 's32[1]{0}', space=sflag, size = 0x4, scoped, tag = 'scoped memory for gpt_forward.3']
    #allocation7 [shape = 'u8[1024]{0}', space=vmem, size = 0x400, scoped, tag = 'input window, operand 2, single buffered']
    #allocation8 [shape = 'u8[16384]{0}', space=vmem, size = 0x4000, scoped, tag = 'output window, operand 0, single buffered']
    %8 = vsyncpa [#allocation3], 0
    %9 = vsyncpa [#allocation6], 0
    %10 = vsyncpa [#allocation4], 0
    // Predicated region
    $region2: #{gpt_forward.3} parent=1 // pred_check
      _
    $region3: #{gpt_forward.3} parent=1 // pred_check_branch
      %12 = sbr.rel (0) target = $region5
    $region4: #{gpt_forward.3} parent=1 // pred_region
      %s14 = ssub.s32 256, 256
      %15 = vsyncadd [#allocation3], %s14
      %s16 = sshll.u32 [#allocation2], 4
      %s17 = int_to_ptr.vmem [resolvable:$true] %s16
      %22 = dma.hbm_to_vmem [thread:$0]  %s0, 256, %s17, [#allocation3], 128, 128, 8
    $region5: #{gpt_forward.3} parent=1 // pred_fallthru
      _
    // Predicated region
    $region6: #{gpt_forward.3} parent=1 // pred_check
      _
    $region7: #{gpt_forward.3} parent=1 // pred_check_branch
      %24 = sbr.rel (0) target = $region9
    $region8: #{gpt_forward.3} parent=1 // pred_region
      %s26 = ssub.s32 4096, 4096
      %27 = vsyncadd [#allocation6], %s26
      %s28 = sshll.u32 [#allocation5], 4
      %s29 = int_to_ptr.vmem [resolvable:$true] %s28
      %34 = dma.hbm_to_vmem [thread:$0]  %s1, 4096, %s29, [#allocation6], 128, 128, 8
    $region9: #{gpt_forward.3} parent=1 // pred_fallthru
      _
    // Predicated region
    $region10: #{gpt_forward.3} parent=1 // pred_check
      _
    $region11: #{gpt_forward.3} parent=1 // pred_check_branch
      %36 = sbr.rel (0) target = $region13
    $region12: #{gpt_forward.3} parent=1 // pred_region
      %s38 = ssub.s32 32, 32
      %39 = vsyncadd [#allocation6], %s38
      %s41 = sshll.u32 [#allocation7], 4
      %s42 = int_to_ptr.vmem [resolvable:$true] %s41
      %44 = dma.hbm_to_vmem [thread:$0]  %s2, 32, %s42, [#allocation6]
    $region13: #{gpt_forward.3} parent=1 // pred_fallthru
      _
    // Predicated region
    $region14: #{gpt_forward.3} parent=1 // pred_check
      _
    $region15: #{gpt_forward.3} parent=1 // pred_check_branch
      %46 = sbr.rel (0) target = $region17
    $region16: #{gpt_forward.3} parent=1 // pred_region
      %47 = dma.done [#allocation3], 256
    $region17: #{gpt_forward.3} parent=1 // pred_fallthru
      _
    // Predicated region
    $region18: #{gpt_forward.3} parent=1 // pred_check
      _
    $region19: #{gpt_forward.3} parent=1 // pred_check_branch
      %49 = sbr.rel (0) target = $region21
    $region20: #{gpt_forward.3} parent=1 // pred_region
      %50 = dma.done [#allocation6], 4096
    $region21: #{gpt_forward.3} parent=1 // pred_fallthru
      _
    // Predicated region
    $region22: #{gpt_forward.3} parent=1 // pred_check
      _
    $region23: #{gpt_forward.3} parent=1 // pred_check_branch
      %52 = sbr.rel (0) target = $region25
    $region24: #{gpt_forward.3} parent=1 // pred_region
      %53 = dma.done [#allocation6], 32
    $region25: #{gpt_forward.3} parent=1 // pred_fallthru
      _
    %v54 = vld [vmem:[#allocation2] sm:$0xff]
    %v55 = vld [vmem:[#allocation2 + $0x8] sm:$0xff]
    %v56 = vld [vmem:[#allocation5] sm:$0xff]
    %v57 = vld [vmem:[#allocation5 + $0x8] sm:$0xff]
    %v58 = vld [vmem:[#allocation5 + $0x10] sm:$0xff]
    %v59 = vld [vmem:[#allocation5 + $0x18] sm:$0xff]
    %v60 = vld [vmem:[#allocation5 + $0x20] sm:$0xff]
    %v61 = vld [vmem:[#allocation5 + $0x28] sm:$0xff]
    %v62 = vld [vmem:[#allocation5 + $0x30] sm:$0xff]
    %v63 = vld [vmem:[#allocation5 + $0x38] sm:$0xff]
    %v64 = vld [vmem:[#allocation5 + $0x40] sm:$0xff]
    %v65 = vld [vmem:[#allocation5 + $0x48] sm:$0xff]
    %v66 = vld [vmem:[#allocation5 + $0x50] sm:$0xff]
    %v67 = vld [vmem:[#allocation5 + $0x58] sm:$0xff]
    %v68 = vld [vmem:[#allocation5 + $0x60] sm:$0xff]
    %v69 = vld [vmem:[#allocation5 + $0x68] sm:$0xff]
    %v70 = vld [vmem:[#allocation5 + $0x70] sm:$0xff]
    %v71 = vld [vmem:[#allocation5 + $0x78] sm:$0xff]
    %v72 = vld [vmem:[#allocation5 + $0x80] sm:$0xff]
    %v73 = vld [vmem:[#allocation5 + $0x88] sm:$0xff]
    %v74 = vld [vmem:[#allocation5 + $0x90] sm:$0xff]
    %v75 = vld [vmem:[#allocation5 + $0x98] sm:$0xff]
    %v76 = vld [vmem:[#allocation5 + $0xa0] sm:$0xff]
    %v77 = vld [vmem:[#allocation5 + $0xa8] sm:$0xff]
    %v78 = vld [vmem:[#allocation5 + $0xb0] sm:$0xff]
    %v79 = vld [vmem:[#allocation5 + $0xb8] sm:$0xff]
    %v80 = vld [vmem:[#allocation5 + $0xc0] sm:$0xff]
    %v81 = vld [vmem:[#allocation5 + $0xc8] sm:$0xff]
    %v82 = vld [vmem:[#allocation5 + $0xd0] sm:$0xff]
    %v83 = vld [vmem:[#allocation5 + $0xd8] sm:$0xff]
    %v84 = vld [vmem:[#allocation5 + $0xe0] sm:$0xff]
    %v85 = vld [vmem:[#allocation5 + $0xe8] sm:$0xff]
    %v86 = vld [vmem:[#allocation5 + $0xf0] sm:$0xff]
    %v87 = vld [vmem:[#allocation5 + $0xf8] sm:$0xff]
    %v88 = vld [vmem:[#allocation7] sm:$0x3]
    %v90 = vlaneseq
    %v91 = vshrl.u32 %v90, 7
    %v92 = vsub.s32 0, %v91
    %v93 = vrot.slane %v88, %v92
    %v94 = vlaneseq
    %v95 = vshrl.u32 %v94, 7
    %v96 = vsub.s32 1, %v95
    %v97 = vrot.slane %v88, %v96
    %v102 = vunpack.c.l.b16 %v54
    %v103 = vunpack.c.h.b16 %v54
    %v104 = vunpack.c.l.b16 %v55
    %v105 = vunpack.c.h.b16 %v55
    %v106 = vpack.c.b16 %v104, %v102
    %v107 = vpack.c.b16 %v105, %v103
    %v142 = vunpack.c.l.b16 %v56
    %v143 = vunpack.c.h.b16 %v56
    %v144 = vunpack.c.l.b16 %v57
    %v145 = vunpack.c.h.b16 %v57
    %v146 = vunpack.c.l.b16 %v58
    %v147 = vunpack.c.h.b16 %v58
    %v148 = vunpack.c.l.b16 %v59
    %v149 = vunpack.c.h.b16 %v59
    %v150 = vunpack.c.l.b16 %v60
    %v151 = vunpack.c.h.b16 %v60
    %v152 = vunpack.c.l.b16 %v61
    %v153 = vunpack.c.h.b16 %v61
    %v154 = vunpack.c.l.b16 %v62
    %v155 = vunpack.c.h.b16 %v62
    %v156 = vunpack.c.l.b16 %v63
    %v157 = vunpack.c.h.b16 %v63
    %v158 = vunpack.c.l.b16 %v64
    %v159 = vunpack.c.h.b16 %v64
    %v160 = vunpack.c.l.b16 %v65
    %v161 = vunpack.c.h.b16 %v65
    %v162 = vunpack.c.l.b16 %v66
    %v163 = vunpack.c.h.b16 %v66
    %v164 = vunpack.c.l.b16 %v67
    %v165 = vunpack.c.h.b16 %v67
    %v166 = vunpack.c.l.b16 %v68
    %v167 = vunpack.c.h.b16 %v68
    %v168 = vunpack.c.l.b16 %v69
    %v169 = vunpack.c.h.b16 %v69
    %v170 = vunpack.c.l.b16 %v70
    %v171 = vunpack.c.h.b16 %v70
    %v172 = vunpack.c.l.b16 %v71
    %v173 = vunpack.c.h.b16 %v71
    %v174 = vunpack.c.l.b16 %v72
    %v175 = vunpack.c.h.b16 %v72
    %v176 = vunpack.c.l.b16 %v73
    %v177 = vunpack.c.h.b16 %v73
    %v178 = vunpack.c.l.b16 %v74
    %v179 = vunpack.c.h.b16 %v74
    %v180 = vunpack.c.l.b16 %v75
    %v181 = vunpack.c.h.b16 %v75
    %v182 = vunpack.c.l.b16 %v76
    %v183 = vunpack.c.h.b16 %v76
    %v184 = vunpack.c.l.b16 %v77
    %v185 = vunpack.c.h.b16 %v77
    %v186 = vunpack.c.l.b16 %v78
    %v187 = vunpack.c.h.b16 %v78
    %v188 = vunpack.c.l.b16 %v79
    %v189 = vunpack.c.h.b16 %v79
    %v190 = vunpack.c.l.b16 %v80
    %v191 = vunpack.c.h.b16 %v80
    %v192 = vunpack.c.l.b16 %v81
    %v193 = vunpack.c.h.b16 %v81
    %v194 = vunpack.c.l.b16 %v82
    %v195 = vunpack.c.h.b16 %v82
    %v196 = vunpack.c.l.b16 %v83
    %v197 = vunpack.c.h.b16 %v83
    %v198 = vunpack.c.l.b16 %v84
    %v199 = vunpack.c.h.b16 %v84
    %v200 = vunpack.c.l.b16 %v85
    %v201 = vunpack.c.h.b16 %v85
    %v202 = vunpack.c.l.b16 %v86
    %v203 = vunpack.c.h.b16 %v86
    %v204 = vunpack.c.l.b16 %v87
    %v205 = vunpack.c.h.b16 %v87
    %v206 = vpack.c.b16 %v144, %v142
    %v207 = vpack.c.b16 %v145, %v143
    %v208 = vpack.c.b16 %v148, %v146
    %v209 = vpack.c.b16 %v149, %v147
    %v210 = vpack.c.b16 %v152, %v150
    %v211 = vpack.c.b16 %v153, %v151
    %v212 = vpack.c.b16 %v156, %v154
    %v213 = vpack.c.b16 %v157, %v155
    %v214 = vpack.c.b16 %v160, %v158
    %v215 = vpack.c.b16 %v161, %v159
    %v216 = vpack.c.b16 %v164, %v162
    %v217 = vpack.c.b16 %v165, %v163
    %v218 = vpack.c.b16 %v168, %v166
    %v219 = vpack.c.b16 %v169, %v167
    %v220 = vpack.c.b16 %v172, %v170
    %v221 = vpack.c.b16 %v173, %v171
    %v222 = vpack.c.b16 %v176, %v174
    %v223 = vpack.c.b16 %v177, %v175
    %v224 = vpack.c.b16 %v180, %v178
    %v225 = vpack.c.b16 %v181, %v179
    %v226 = vpack.c.b16 %v184, %v182
    %v227 = vpack.c.b16 %v185, %v183
    %v228 = vpack.c.b16 %v188, %v186
    %v229 = vpack.c.b16 %v189, %v187
    %v230 = vpack.c.b16 %v192, %v190
    %v231 = vpack.c.b16 %v193, %v191
    %v232 = vpack.c.b16 %v196, %v194
    %v233 = vpack.c.b16 %v197, %v195
    %v234 = vpack.c.b16 %v200, %v198
    %v235 = vpack.c.b16 %v201, %v199
    %v236 = vpack.c.b16 %v204, %v202
    %v237 = vpack.c.b16 %v205, %v203
    %270 = vmatprep.subr.bf16.mxu0 %v207
    %271 = vmatpush1.bf16.msra.mxu0 %v206
    %272 = vmatprep.subr.bf16.mxu0 %v209
    %273 = vmatpush1.bf16.msra.mxu0 %v208
    %274 = vmatprep.subr.bf16.mxu0 %v211
    %275 = vmatpush1.bf16.msra.mxu0 %v210
    %276 = vmatprep.subr.bf16.mxu0 %v213
    %277 = vmatpush1.bf16.msra.mxu0 %v212
    %278 = vmatprep.subr.bf16.mxu0 %v215
    %279 = vmatpush1.bf16.msra.mxu0 %v214
    %280 = vmatprep.subr.bf16.mxu0 %v217
    %281 = vmatpush1.bf16.msra.mxu0 %v216
    %282 = vmatprep.subr.bf16.mxu0 %v219
    %283 = vmatpush1.bf16.msra.mxu0 %v218
    %284 = vmatprep.subr.bf16.mxu0 %v221
    %285 = vmatpush1.bf16.msra.mxu0 %v220
    %286 = vmatprep.subr.bf16.mxu0 %v223
    %287 = vmatpush1.bf16.msra.mxu0 %v222
    %288 = vmatprep.subr.bf16.mxu0 %v225
    %289 = vmatpush1.bf16.msra.mxu0 %v224
    %290 = vmatprep.subr.bf16.mxu0 %v227
    %291 = vmatpush1.bf16.msra.mxu0 %v226
    %292 = vmatprep.subr.bf16.mxu0 %v229
    %293 = vmatpush1.bf16.msra.mxu0 %v228
    %294 = vmatprep.subr.bf16.mxu0 %v231
    %295 = vmatpush1.bf16.msra.mxu0 %v230
    %296 = vmatprep.subr.bf16.mxu0 %v233
    %297 = vmatpush1.bf16.msra.mxu0 %v232
    %298 = vmatprep.subr.bf16.mxu0 %v235
    %299 = vmatpush1.bf16.msra.mxu0 %v234
    %300 = vmatprep.subr.bf16.mxu0 %v237
    %301 = vmatpush1.bf16.msra.mxu0 %v236
    %302 = vmatprep.mubr.bf16.mxu0 %v107
    %303 = vmatmul.mubr.bf16.gmra.mrb[0].mxu0 %v106
    %v304 = vpop.f32.mrb[0].mxu0
    %v305 = vadd.f32 %v93, %v304
    %v306 = vpop.f32.mrb[0].mxu0
    %v307 = vadd.f32 %v97, %v306
    %v308 = vpop.f32.mrb[0].mxu0
    %v309 = vadd.f32 %v93, %v308
    %v310 = vpop.f32.mrb[0].mxu0
    %v311 = vadd.f32 %v97, %v310
    %312 = vdwg.mxu0
    %313 = vst [vmem:[#allocation8] sm:$0xff] %v305
    %314 = vst [vmem:[#allocation8 + $0x8] sm:$0xff] %v307
    %315 = vst [vmem:[#allocation8 + $0x10] sm:$0xff] %v309
    %316 = vst [vmem:[#allocation8 + $0x18] sm:$0xff] %v311
    // Predicated region
    $region26: #{gpt_forward.3} parent=1 // pred_check
      _
    $region27: #{gpt_forward.3} parent=1 // pred_check_branch
      %318 = sbr.rel (0) target = $region29
    $region28: #{gpt_forward.3} parent=1 // pred_region
      %s320 = ssub.s32 512, 512
      %321 = vsyncadd [#allocation4], %s320
      %s322 = sshll.u32 [#allocation8], 4
      %s323 = int_to_ptr.vmem [resolvable:$true] %s322
      %328 = dma.vmem_to_hbm [thread:$0]  %s323, 512, %s3, [#allocation4], 256, 256, 16
    $region29: #{gpt_forward.3} parent=1 // pred_fallthru
      _
    // Predicated region
    $region30: #{gpt_forward.3} parent=1 // pred_check
      _
    $region31: #{gpt_forward.3} parent=1 // pred_check_branch
      %330 = sbr.rel (0) target = $region33
    $region32: #{gpt_forward.3} parent=1 // pred_region
      %331 = dma.done [#allocation4], 512
    $region33: #{gpt_forward.3} parent=1 // pred_fallthru
      _
    %332 = vsyncpa [#allocation3], 1
    %333 = vsyncpa [#allocation6], 1
    %334 = vsyncpa [#allocation4], 1

// kernel: gpt_forward.2
$region0: #{gpt_forward.2}
  #allocation0 [shape = 'u32[]', space=smem, size = 0x4, offset = 0x4, fixed_abs, tag = 'smem constant byte address 0x4 - core index']
  #allocation1 [shape = 'u32[144,128]{1,0:T(1,128)}', space=vmem, size = 0x12000, scoped, tag = 'internal scratch']
  #allocation2 [shape = 'f32[1,8,256]{2,1,0:T(8,128)}', space=vmem, size = 0x2000, scoped, tag = 'scratch operand']
  #allocation3 [shape = 'bf16[2,8,128]{2,1,0:T(8,128)(2,1)}', space=vmem, size = 0x1000, scoped, tag = 'scratch operand']
  #allocation4 [shape = 'bf16[2,8,128]{2,1,0:T(8,128)(2,1)}', space=vmem, size = 0x1000, scoped, tag = 'scratch operand']
  %s0 = inlined_call_operand.hbm [shape: f32[2,8,256], index: 0, kind: input, shape index: {}]
  %s1 = inlined_call_operand.hbm [shape: f32[2,1,8], index: 1, kind: input, shape index: {}]
  %s2 = inlined_call_operand.hbm [shape: f32[2,8,1], index: 2, kind: input, shape index: {}]
  %s3 = inlined_call_operand.hbm [shape: bf16[2,256,256], index: 3, kind: input, shape index: {}]
  %s4 = inlined_call_operand.hbm [shape: f32[2,1,256], index: 4, kind: input, shape index: {}]
  %s5 = inlined_call_operand.hbm [shape: bf16[2,256,256], index: 5, kind: input, shape index: {}]
  %s6 = inlined_call_operand.hbm [shape: f32[2,1,256], index: 6, kind: input, shape index: {}]
  %s7 = inlined_call_operand.hbm [shape: bf16[2,256,256], index: 7, kind: input, shape index: {}]
  %s8 = inlined_call_operand.hbm [shape: f32[2,1,256], index: 8, kind: input, shape index: {}]
  %s9 = inlined_call_operand.hbm [shape: bf16[2,256,256], index: 9, kind: input, shape index: {}]
  %s10 = inlined_call_operand.hbm [shape: f32[2,1,256], index: 10, kind: input, shape index: {}]
  %s11 = inlined_call_operand.hbm [shape: f32[2,1,256], index: 11, kind: input, shape index: {}]
  %s12 = inlined_call_operand.hbm [shape: f32[2,1,256], index: 12, kind: input, shape index: {}]
  %s13 = inlined_call_operand.hbm [shape: bf16[2,256,512], index: 13, kind: input, shape index: {}]
  %s14 = inlined_call_operand.hbm [shape: f32[2,1,512], index: 14, kind: input, shape index: {}]
  %s15 = inlined_call_operand.hbm [shape: bf16[2,512,256], index: 15, kind: input, shape index: {}]
  %s16 = inlined_call_operand.hbm [shape: f32[2,1,256], index: 16, kind: input, shape index: {}]
  %s17 = inlined_call_operand.hbm [shape: f32[2,1,256], index: 17, kind: input, shape index: {}]
  %s18 = inlined_call_operand.hbm [shape: f32[2,1,256], index: 18, kind: input, shape index: {}]
  %s19 = inlined_call_operand.hbm [shape: f32[2,8,256], index: 19, kind: output, shape index: {}]
  %s20 = sld [smem:[#allocation0]]
  $region193: #{gpt_forward.2} parent=0
    _
  %s22 = ssub.s32 1, %s20
  %s23 = scalar_select 0, %s22, %s20
  $region1: #{gpt_forward.2} parent=0
    #allocation5 [shape = 'u8[16384]{0}', space=vmem, size = 0x4000, scoped, tag = 'input window, operand 0']
    #allocation6 [shape = 's32[2]{0}', space=sflag, size = 0x8, scoped, tag = 'scoped memory for gpt_forward.2']
    #allocation7 [shape = 's32[2]{0}', space=sflag, size = 0x8, scoped, tag = 'scoped memory for gpt_forward.2']
    #allocation8 [shape = 'u8[1024]{0}', space=vmem, size = 0x400, scoped, tag = 'input window, operand 1']
    #allocation9 [shape = 's32[2]{0}', space=sflag, size = 0x8, scoped, tag = 'scoped memory for gpt_forward.2']
    #allocation10 [shape = 'u8[8192]{0}', space=vmem, size = 0x2000, scoped, tag = 'input window, operand 2']
    #allocation11 [shape = 'u8[262144]{0}', space=vmem, size = 0x40000, scoped, tag = 'input window, operand 3']
    #allocation12 [shape = 's32[2]{0}', space=sflag, size = 0x8, scoped, tag = 'scoped memory for gpt_forward.2']
    #allocation13 [shape = 'u8[2048]{0}', space=vmem, size = 0x800, scoped, tag = 'input window, operand 4']
    #allocation14 [shape = 'u8[262144]{0}', space=vmem, size = 0x40000, scoped, tag = 'input window, operand 5']
    #allocation15 [shape = 's32[2]{0}', space=sflag, size = 0x8, scoped, tag = 'scoped memory for gpt_forward.2']
    #allocation16 [shape = 'u8[2048]{0}', space=vmem, size = 0x800, scoped, tag = 'input window, operand 6']
    #allocation17 [shape = 'u8[262144]{0}', space=vmem, size = 0x40000, scoped, tag = 'input window, operand 7']
    #allocation18 [shape = 's32[2]{0}', space=sflag, size = 0x8, scoped, tag = 'scoped memory for gpt_forward.2']
    #allocation19 [shape = 'u8[2048]{0}', space=vmem, size = 0x800, scoped, tag = 'input window, operand 8']
    #allocation20 [shape = 'u8[262144]{0}', space=vmem, size = 0x40000, scoped, tag = 'input window, operand 9']
    #allocation21 [shape = 's32[2]{0}', space=sflag, size = 0x8, scoped, tag = 'scoped memory for gpt_forward.2']
    #allocation22 [shape = 'u8[2048]{0}', space=vmem, size = 0x800, scoped, tag = 'input window, operand 10']
    #allocation23 [shape = 'u8[2048]{0}', space=vmem, size = 0x800, scoped, tag = 'input window, operand 11']
    #allocation24 [shape = 's32[2]{0}', space=sflag, size = 0x8, scoped, tag = 'scoped memory for gpt_forward.2']
    #allocation25 [shape = 'u8[2048]{0}', space=vmem, size = 0x800, scoped, tag = 'input window, operand 12']
    #allocation26 [shape = 'u8[524288]{0}', space=vmem, size = 0x80000, scoped, tag = 'input window, operand 13']
    #allocation27 [shape = 's32[2]{0}', space=sflag, size = 0x8, scoped, tag = 'scoped memory for gpt_forward.2']
    #allocation28 [shape = 'u8[4096]{0}', space=vmem, size = 0x1000, scoped, tag = 'input window, operand 14']
    #allocation29 [shape = 'u8[524288]{0}', space=vmem, size = 0x80000, scoped, tag = 'input window, operand 15']
    #allocation30 [shape = 's32[2]{0}', space=sflag, size = 0x8, scoped, tag = 'scoped memory for gpt_forward.2']
    #allocation31 [shape = 'u8[2048]{0}', space=vmem, size = 0x800, scoped, tag = 'input window, operand 16']
    #allocation32 [shape = 'u8[2048]{0}', space=vmem, size = 0x800, scoped, tag = 'input window, operand 17']
    #allocation33 [shape = 's32[2]{0}', space=sflag, size = 0x8, scoped, tag = 'scoped memory for gpt_forward.2']
    #allocation34 [shape = 'u8[2048]{0}', space=vmem, size = 0x800, scoped, tag = 'input window, operand 18']
    #allocation35 [shape = 'u8[16384]{0}', space=vmem, size = 0x4000, scoped, tag = 'output window, operand 0']
    %24 = vsyncpa [#allocation6], 0
    %s25 = scalar_lea.sflag [#allocation6], 1
    %26 = vsyncpa %s25, 0
    %27 = vsyncpa [#allocation9], 0
    %s28 = scalar_lea.sflag [#allocation9], 1
    %29 = vsyncpa %s28, 0
    %30 = vsyncpa [#allocation12], 0
    %s31 = scalar_lea.sflag [#allocation12], 1
    %32 = vsyncpa %s31, 0
    %33 = vsyncpa [#allocation15], 0
    %s34 = scalar_lea.sflag [#allocation15], 1
    %35 = vsyncpa %s34, 0
    %36 = vsyncpa [#allocation18], 0
    %s37 = scalar_lea.sflag [#allocation18], 1
    %38 = vsyncpa %s37, 0
    %39 = vsyncpa [#allocation21], 0
    %s40 = scalar_lea.sflag [#allocation21], 1
    %41 = vsyncpa %s40, 0
    %42 = vsyncpa [#allocation24], 0
    %s43 = scalar_lea.sflag [#allocation24], 1
    %44 = vsyncpa %s43, 0
    %45 = vsyncpa [#allocation27], 0
    %s46 = scalar_lea.sflag [#allocation27], 1
    %47 = vsyncpa %s46, 0
    %48 = vsyncpa [#allocation30], 0
    %s49 = scalar_lea.sflag [#allocation30], 1
    %50 = vsyncpa %s49, 0
    %51 = vsyncpa [#allocation33], 0
    %s52 = scalar_lea.sflag [#allocation33], 1
    %53 = vsyncpa %s52, 0
    %54 = vsyncpa [#allocation7], 0
    %s55 = scalar_lea.sflag [#allocation7], 1
    %56 = vsyncpa %s55, 0
    loop: start=0, step=1, limit=6
    $region2: #{gpt_forward.2} parent=1 // loop_pre_header
      _
    $region3: #{gpt_forward.2} parent=1 // loop_header
      %s58 = sphi 0, %s62
      %p59 = scmp.ge.s32.totalorder %s58, 6
      %s65 = sphi 0, %s77
      %s66 = sphi 0, %s73
      %s67 = sphi 0, %s65
      %s68 = sphi 0, %s66
      %s69 = sphi 0, %s67
      %s70 = sphi 0, %s68
      %s80 = sphi 0, %s82
      %s83 = sphi 0, %s80
      %s84 = sphi 0, %s83
      %s100 = sphi 0, %s84
      %s106 = sphi 0, %s108
      %s109 = sphi 0, %s106
      %s110 = sphi 0, %s109
      %s126 = sphi 0, %s110
      %s132 = sphi 0, %s134
      %s135 = sphi 0, %s132
      %s136 = sphi 0, %s135
      %s152 = sphi 0, %s136
      %s158 = sphi 0, %s160
      %s161 = sphi 0, %s158
      %s162 = sphi 0, %s161
      %s178 = sphi 0, %s162
      %s184 = sphi 0, %s186
      %s187 = sphi 0, %s184
      %s188 = sphi 0, %s187
      %s204 = sphi 0, %s188
      %s210 = sphi 0, %s212
      %s213 = sphi 0, %s210
      %s214 = sphi 0, %s213
      %s230 = sphi 0, %s214
      %s236 = sphi 0, %s238
      %s239 = sphi 0, %s236
      %s240 = sphi 0, %s239
      %s256 = sphi 0, %s240
      %s262 = sphi 0, %s264
      %s265 = sphi 0, %s262
      %s266 = sphi 0, %s265
      %s282 = sphi 0, %s266
      %s288 = sphi 0, %s290
      %s291 = sphi 0, %s288
      %s292 = sphi 0, %s291
      %s308 = sphi 0, %s292
      %s314 = sphi 0, %s316
      %s317 = sphi 0, %s314
      %s318 = sphi 0, %s317
      %s334 = sphi 0, %s318
      %s340 = sphi 0, %s342
      %s343 = sphi 0, %s340
      %s344 = sphi 0, %s343
      %s360 = sphi 0, %s344
      %s366 = sphi 0, %s368
      %s369 = sphi 0, %s366
      %s370 = sphi 0, %s369
      %s386 = sphi 0, %s370
      %s392 = sphi 0, %s394
      %s395 = sphi 0, %s392
      %s396 = sphi 0, %s395
      %s412 = sphi 0, %s396
      %s418 = sphi 0, %s420
      %s421 = sphi 0, %s418
      %s422 = sphi 0, %s421
      %s438 = sphi 0, %s422
      %s444 = sphi 0, %s446
      %s447 = sphi 0, %s444
      %s448 = sphi 0, %s447
      %s464 = sphi 0, %s448
      %s470 = sphi 0, %s472
      %s473 = sphi 0, %s470
      %s474 = sphi 0, %s473
      %s490 = sphi 0, %s474
      %s496 = sphi 0, %s498
      %s499 = sphi 0, %s496
      %s500 = sphi 0, %s499
      %s516 = sphi 0, %s500
      %s522 = sphi 0, %s524
      %s525 = sphi 0, %s522
      %s526 = sphi 0, %s525
      %s542 = sphi 0, %s526
      %s548 = sphi 0, %s550
      %s551 = sphi 0, %s548
      %s552 = sphi 0, %s551
      %s568 = sphi 0, %s552
      %s574 = sphi 0, %s576
      %s577 = sphi 0, %s574
      %s578 = sphi 0, %s577
      %s594 = sphi 0, %s578
    $region4: #{gpt_forward.2} parent=1 // loop_header_branch
      %61 = sbr.rel (%p59) target = $region8
    $region5: #{gpt_forward.2} parent=1 // loop_body
      %s63 = ssub.s32 %s58, 1
      %s64 = ssub.s32 %s58, 2
      %s71 = sadd.s32 1, %s66
      %p72 = scmp.ge.s32.totalorder %s71, 2
      %s73 = scalar_select %p72, 0, %s71
      %s74 = sadd.s32 1, %s65
      %s75 = scalar_select %p72, %s74, %s65
      %p76 = scmp.ge.s32.totalorder %s75, 2
      %s77 = scalar_select %p76, 0, %s75
      %s78 = ssub.s32 %s65, %s77
      %p79 = scmp.eq.s32.totalorder %s78, 0
      %s81 = sadd.s32 %s80, 1
      %s82 = scalar_select %p79, %s80, %s81
      %p85 = pneg %p79
      %p86 = scmp.eq.s32.totalorder %s58, 3
      %p87 = por %p85, %p86
      %p88 = scmp.ne.s32.totalorder %s80, %s83
      %p89 = scmp.eq.s32.totalorder %s58, 0
      %p90 = por %p88, %p89
      %p91 = scmp.ne.s32.totalorder %s80, %s83
      %p92 = scmp.eq.s32.totalorder %s63, 3
      %p93 = por %p91, %p92
      %p94 = scmp.ne.s32.totalorder %s83, %s84
      %p95 = scmp.eq.s32.totalorder %s63, 0
      %p96 = por %p94, %p95
      %p97 = scmp.ne.s32.totalorder %s83, %s84
      %p98 = scmp.eq.s32.totalorder %s64, 3
      %p99 = por %p97, %p98
      %p101 = scmp.ne.s32.totalorder %s84, %s100
      %p102 = scmp.eq.s32.totalorder %s64, 0
      %p103 = por %p101, %p102
      %s104 = ssub.s32 %s65, %s77
      %p105 = scmp.eq.s32.totalorder %s104, 0
      %s107 = sadd.s32 %s106, 1
      %s108 = scalar_select %p105, %s106, %s107
      %p111 = pneg %p105
      %p112 = scmp.eq.s32.totalorder %s58, 3
      %p113 = por %p111, %p112
      %p114 = scmp.ne.s32.totalorder %s106, %s109
      %p115 = scmp.eq.s32.totalorder %s58, 0
      %p116 = por %p114, %p115
      %p117 = scmp.ne.s32.totalorder %s106, %s109
      %p118 = scmp.eq.s32.totalorder %s63, 3
      %p119 = por %p117, %p118
      %p120 = scmp.ne.s32.totalorder %s109, %s110
      %p121 = scmp.eq.s32.totalorder %s63, 0
      %p122 = por %p120, %p121
      %p123 = scmp.ne.s32.totalorder %s109, %s110
      %p124 = scmp.eq.s32.totalorder %s64, 3
      %p125 = por %p123, %p124
      %p127 = scmp.ne.s32.totalorder %s110, %s126
      %p128 = scmp.eq.s32.totalorder %s64, 0
      %p129 = por %p127, %p128
      %s130 = ssub.s32 %s65, %s77
      %p131 = scmp.eq.s32.totalorder %s130, 0
      %s133 = sadd.s32 %s132, 1
      %s134 = scalar_select %p131, %s132, %s133
      %p137 = pneg %p131
      %p138 = scmp.eq.s32.totalorder %s58, 3
      %p139 = por %p137, %p138
      %p140 = scmp.ne.s32.totalorder %s132, %s135
      %p141 = scmp.eq.s32.totalorder %s58, 0
      %p142 = por %p140, %p141
      %p143 = scmp.ne.s32.totalorder %s132, %s135
      %p144 = scmp.eq.s32.totalorder %s63, 3
      %p145 = por %p143, %p144
      %p146 = scmp.ne.s32.totalorder %s135, %s136
      %p147 = scmp.eq.s32.totalorder %s63, 0
      %p148 = por %p146, %p147
      %p149 = scmp.ne.s32.totalorder %s135, %s136
      %p150 = scmp.eq.s32.totalorder %s64, 3
      %p151 = por %p149, %p150
      %p153 = scmp.ne.s32.totalorder %s136, %s152
      %p154 = scmp.eq.s32.totalorder %s64, 0
      %p155 = por %p153, %p154
      %s156 = ssub.s32 %s66, %s73
      %p157 = scmp.eq.s32.totalorder %s156, 0
      %s159 = sadd.s32 %s158, 1
      %s160 = scalar_select %p157, %s158, %s159
      %p163 = pneg %p157
      %p164 = scmp.eq.s32.totalorder %s58, 3
      %p165 = por %p163, %p164
      %p166 = scmp.ne.s32.totalorder %s158, %s161
      %p167 = scmp.eq.s32.totalorder %s58, 0
      %p168 = por %p166, %p167
      %p169 = scmp.ne.s32.totalorder %s158, %s161
      %p170 = scmp.eq.s32.totalorder %s63, 3
      %p171 = por %p169, %p170
      %p172 = scmp.ne.s32.totalorder %s161, %s162
      %p173 = scmp.eq.s32.totalorder %s63, 0
      %p174 = por %p172, %p173
      %p175 = scmp.ne.s32.totalorder %s161, %s162
      %p176 = scmp.eq.s32.totalorder %s64, 3
      %p177 = por %p175, %p176
      %p179 = scmp.ne.s32.totalorder %s162, %s178
      %p180 = scmp.eq.s32.totalorder %s64, 0
      %p181 = por %p179, %p180
      %s182 = ssub.s32 %s66, %s73
      %p183 = scmp.eq.s32.totalorder %s182, 0
      %s185 = sadd.s32 %s184, 1
      %s186 = scalar_select %p183, %s184, %s185
      %p189 = pneg %p183
      %p190 = scmp.eq.s32.totalorder %s58, 3
      %p191 = por %p189, %p190
      %p192 = scmp.ne.s32.totalorder %s184, %s187
      %p193 = scmp.eq.s32.totalorder %s58, 0
      %p194 = por %p192, %p193
      %p195 = scmp.ne.s32.totalorder %s184, %s187
      %p196 = scmp.eq.s32.totalorder %s63, 3
      %p197 = por %p195, %p196
      %p198 = scmp.ne.s32.totalorder %s187, %s188
      %p199 = scmp.eq.s32.totalorder %s63, 0
      %p200 = por %p198, %p199
      %p201 = scmp.ne.s32.totalorder %s187, %s188
      %p202 = scmp.eq.s32.totalorder %s64, 3
      %p203 = por %p201, %p202
      %p205 = scmp.ne.s32.totalorder %s188, %s204
      %p206 = scmp.eq.s32.totalorder %s64, 0
      %p207 = por %p205, %p206
      %s208 = ssub.s32 %s66, %s73
      %p209 = scmp.eq.s32.totalorder %s208, 0
      %s211 = sadd.s32 %s210, 1
      %s212 = scalar_select %p209, %s210, %s211
      %p215 = pneg %p209
      %p216 = scmp.eq.s32.totalorder %s58, 3
      %p217 = por %p215, %p216
      %p218 = scmp.ne.s32.totalorder %s210, %s213
      %p219 = scmp.eq.s32.totalorder %s58, 0
      %p220 = por %p218, %p219
      %p221 = scmp.ne.s32.totalorder %s210, %s213
      %p222 = scmp.eq.s32.totalorder %s63, 3
      %p223 = por %p221, %p222
      %p224 = scmp.ne.s32.totalorder %s213, %s214
      %p225 = scmp.eq.s32.totalorder %s63, 0
      %p226 = por %p224, %p225
      %p227 = scmp.ne.s32.totalorder %s213, %s214
      %p228 = scmp.eq.s32.totalorder %s64, 3
      %p229 = por %p227, %p228
      %p231 = scmp.ne.s32.totalorder %s214, %s230
      %p232 = scmp.eq.s32.totalorder %s64, 0
      %p233 = por %p231, %p232
      %s234 = ssub.s32 %s66, %s73
      %p235 = scmp.eq.s32.totalorder %s234, 0
      %s237 = sadd.s32 %s236, 1
      %s238 = scalar_select %p235, %s236, %s237
      %p241 = pneg %p235
      %p242 = scmp.eq.s32.totalorder %s58, 3
      %p243 = por %p241, %p242
      %p244 = scmp.ne.s32.totalorder %s236, %s239
      %p245 = scmp.eq.s32.totalorder %s58, 0
      %p246 = por %p244, %p245
      %p247 = scmp.ne.s32.totalorder %s236, %s239
      %p248 = scmp.eq.s32.totalorder %s63, 3
      %p249 = por %p247, %p248
      %p250 = scmp.ne.s32.totalorder %s239, %s240
      %p251 = scmp.eq.s32.totalorder %s63, 0
      %p252 = por %p250, %p251
      %p253 = scmp.ne.s32.totalorder %s239, %s240
      %p254 = scmp.eq.s32.totalorder %s64, 3
      %p255 = por %p253, %p254
      %p257 = scmp.ne.s32.totalorder %s240, %s256
      %p258 = scmp.eq.s32.totalorder %s64, 0
      %p259 = por %p257, %p258
      %s260 = ssub.s32 %s66, %s73
      %p261 = scmp.eq.s32.totalorder %s260, 0
      %s263 = sadd.s32 %s262, 1
      %s264 = scalar_select %p261, %s262, %s263
      %p267 = pneg %p261
      %p268 = scmp.eq.s32.totalorder %s58, 3
      %p269 = por %p267, %p268
      %p270 = scmp.ne.s32.totalorder %s262, %s265
      %p271 = scmp.eq.s32.totalorder %s58, 0
      %p272 = por %p270, %p271
      %p273 = scmp.ne.s32.totalorder %s262, %s265
      %p274 = scmp.eq.s32.totalorder %s63, 3
      %p275 = por %p273, %p274
      %p276 = scmp.ne.s32.totalorder %s265, %s266
      %p277 = scmp.eq.s32.totalorder %s63, 0
      %p278 = por %p276, %p277
      %p279 = scmp.ne.s32.totalorder %s265, %s266
      %p280 = scmp.eq.s32.totalorder %s64, 3
      %p281 = por %p279, %p280
      %p283 = scmp.ne.s32.totalorder %s266, %s282
      %p284 = scmp.eq.s32.totalorder %s64, 0
      %p285 = por %p283, %p284
      %s286 = ssub.s32 %s66, %s73
      %p287 = scmp.eq.s32.totalorder %s286, 0
      %s289 = sadd.s32 %s288, 1
      %s290 = scalar_select %p287, %s288, %s289
      %p293 = pneg %p287
      %p294 = scmp.eq.s32.totalorder %s58, 3
      %p295 = por %p293, %p294
      %p296 = scmp.ne.s32.totalorder %s288, %s291
      %p297 = scmp.eq.s32.totalorder %s58, 0
      %p298 = por %p296, %p297
      %p299 = scmp.ne.s32.totalorder %s288, %s291
      %p300 = scmp.eq.s32.totalorder %s63, 3
      %p301 = por %p299, %p300
      %p302 = scmp.ne.s32.totalorder %s291, %s292
      %p303 = scmp.eq.s32.totalorder %s63, 0
      %p304 = por %p302, %p303
      %p305 = scmp.ne.s32.totalorder %s291, %s292
      %p306 = scmp.eq.s32.totalorder %s64, 3
      %p307 = por %p305, %p306
      %p309 = scmp.ne.s32.totalorder %s292, %s308
      %p310 = scmp.eq.s32.totalorder %s64, 0
      %p311 = por %p309, %p310
      %s312 = ssub.s32 %s66, %s73
      %p313 = scmp.eq.s32.totalorder %s312, 0
      %s315 = sadd.s32 %s314, 1
      %s316 = scalar_select %p313, %s314, %s315
      %p319 = pneg %p313
      %p320 = scmp.eq.s32.totalorder %s58, 3
      %p321 = por %p319, %p320
      %p322 = scmp.ne.s32.totalorder %s314, %s317
      %p323 = scmp.eq.s32.totalorder %s58, 0
      %p324 = por %p322, %p323
      %p325 = scmp.ne.s32.totalorder %s314, %s317
      %p326 = scmp.eq.s32.totalorder %s63, 3
      %p327 = por %p325, %p326
      %p328 = scmp.ne.s32.totalorder %s317, %s318
      %p329 = scmp.eq.s32.totalorder %s63, 0
      %p330 = por %p328, %p329
      %p331 = scmp.ne.s32.totalorder %s317, %s318
      %p332 = scmp.eq.s32.totalorder %s64, 3
      %p333 = por %p331, %p332
      %p335 = scmp.ne.s32.totalorder %s318, %s334
      %p336 = scmp.eq.s32.totalorder %s64, 0
      %p337 = por %p335, %p336
      %s338 = ssub.s32 %s66, %s73
      %p339 = scmp.eq.s32.totalorder %s338, 0
      %s341 = sadd.s32 %s340, 1
      %s342 = scalar_select %p339, %s340, %s341
      %p345 = pneg %p339
      %p346 = scmp.eq.s32.totalorder %s58, 3
      %p347 = por %p345, %p346
      %p348 = scmp.ne.s32.totalorder %s340, %s343
      %p349 = scmp.eq.s32.totalorder %s58, 0
      %p350 = por %p348, %p349
      %p351 = scmp.ne.s32.totalorder %s340, %s343
      %p352 = scmp.eq.s32.totalorder %s63, 3
      %p353 = por %p351, %p352
      %p354 = scmp.ne.s32.totalorder %s343, %s344
      %p355 = scmp.eq.s32.totalorder %s63, 0
      %p356 = por %p354, %p355
      %p357 = scmp.ne.s32.totalorder %s343, %s344
      %p358 = scmp.eq.s32.totalorder %s64, 3
      %p359 = por %p357, %p358
      %p361 = scmp.ne.s32.totalorder %s344, %s360
      %p362 = scmp.eq.s32.totalorder %s64, 0
      %p363 = por %p361, %p362
      %s364 = ssub.s32 %s66, %s73
      %p365 = scmp.eq.s32.totalorder %s364, 0
      %s367 = sadd.s32 %s366, 1
      %s368 = scalar_select %p365, %s366, %s367
      %p371 = pneg %p365
      %p372 = scmp.eq.s32.totalorder %s58, 3
      %p373 = por %p371, %p372
      %p374 = scmp.ne.s32.totalorder %s366, %s369
      %p375 = scmp.eq.s32.totalorder %s58, 0
      %p376 = por %p374, %p375
      %p377 = scmp.ne.s32.totalorder %s366, %s369
      %p378 = scmp.eq.s32.totalorder %s63, 3
      %p379 = por %p377, %p378
      %p380 = scmp.ne.s32.totalorder %s369, %s370
      %p381 = scmp.eq.s32.totalorder %s63, 0
      %p382 = por %p380, %p381
      %p383 = scmp.ne.s32.totalorder %s369, %s370
      %p384 = scmp.eq.s32.totalorder %s64, 3
      %p385 = por %p383, %p384
      %p387 = scmp.ne.s32.totalorder %s370, %s386
      %p388 = scmp.eq.s32.totalorder %s64, 0
      %p389 = por %p387, %p388
      %s390 = ssub.s32 %s66, %s73
      %p391 = scmp.eq.s32.totalorder %s390, 0
      %s393 = sadd.s32 %s392, 1
      %s394 = scalar_select %p391, %s392, %s393
      %p397 = pneg %p391
      %p398 = scmp.eq.s32.totalorder %s58, 3
      %p399 = por %p397, %p398
      %p400 = scmp.ne.s32.totalorder %s392, %s395
      %p401 = scmp.eq.s32.totalorder %s58, 0
      %p402 = por %p400, %p401
      %p403 = scmp.ne.s32.totalorder %s392, %s395
      %p404 = scmp.eq.s32.totalorder %s63, 3
      %p405 = por %p403, %p404
      %p406 = scmp.ne.s32.totalorder %s395, %s396
      %p407 = scmp.eq.s32.totalorder %s63, 0
      %p408 = por %p406, %p407
      %p409 = scmp.ne.s32.totalorder %s395, %s396
      %p410 = scmp.eq.s32.totalorder %s64, 3
      %p411 = por %p409, %p410
      %p413 = scmp.ne.s32.totalorder %s396, %s412
      %p414 = scmp.eq.s32.totalorder %s64, 0
      %p415 = por %p413, %p414
      %s416 = ssub.s32 %s66, %s73
      %p417 = scmp.eq.s32.totalorder %s416, 0
      %s419 = sadd.s32 %s418, 1
      %s420 = scalar_select %p417, %s418, %s419
      %p423 = pneg %p417
      %p424 = scmp.eq.s32.totalorder %s58, 3
      %p425 = por %p423, %p424
      %p426 = scmp.ne.s32.totalorder %s418, %s421
      %p427 = scmp.eq.s32.totalorder %s58, 0
      %p428 = por %p426, %p427
      %p429 = scmp.ne.s32.totalorder %s418, %s421
      %p430 = scmp.eq.s32.totalorder %s63, 3
      %p431 = por %p429, %p430
      %p432 = scmp.ne.s32.totalorder %s421, %s422
      %p433 = scmp.eq.s32.totalorder %s63, 0
      %p434 = por %p432, %p433
      %p435 = scmp.ne.s32.totalorder %s421, %s422
      %p436 = scmp.eq.s32.totalorder %s64, 3
      %p437 = por %p435, %p436
      %p439 = scmp.ne.s32.totalorder %s422, %s438
      %p440 = scmp.eq.s32.totalorder %s64, 0
      %p441 = por %p439, %p440
      %s442 = ssub.s32 %s66, %s73
      %p443 = scmp.eq.s32.totalorder %s442, 0
      %s445 = sadd.s32 %s444, 1
      %s446 = scalar_select %p443, %s444, %s445
      %p449 = pneg %p443
      %p450 = scmp.eq.s32.totalorder %s58, 3
      %p451 = por %p449, %p450
      %p452 = scmp.ne.s32.totalorder %s444, %s447
      %p453 = scmp.eq.s32.totalorder %s58, 0
      %p454 = por %p452, %p453
      %p455 = scmp.ne.s32.totalorder %s444, %s447
      %p456 = scmp.eq.s32.totalorder %s63, 3
      %p457 = por %p455, %p456
      %p458 = scmp.ne.s32.totalorder %s447, %s448
      %p459 = scmp.eq.s32.totalorder %s63, 0
      %p460 = por %p458, %p459
      %p461 = scmp.ne.s32.totalorder %s447, %s448
      %p462 = scmp.eq.s32.totalorder %s64, 3
      %p463 = por %p461, %p462
      %p465 = scmp.ne.s32.totalorder %s448, %s464
      %p466 = scmp.eq.s32.totalorder %s64, 0
      %p467 = por %p465, %p466
      %s468 = ssub.s32 %s66, %s73
      %p469 = scmp.eq.s32.totalorder %s468, 0
      %s471 = sadd.s32 %s470, 1
      %s472 = scalar_select %p469, %s470, %s471
      %p475 = pneg %p469
      %p476 = scmp.eq.s32.totalorder %s58, 3
      %p477 = por %p475, %p476
      %p478 = scmp.ne.s32.totalorder %s470, %s473
      %p479 = scmp.eq.s32.totalorder %s58, 0
      %p480 = por %p478, %p479
      %p481 = scmp.ne.s32.totalorder %s470, %s473
      %p482 = scmp.eq.s32.totalorder %s63, 3
      %p483 = por %p481, %p482
      %p484 = scmp.ne.s32.totalorder %s473, %s474
      %p485 = scmp.eq.s32.totalorder %s63, 0
      %p486 = por %p484, %p485
      %p487 = scmp.ne.s32.totalorder %s473, %s474
      %p488 = scmp.eq.s32.totalorder %s64, 3
      %p489 = por %p487, %p488
      %p491 = scmp.ne.s32.totalorder %s474, %s490
      %p492 = scmp.eq.s32.totalorder %s64, 0
      %p493 = por %p491, %p492
      %s494 = ssub.s32 %s66, %s73
      %p495 = scmp.eq.s32.totalorder %s494, 0
      %s497 = sadd.s32 %s496, 1
      %s498 = scalar_select %p495, %s496, %s497
      %p501 = pneg %p495
      %p502 = scmp.eq.s32.totalorder %s58, 3
      %p503 = por %p501, %p502
      %p504 = scmp.ne.s32.totalorder %s496, %s499
      %p505 = scmp.eq.s32.totalorder %s58, 0
      %p506 = por %p504, %p505
      %p507 = scmp.ne.s32.totalorder %s496, %s499
      %p508 = scmp.eq.s32.totalorder %s63, 3
      %p509 = por %p507, %p508
      %p510 = scmp.ne.s32.totalorder %s499, %s500
      %p511 = scmp.eq.s32.totalorder %s63, 0
      %p512 = por %p510, %p511
      %p513 = scmp.ne.s32.totalorder %s499, %s500
      %p514 = scmp.eq.s32.totalorder %s64, 3
      %p515 = por %p513, %p514
      %p517 = scmp.ne.s32.totalorder %s500, %s516
      %p518 = scmp.eq.s32.totalorder %s64, 0
      %p519 = por %p517, %p518
      %s520 = ssub.s32 %s66, %s73
      %p521 = scmp.eq.s32.totalorder %s520, 0
      %s523 = sadd.s32 %s522, 1
      %s524 = scalar_select %p521, %s522, %s523
      %p527 = pneg %p521
      %p528 = scmp.eq.s32.totalorder %s58, 3
      %p529 = por %p527, %p528
      %p530 = scmp.ne.s32.totalorder %s522, %s525
      %p531 = scmp.eq.s32.totalorder %s58, 0
      %p532 = por %p530, %p531
      %p533 = scmp.ne.s32.totalorder %s522, %s525
      %p534 = scmp.eq.s32.totalorder %s63, 3
      %p535 = por %p533, %p534
      %p536 = scmp.ne.s32.totalorder %s525, %s526
      %p537 = scmp.eq.s32.totalorder %s63, 0
      %p538 = por %p536, %p537
      %p539 = scmp.ne.s32.totalorder %s525, %s526
      %p540 = scmp.eq.s32.totalorder %s64, 3
      %p541 = por %p539, %p540
      %p543 = scmp.ne.s32.totalorder %s526, %s542
      %p544 = scmp.eq.s32.totalorder %s64, 0
      %p545 = por %p543, %p544
      %s546 = ssub.s32 %s66, %s73
      %p547 = scmp.eq.s32.totalorder %s546, 0
      %s549 = sadd.s32 %s548, 1
      %s550 = scalar_select %p547, %s548, %s549
      %p553 = pneg %p547
      %p554 = scmp.eq.s32.totalorder %s58, 3
      %p555 = por %p553, %p554
      %p556 = scmp.ne.s32.totalorder %s548, %s551
      %p557 = scmp.eq.s32.totalorder %s58, 0
      %p558 = por %p556, %p557
      %p559 = scmp.ne.s32.totalorder %s548, %s551
      %p560 = scmp.eq.s32.totalorder %s63, 3
      %p561 = por %p559, %p560
      %p562 = scmp.ne.s32.totalorder %s551, %s552
      %p563 = scmp.eq.s32.totalorder %s63, 0
      %p564 = por %p562, %p563
      %p565 = scmp.ne.s32.totalorder %s551, %s552
      %p566 = scmp.eq.s32.totalorder %s64, 3
      %p567 = por %p565, %p566
      %p569 = scmp.ne.s32.totalorder %s552, %s568
      %p570 = scmp.eq.s32.totalorder %s64, 0
      %p571 = por %p569, %p570
      %s572 = ssub.s32 %s65, %s77
      %p573 = scmp.eq.s32.totalorder %s572, 0
      %s575 = sadd.s32 %s574, 1
      %s576 = scalar_select %p573, %s574, %s575
      %p579 = pneg %p573
      %p580 = scmp.eq.s32.totalorder %s58, 3
      %p581 = por %p579, %p580
      %p582 = scmp.ne.s32.totalorder %s574, %s577
      %p583 = scmp.eq.s32.totalorder %s58, 0
      %p584 = por %p582, %p583
      %p585 = scmp.ne.s32.totalorder %s574, %s577
      %p586 = scmp.eq.s32.totalorder %s63, 3
      %p587 = por %p585, %p586
      %p588 = scmp.ne.s32.totalorder %s577, %s578
      %p589 = scmp.eq.s32.totalorder %s63, 0
      %p590 = por %p588, %p589
      %p591 = scmp.ne.s32.totalorder %s577, %s578
      %p592 = scmp.eq.s32.totalorder %s64, 3
      %p593 = por %p591, %p592
      %p595 = scmp.ne.s32.totalorder %s578, %s594
      %p596 = scmp.eq.s32.totalorder %s64, 0
      %p597 = por %p595, %p596
      %p598 = scmp.le.s32.totalorder 1, %s58
      %p599 = scmp.lt.s32.totalorder %s58, 5
      %p600 = pnand %p598, %p599
      %p601 = pneg %p600
      // Predicated region
      $region9: #{gpt_forward.2} parent=5 // pred_check
        _
      $region10: #{gpt_forward.2} parent=5 // pred_check_branch
        %603 = sbr.rel (%p600) target = $region12
      $region11: #{gpt_forward.2} parent=5 // pred_region
        %s604 = ssub.s32 %s58, 1
      $region12: #{gpt_forward.2} parent=5 // pred_fallthru
        _
      %p605 = scmp.lt.s32.totalorder %s58, 4
      // Predicated region
      $region13: #{gpt_forward.2} parent=5 // pred_check
        %p606 = pneg %p605
      $region14: #{gpt_forward.2} parent=5 // pred_check_branch
        %608 = sbr.rel (%p606) target = $region16
      $region15: #{gpt_forward.2} parent=5 // pred_region
        // Predicated region
        $region17: #{gpt_forward.2} parent=15 // pred_check
          %p609 = pneg %p90
        $region18: #{gpt_forward.2} parent=15 // pred_check_branch
          %611 = sbr.rel (%p609) target = $region20
        $region19: #{gpt_forward.2} parent=15 // pred_region
          %s612 = sand.u32 %s80, 1
          %s613 = scalar_lea.sflag [#allocation6], %s612
          %s614 = sand.u32 %s80, 1
          %s615 = smul.addr %s614, 16
          %s616 = scalar_lea.vmem [#allocation5], %s615
          %s618 = ssub.s32 256, 256
          %619 = vsyncadd %s613, %s618
          %s620 = smul.addr %s65, 2
          %s621 = smul.addr %s620, 128
          %s622 = scalar_lea.hbm %s0, %s621
          %s624 = sshll.u32 %s616, 4
          %s625 = int_to_ptr.vmem [resolvable:$true] %s624
          %627 = dma.hbm_to_vmem [thread:$0]  %s622, 256, %s625, %s613
        $region20: #{gpt_forward.2} parent=15 // pred_fallthru
          _
        // Predicated region
        $region21: #{gpt_forward.2} parent=15 // pred_check
          %p628 = pneg %p116
        $region22: #{gpt_forward.2} parent=15 // pred_check_branch
          %630 = sbr.rel (%p628) target = $region24
        $region23: #{gpt_forward.2} parent=15 // pred_region
          %s631 = sand.u32 %s58, 1
          %s632 = scalar_lea.sflag [#allocation9], %s631
          %s633 = sand.u32 %s106, 1
          %s634 = scalar_lea.vmem [#allocation8], %s633
          %s636 = ssub.s32 16, 16
          %637 = vsyncadd %s632, %s636
          %s638 = smul.addr %s65, 16
          %s639 = scalar_lea.hbm %s1, %s638
          %s641 = sshll.u32 %s634, 4
          %s642 = int_to_ptr.vmem [resolvable:$true] %s641
          %644 = dma.hbm_to_vmem [thread:$0]  %s639, 16, %s642, %s632
        $region24: #{gpt_forward.2} parent=15 // pred_fallthru
          _
        // Predicated region
        $region25: #{gpt_forward.2} parent=15 // pred_check
          %p645 = pneg %p142
        $region26: #{gpt_forward.2} parent=15 // pred_check_branch
          %647 = sbr.rel (%p645) target = $region28
        $region27: #{gpt_forward.2} parent=15 // pred_region
          %s648 = sand.u32 %s58, 1
          %s649 = scalar_lea.sflag [#allocation9], %s648
          %s650 = sand.u32 %s132, 1
          %s651 = smul.addr %s650, 8
          %s652 = scalar_lea.vmem [#allocation10], %s651
          %s654 = ssub.s32 128, 128
          %655 = vsyncadd %s649, %s654
          %s656 = smul.addr %s65, 128
          %s657 = scalar_lea.hbm %s2, %s656
          %s659 = sshll.u32 %s652, 4
          %s660 = int_to_ptr.vmem [resolvable:$true] %s659
          %662 = dma.hbm_to_vmem [thread:$0]  %s657, 128, %s660, %s649
        $region28: #{gpt_forward.2} parent=15 // pred_fallthru
          _
        // Predicated region
        $region29: #{gpt_forward.2} parent=15 // pred_check
          %p663 = pneg %p168
        $region30: #{gpt_forward.2} parent=15 // pred_check_branch
          %665 = sbr.rel (%p663) target = $region32
        $region31: #{gpt_forward.2} parent=15 // pred_region
          %s666 = sand.u32 %s58, 1
          %s667 = scalar_lea.sflag [#allocation12], %s666
          %s668 = sand.u32 %s158, 1
          %s669 = smul.addr %s668, 256
          %s670 = scalar_lea.vmem [#allocation11], %s669
          %s672 = ssub.s32 4096, 4096
          %673 = vsyncadd %s667, %s672
          %s674 = smul.addr %s66, 64
          %s675 = smul.addr %s674, 64
          %s676 = scalar_lea.hbm %s3, %s675
          %s677 = sshll.u32 %s670, 4
          %s678 = int_to_ptr.vmem [resolvable:$true] %s677
          %683 = dma.hbm_to_vmem [thread:$0]  %s676, 4096, %s678, %s667, 128, 128, 8
        $region32: #{gpt_forward.2} parent=15 // pred_fallthru
          _
        // Predicated region
        $region33: #{gpt_forward.2} parent=15 // pred_check
          %p684 = pneg %p194
        $region34: #{gpt_forward.2} parent=15 // pred_check_branch
          %686 = sbr.rel (%p684) target = $region36
        $region35: #{gpt_forward.2} parent=15 // pred_region
          %s687 = sand.u32 %s58, 1
          %s688 = scalar_lea.sflag [#allocation12], %s687
          %s689 = sand.u32 %s184, 1
          %s690 = smul.addr %s689, 2
          %s691 = scalar_lea.vmem [#allocation13], %s690
          %s693 = ssub.s32 32, 32
          %694 = vsyncadd %s688, %s693
          %s695 = smul.addr %s66, 2
          %s696 = smul.addr %s695, 16
          %s697 = scalar_lea.hbm %s4, %s696
          %s699 = sshll.u32 %s691, 4
          %s700 = int_to_ptr.vmem [resolvable:$true] %s699
          %702 = dma.hbm_to_vmem [thread:$0]  %s697, 32, %s700, %s688
        $region36: #{gpt_forward.2} parent=15 // pred_fallthru
          _
        // Predicated region
        $region37: #{gpt_forward.2} parent=15 // pred_check
          %p703 = pneg %p220
        $region38: #{gpt_forward.2} parent=15 // pred_check_branch
          %705 = sbr.rel (%p703) target = $region40
        $region39: #{gpt_forward.2} parent=15 // pred_region
          %s706 = sand.u32 %s58, 1
          %s707 = scalar_lea.sflag [#allocation15], %s706
          %s708 = sand.u32 %s210, 1
          %s709 = smul.addr %s708, 256
          %s710 = scalar_lea.vmem [#allocation14], %s709
          %s712 = ssub.s32 4096, 4096
          %713 = vsyncadd %s707, %s712
          %s714 = smul.addr %s66, 64
          %s715 = smul.addr %s714, 64
          %s716 = scalar_lea.hbm %s5, %s715
          %s717 = sshll.u32 %s710, 4
          %s718 = int_to_ptr.vmem [resolvable:$true] %s717
          %723 = dma.hbm_to_vmem [thread:$0]  %s716, 4096, %s718, %s707, 128, 128, 8
        $region40: #{gpt_forward.2} parent=15 // pred_fallthru
          _
        // Predicated region
        $region41: #{gpt_forward.2} parent=15 // pred_check
          %p724 = pneg %p246
        $region42: #{gpt_forward.2} parent=15 // pred_check_branch
          %726 = sbr.rel (%p724) target = $region44
        $region43: #{gpt_forward.2} parent=15 // pred_region
          %s727 = sand.u32 %s58, 1
          %s728 = scalar_lea.sflag [#allocation15], %s727
          %s729 = sand.u32 %s236, 1
          %s730 = smul.addr %s729, 2
          %s731 = scalar_lea.vmem [#allocation16], %s730
          %s733 = ssub.s32 32, 32
          %734 = vsyncadd %s728, %s733
          %s735 = smul.addr %s66, 2
          %s736 = smul.addr %s735, 16
          %s737 = scalar_lea.hbm %s6, %s736
          %s739 = sshll.u32 %s731, 4
          %s740 = int_to_ptr.vmem [resolvable:$true] %s739
          %742 = dma.hbm_to_vmem [thread:$0]  %s737, 32, %s740, %s728
        $region44: #{gpt_forward.2} parent=15 // pred_fallthru
          _
        // Predicated region
        $region45: #{gpt_forward.2} parent=15 // pred_check
          %p743 = pneg %p272
        $region46: #{gpt_forward.2} parent=15 // pred_check_branch
          %745 = sbr.rel (%p743) target = $region48
        $region47: #{gpt_forward.2} parent=15 // pred_region
          %s746 = sand.u32 %s58, 1
          %s747 = scalar_lea.sflag [#allocation18], %s746
          %s748 = sand.u32 %s262, 1
          %s749 = smul.addr %s748, 256
          %s750 = scalar_lea.vmem [#allocation17], %s749
          %s752 = ssub.s32 4096, 4096
          %753 = vsyncadd %s747, %s752
          %s754 = smul.addr %s66, 64
          %s755 = smul.addr %s754, 64
          %s756 = scalar_lea.hbm %s7, %s755
          %s757 = sshll.u32 %s750, 4
          %s758 = int_to_ptr.vmem [resolvable:$true] %s757
          %763 = dma.hbm_to_vmem [thread:$0]  %s756, 4096, %s758, %s747, 128, 128, 8
        $region48: #{gpt_forward.2} parent=15 // pred_fallthru
          _
        // Predicated region
        $region49: #{gpt_forward.2} parent=15 // pred_check
          %p764 = pneg %p298
        $region50: #{gpt_forward.2} parent=15 // pred_check_branch
          %766 = sbr.rel (%p764) target = $region52
        $region51: #{gpt_forward.2} parent=15 // pred_region
          %s767 = sand.u32 %s58, 1
          %s768 = scalar_lea.sflag [#allocation18], %s767
          %s769 = sand.u32 %s288, 1
          %s770 = smul.addr %s769, 2
          %s771 = scalar_lea.vmem [#allocation19], %s770
          %s773 = ssub.s32 32, 32
          %774 = vsyncadd %s768, %s773
          %s775 = smul.addr %s66, 2
          %s776 = smul.addr %s775, 16
          %s777 = scalar_lea.hbm %s8, %s776
          %s779 = sshll.u32 %s771, 4
          %s780 = int_to_ptr.vmem [resolvable:$true] %s779
          %782 = dma.hbm_to_vmem [thread:$0]  %s777, 32, %s780, %s768
        $region52: #{gpt_forward.2} parent=15 // pred_fallthru
          _
        // Predicated region
        $region53: #{gpt_forward.2} parent=15 // pred_check
          %p783 = pneg %p324
        $region54: #{gpt_forward.2} parent=15 // pred_check_branch
          %785 = sbr.rel (%p783) target = $region56
        $region55: #{gpt_forward.2} parent=15 // pred_region
          %s786 = sand.u32 %s58, 1
          %s787 = scalar_lea.sflag [#allocation21], %s786
          %s788 = sand.u32 %s314, 1
          %s789 = smul.addr %s788, 256
          %s790 = scalar_lea.vmem [#allocation20], %s789
          %s792 = ssub.s32 4096, 4096
          %793 = vsyncadd %s787, %s792
          %s794 = smul.addr %s66, 64
          %s795 = smul.addr %s794, 64
          %s796 = scalar_lea.hbm %s9, %s795
          %s797 = sshll.u32 %s790, 4
          %s798 = int_to_ptr.vmem [resolvable:$true] %s797
          %803 = dma.hbm_to_vmem [thread:$0]  %s796, 4096, %s798, %s787, 128, 128, 8
        $region56: #{gpt_forward.2} parent=15 // pred_fallthru
          _
        // Predicated region
        $region57: #{gpt_forward.2} parent=15 // pred_check
          %p804 = pneg %p350
        $region58: #{gpt_forward.2} parent=15 // pred_check_branch
          %806 = sbr.rel (%p804) target = $region60
        $region59: #{gpt_forward.2} parent=15 // pred_region
          %s807 = sand.u32 %s58, 1
          %s808 = scalar_lea.sflag [#allocation21], %s807
          %s809 = sand.u32 %s340, 1
          %s810 = smul.addr %s809, 2
          %s811 = scalar_lea.vmem [#allocation22], %s810
          %s813 = ssub.s32 32, 32
          %814 = vsyncadd %s808, %s813
          %s815 = smul.addr %s66, 2
          %s816 = smul.addr %s815, 16
          %s817 = scalar_lea.hbm %s10, %s816
          %s819 = sshll.u32 %s811, 4
          %s820 = int_to_ptr.vmem [resolvable:$true] %s819
          %822 = dma.hbm_to_vmem [thread:$0]  %s817, 32, %s820, %s808
        $region60: #{gpt_forward.2} parent=15 // pred_fallthru
          _
        // Predicated region
        $region61: #{gpt_forward.2} parent=15 // pred_check
          %p823 = pneg %p376
        $region62: #{gpt_forward.2} parent=15 // pred_check_branch
          %825 = sbr.rel (%p823) target = $region64
        $region63: #{gpt_forward.2} parent=15 // pred_region
          %s826 = sand.u32 %s58, 1
          %s827 = scalar_lea.sflag [#allocation24], %s826
          %s828 = sand.u32 %s366, 1
          %s829 = smul.addr %s828, 2
          %s830 = scalar_lea.vmem [#allocation23], %s829
          %s832 = ssub.s32 32, 32
          %833 = vsyncadd %s827, %s832
          %s834 = smul.addr %s66, 2
          %s835 = smul.addr %s834, 16
          %s836 = scalar_lea.hbm %s11, %s835
          %s838 = sshll.u32 %s830, 4
          %s839 = int_to_ptr.vmem [resolvable:$true] %s838
          %841 = dma.hbm_to_vmem [thread:$0]  %s836, 32, %s839, %s827
        $region64: #{gpt_forward.2} parent=15 // pred_fallthru
          _
        // Predicated region
        $region65: #{gpt_forward.2} parent=15 // pred_check
          %p842 = pneg %p402
        $region66: #{gpt_forward.2} parent=15 // pred_check_branch
          %844 = sbr.rel (%p842) target = $region68
        $region67: #{gpt_forward.2} parent=15 // pred_region
          %s845 = sand.u32 %s58, 1
          %s846 = scalar_lea.sflag [#allocation24], %s845
          %s847 = sand.u32 %s392, 1
          %s848 = smul.addr %s847, 2
          %s849 = scalar_lea.vmem [#allocation25], %s848
          %s851 = ssub.s32 32, 32
          %852 = vsyncadd %s846, %s851
          %s853 = smul.addr %s66, 2
          %s854 = smul.addr %s853, 16
          %s855 = scalar_lea.hbm %s12, %s854
          %s857 = sshll.u32 %s849, 4
          %s858 = int_to_ptr.vmem [resolvable:$true] %s857
          %860 = dma.hbm_to_vmem [thread:$0]  %s855, 32, %s858, %s846
        $region68: #{gpt_forward.2} parent=15 // pred_fallthru
          _
        // Predicated region
        $region69: #{gpt_forward.2} parent=15 // pred_check
          %p861 = pneg %p428
        $region70: #{gpt_forward.2} parent=15 // pred_check_branch
          %863 = sbr.rel (%p861) target = $region72
        $region71: #{gpt_forward.2} parent=15 // pred_region
          %s864 = sand.u32 %s58, 1
          %s865 = scalar_lea.sflag [#allocation27], %s864
          %s866 = sand.u32 %s418, 1
          %s867 = smul.addr %s866, 512
          %s868 = scalar_lea.vmem [#allocation26], %s867
          %s870 = ssub.s32 8192, 8192
          %871 = vsyncadd %s865, %s870
          %s872 = smul.addr %s66, 128
          %s873 = smul.addr %s872, 64
          %s874 = scalar_lea.hbm %s13, %s873
          %s875 = sshll.u32 %s868, 4
          %s876 = int_to_ptr.vmem [resolvable:$true] %s875
          %881 = dma.hbm_to_vmem [thread:$0]  %s874, 8192, %s876, %s865, 256, 256, 16
        $region72: #{gpt_forward.2} parent=15 // pred_fallthru
          _
        // Predicated region
        $region73: #{gpt_forward.2} parent=15 // pred_check
          %p882 = pneg %p454
        $region74: #{gpt_forward.2} parent=15 // pred_check_branch
          %884 = sbr.rel (%p882) target = $region76
        $region75: #{gpt_forward.2} parent=15 // pred_region
          %s885 = sand.u32 %s58, 1
          %s886 = scalar_lea.sflag [#allocation27], %s885
          %s887 = sand.u32 %s444, 1
          %s888 = smul.addr %s887, 4
          %s889 = scalar_lea.vmem [#allocation28], %s888
          %s891 = ssub.s32 64, 64
          %892 = vsyncadd %s886, %s891
          %s893 = smul.addr %s66, 4
          %s894 = smul.addr %s893, 16
          %s895 = scalar_lea.hbm %s14, %s894
          %s897 = sshll.u32 %s889, 4
          %s898 = int_to_ptr.vmem [resolvable:$true] %s897
          %900 = dma.hbm_to_vmem [thread:$0]  %s895, 64, %s898, %s886
        $region76: #{gpt_forward.2} parent=15 // pred_fallthru
          _
        // Predicated region
        $region77: #{gpt_forward.2} parent=15 // pred_check
          %p901 = pneg %p480
        $region78: #{gpt_forward.2} parent=15 // pred_check_branch
          %903 = sbr.rel (%p901) target = $region80
        $region79: #{gpt_forward.2} parent=15 // pred_region
          %s904 = sand.u32 %s58, 1
          %s905 = scalar_lea.sflag [#allocation30], %s904
          %s906 = sand.u32 %s470, 1
          %s907 = smul.addr %s906, 512
          %s908 = scalar_lea.vmem [#allocation29], %s907
          %s910 = ssub.s32 8192, 8192
          %911 = vsyncadd %s905, %s910
          %s912 = smul.addr %s66, 128
          %s913 = smul.addr %s912, 64
          %s914 = scalar_lea.hbm %s15, %s913
          %s915 = sshll.u32 %s908, 4
          %s916 = int_to_ptr.vmem [resolvable:$true] %s915
          %921 = dma.hbm_to_vmem [thread:$0]  %s914, 8192, %s916, %s905, 128, 128, 8
        $region80: #{gpt_forward.2} parent=15 // pred_fallthru
          _
        // Predicated region
        $region81: #{gpt_forward.2} parent=15 // pred_check
          %p922 = pneg %p506
        $region82: #{gpt_forward.2} parent=15 // pred_check_branch
          %924 = sbr.rel (%p922) target = $region84
        $region83: #{gpt_forward.2} parent=15 // pred_region
          %s925 = sand.u32 %s58, 1
          %s926 = scalar_lea.sflag [#allocation30], %s925
          %s927 = sand.u32 %s496, 1
          %s928 = smul.addr %s927, 2
          %s929 = scalar_lea.vmem [#allocation31], %s928
          %s931 = ssub.s32 32, 32
          %932 = vsyncadd %s926, %s931
          %s933 = smul.addr %s66, 2
          %s934 = smul.addr %s933, 16
          %s935 = scalar_lea.hbm %s16, %s934
          %s937 = sshll.u32 %s929, 4
          %s938 = int_to_ptr.vmem [resolvable:$true] %s937
          %940 = dma.hbm_to_vmem [thread:$0]  %s935, 32, %s938, %s926
        $region84: #{gpt_forward.2} parent=15 // pred_fallthru
          _
        // Predicated region
        $region85: #{gpt_forward.2} parent=15 // pred_check
          %p941 = pneg %p532
        $region86: #{gpt_forward.2} parent=15 // pred_check_branch
          %943 = sbr.rel (%p941) target = $region88
        $region87: #{gpt_forward.2} parent=15 // pred_region
          %s944 = sand.u32 %s58, 1
          %s945 = scalar_lea.sflag [#allocation33], %s944
          %s946 = sand.u32 %s522, 1
          %s947 = smul.addr %s946, 2
          %s948 = scalar_lea.vmem [#allocation32], %s947
          %s950 = ssub.s32 32, 32
          %951 = vsyncadd %s945, %s950
          %s952 = smul.addr %s66, 2
          %s953 = smul.addr %s952, 16
          %s954 = scalar_lea.hbm %s17, %s953
          %s956 = sshll.u32 %s948, 4
          %s957 = int_to_ptr.vmem [resolvable:$true] %s956
          %959 = dma.hbm_to_vmem [thread:$0]  %s954, 32, %s957, %s945
        $region88: #{gpt_forward.2} parent=15 // pred_fallthru
          _
        // Predicated region
        $region89: #{gpt_forward.2} parent=15 // pred_check
          %p960 = pneg %p558
        $region90: #{gpt_forward.2} parent=15 // pred_check_branch
          %962 = sbr.rel (%p960) target = $region92
        $region91: #{gpt_forward.2} parent=15 // pred_region
          %s963 = sand.u32 %s58, 1
          %s964 = scalar_lea.sflag [#allocation33], %s963
          %s965 = sand.u32 %s548, 1
          %s966 = smul.addr %s965, 2
          %s967 = scalar_lea.vmem [#allocation34], %s966
          %s969 = ssub.s32 32, 32
          %970 = vsyncadd %s964, %s969
          %s971 = smul.addr %s66, 2
          %s972 = smul.addr %s971, 16
          %s973 = scalar_lea.hbm %s18, %s972
          %s975 = sshll.u32 %s967, 4
          %s976 = int_to_ptr.vmem [resolvable:$true] %s975
          %978 = dma.hbm_to_vmem [thread:$0]  %s973, 32, %s976, %s964
        $region92: #{gpt_forward.2} parent=15 // pred_fallthru
          _
      $region16: #{gpt_forward.2} parent=5 // pred_fallthru
        _
      %p979 = scmp.le.s32.totalorder 1, %s58
      %p980 = scmp.lt.s32.totalorder %s58, 5
      %p981 = pnand %p979, %p980
      %p982 = pneg %p981
      // Predicated region
      $region93: #{gpt_forward.2} parent=5 // pred_check
        _
      $region94: #{gpt_forward.2} parent=5 // pred_check_branch
        %984 = sbr.rel (%p981) target = $region96
      $region95: #{gpt_forward.2} parent=5 // pred_region
        %s985 = ssub.s32 %s58, 1
        %s986 = sand.u32 %s83, 1
        %s987 = scalar_lea.sflag [#allocation6], %s986
        %s988 = sand.u32 %s83, 1
        %s989 = smul.addr %s988, 16
        %s990 = scalar_lea.vmem [#allocation5], %s989
        // Predicated region
        $region97: #{gpt_forward.2} parent=95 // pred_check
          %p991 = pneg %p96
        $region98: #{gpt_forward.2} parent=95 // pred_check_branch
          %993 = sbr.rel (%p991) target = $region100
        $region99: #{gpt_forward.2} parent=95 // pred_region
          %994 = dma.done %s987, 256
        $region100: #{gpt_forward.2} parent=95 // pred_fallthru
          _
        %s995 = sand.u32 %s63, 1
        %s996 = scalar_lea.sflag [#allocation9], %s995
        %s997 = sand.u32 %s109, 1
        %s998 = scalar_lea.vmem [#allocation8], %s997
        // Predicated region
        $region101: #{gpt_forward.2} parent=95 // pred_check
          %p999 = pneg %p122
        $region102: #{gpt_forward.2} parent=95 // pred_check_branch
          %1001 = sbr.rel (%p999) target = $region104
        $region103: #{gpt_forward.2} parent=95 // pred_region
          %1002 = dma.done %s996, 16
        $region104: #{gpt_forward.2} parent=95 // pred_fallthru
          _
        %s1003 = sand.u32 %s63, 1
        %s1004 = scalar_lea.sflag [#allocation9], %s1003
        %s1005 = sand.u32 %s135, 1
        %s1006 = smul.addr %s1005, 8
        %s1007 = scalar_lea.vmem [#allocation10], %s1006
        // Predicated region
        $region105: #{gpt_forward.2} parent=95 // pred_check
          %p1008 = pneg %p148
        $region106: #{gpt_forward.2} parent=95 // pred_check_branch
          %1010 = sbr.rel (%p1008) target = $region108
        $region107: #{gpt_forward.2} parent=95 // pred_region
          %1011 = dma.done %s1004, 128
        $region108: #{gpt_forward.2} parent=95 // pred_fallthru
          _
        %s1012 = sand.u32 %s63, 1
        %s1013 = scalar_lea.sflag [#allocation12], %s1012
        %s1014 = sand.u32 %s161, 1
        %s1015 = smul.addr %s1014, 256
        %s1016 = scalar_lea.vmem [#allocation11], %s1015
        // Predicated region
        $region109: #{gpt_forward.2} parent=95 // pred_check
          %p1017 = pneg %p174
        $region110: #{gpt_forward.2} parent=95 // pred_check_branch
          %1019 = sbr.rel (%p1017) target = $region112
        $region111: #{gpt_forward.2} parent=95 // pred_region
          %1020 = dma.done %s1013, 4096
        $region112: #{gpt_forward.2} parent=95 // pred_fallthru
          _
        %s1021 = sand.u32 %s63, 1
        %s1022 = scalar_lea.sflag [#allocation12], %s1021
        %s1023 = sand.u32 %s187, 1
        %s1024 = smul.addr %s1023, 2
        %s1025 = scalar_lea.vmem [#allocation13], %s1024
        // Predicated region
        $region113: #{gpt_forward.2} parent=95 // pred_check
          %p1026 = pneg %p200
        $region114: #{gpt_forward.2} parent=95 // pred_check_branch
          %1028 = sbr.rel (%p1026) target = $region116
        $region115: #{gpt_forward.2} parent=95 // pred_region
          %1029 = dma.done %s1022, 32
        $region116: #{gpt_forward.2} parent=95 // pred_fallthru
          _
        %s1030 = sand.u32 %s63, 1
        %s1031 = scalar_lea.sflag [#allocation15], %s1030
        %s1032 = sand.u32 %s213, 1
        %s1033 = smul.addr %s1032, 256
        %s1034 = scalar_lea.vmem [#allocation14], %s1033
        // Predicated region
        $region117: #{gpt_forward.2} parent=95 // pred_check
          %p1035 = pneg %p226
        $region118: #{gpt_forward.2} parent=95 // pred_check_branch
          %1037 = sbr.rel (%p1035) target = $region120
        $region119: #{gpt_forward.2} parent=95 // pred_region
          %1038 = dma.done %s1031, 4096
        $region120: #{gpt_forward.2} parent=95 // pred_fallthru
          _
        %s1039 = sand.u32 %s63, 1
        %s1040 = scalar_lea.sflag [#allocation15], %s1039
        %s1041 = sand.u32 %s239, 1
        %s1042 = smul.addr %s1041, 2
        %s1043 = scalar_lea.vmem [#allocation16], %s1042
        // Predicated region
        $region121: #{gpt_forward.2} parent=95 // pred_check
          %p1044 = pneg %p252
        $region122: #{gpt_forward.2} parent=95 // pred_check_branch
          %1046 = sbr.rel (%p1044) target = $region124
        $region123: #{gpt_forward.2} parent=95 // pred_region
          %1047 = dma.done %s1040, 32
        $region124: #{gpt_forward.2} parent=95 // pred_fallthru
          _
        %s1048 = sand.u32 %s63, 1
        %s1049 = scalar_lea.sflag [#allocation18], %s1048
        %s1050 = sand.u32 %s265, 1
        %s1051 = smul.addr %s1050, 256
        %s1052 = scalar_lea.vmem [#allocation17], %s1051
        // Predicated region
        $region125: #{gpt_forward.2} parent=95 // pred_check
          %p1053 = pneg %p278
        $region126: #{gpt_forward.2} parent=95 // pred_check_branch
          %1055 = sbr.rel (%p1053) target = $region128
        $region127: #{gpt_forward.2} parent=95 // pred_region
          %1056 = dma.done %s1049, 4096
        $region128: #{gpt_forward.2} parent=95 // pred_fallthru
          _
        %s1057 = sand.u32 %s63, 1
        %s1058 = scalar_lea.sflag [#allocation18], %s1057
        %s1059 = sand.u32 %s291, 1
        %s1060 = smul.addr %s1059, 2
        %s1061 = scalar_lea.vmem [#allocation19], %s1060
        // Predicated region
        $region129: #{gpt_forward.2} parent=95 // pred_check
          %p1062 = pneg %p304
        $region130: #{gpt_forward.2} parent=95 // pred_check_branch
          %1064 = sbr.rel (%p1062) target = $region132
        $region131: #{gpt_forward.2} parent=95 // pred_region
          %1065 = dma.done %s1058, 32
        $region132: #{gpt_forward.2} parent=95 // pred_fallthru
          _
        %s1066 = sand.u32 %s63, 1
        %s1067 = scalar_lea.sflag [#allocation21], %s1066
        %s1068 = sand.u32 %s317, 1
        %s1069 = smul.addr %s1068, 256
        %s1070 = scalar_lea.vmem [#allocation20], %s1069
        // Predicated region
        $region133: #{gpt_forward.2} parent=95 // pred_check
          %p1071 = pneg %p330
        $region134: #{gpt_forward.2} parent=95 // pred_check_branch
          %1073 = sbr.rel (%p1071) target = $region136
        $region135: #{gpt_forward.2} parent=95 // pred_region
          %1074 = dma.done %s1067, 4096
        $region136: #{gpt_forward.2} parent=95 // pred_fallthru
          _
        %s1075 = sand.u32 %s63, 1
        %s1076 = scalar_lea.sflag [#allocation21], %s1075
        %s1077 = sand.u32 %s343, 1
        %s1078 = smul.addr %s1077, 2
        %s1079 = scalar_lea.vmem [#allocation22], %s1078
        // Predicated region
        $region137: #{gpt_forward.2} parent=95 // pred_check
          %p1080 = pneg %p356
        $region138: #{gpt_forward.2} parent=95 // pred_check_branch
          %1082 = sbr.rel (%p1080) target = $region140
        $region139: #{gpt_forward.2} parent=95 // pred_region
          %1083 = dma.done %s1076, 32
        $region140: #{gpt_forward.2} parent=95 // pred_fallthru
          _
        %s1084 = sand.u32 %s63, 1
        %s1085 = scalar_lea.sflag [#allocation24], %s1084
        %s1086 = sand.u32 %s369, 1
        %s1087 = smul.addr %s1086, 2
        %s1088 = scalar_lea.vmem [#allocation23], %s1087
        // Predicated region
        $region141: #{gpt_forward.2} parent=95 // pred_check
          %p1089 = pneg %p382
        $region142: #{gpt_forward.2} parent=95 // pred_check_branch
          %1091 = sbr.rel (%p1089) target = $region144
        $region143: #{gpt_forward.2} parent=95 // pred_region
          %1092 = dma.done %s1085, 32
        $region144: #{gpt_forward.2} parent=95 // pred_fallthru
          _
        %s1093 = sand.u32 %s63, 1
        %s1094 = scalar_lea.sflag [#allocation24], %s1093
        %s1095 = sand.u32 %s395, 1
        %s1096 = smul.addr %s1095, 2
        %s1097 = scalar_lea.vmem [#allocation25], %s1096
        // Predicated region
        $region145: #{gpt_forward.2} parent=95 // pred_check
          %p1098 = pneg %p408
        $region146: #{gpt_forward.2} parent=95 // pred_check_branch
          %1100 = sbr.rel (%p1098) target = $region148
        $region147: #{gpt_forward.2} parent=95 // pred_region
          %1101 = dma.done %s1094, 32
        $region148: #{gpt_forward.2} parent=95 // pred_fallthru
          _
        %s1102 = sand.u32 %s63, 1
        %s1103 = scalar_lea.sflag [#allocation27], %s1102
        %s1104 = sand.u32 %s421, 1
        %s1105 = smul.addr %s1104, 512
        %s1106 = scalar_lea.vmem [#allocation26], %s1105
        // Predicated region
        $region149: #{gpt_forward.2} parent=95 // pred_check
          %p1107 = pneg %p434
        $region150: #{gpt_forward.2} parent=95 // pred_check_branch
          %1109 = sbr.rel (%p1107) target = $region152
        $region151: #{gpt_forward.2} parent=95 // pred_region
          %1110 = dma.done %s1103, 8192
        $region152: #{gpt_forward.2} parent=95 // pred_fallthru
          _
        %s1111 = sand.u32 %s63, 1
        %s1112 = scalar_lea.sflag [#allocation27], %s1111
        %s1113 = sand.u32 %s447, 1
        %s1114 = smul.addr %s1113, 4
        %s1115 = scalar_lea.vmem [#allocation28], %s1114
        // Predicated region
        $region153: #{gpt_forward.2} parent=95 // pred_check
          %p1116 = pneg %p460
        $region154: #{gpt_forward.2} parent=95 // pred_check_branch
          %1118 = sbr.rel (%p1116) target = $region156
        $region155: #{gpt_forward.2} parent=95 // pred_region
          %1119 = dma.done %s1112, 64
        $region156: #{gpt_forward.2} parent=95 // pred_fallthru
          _
        %s1120 = sand.u32 %s63, 1
        %s1121 = scalar_lea.sflag [#allocation30], %s1120
        %s1122 = sand.u32 %s473, 1
        %s1123 = smul.addr %s1122, 512
        %s1124 = scalar_lea.vmem [#allocation29], %s1123
        // Predicated region
        $region157: #{gpt_forward.2} parent=95 // pred_check
          %p1125 = pneg %p486
        $region158: #{gpt_forward.2} parent=95 // pred_check_branch
          %1127 = sbr.rel (%p1125) target = $region160
        $region159: #{gpt_forward.2} parent=95 // pred_region
          %1128 = dma.done %s1121, 8192
        $region160: #{gpt_forward.2} parent=95 // pred_fallthru
          _
        %s1129 = sand.u32 %s63, 1
        %s1130 = scalar_lea.sflag [#allocation30], %s1129
        %s1131 = sand.u32 %s499, 1
        %s1132 = smul.addr %s1131, 2
        %s1133 = scalar_lea.vmem [#allocation31], %s1132
        // Predicated region
        $region161: #{gpt_forward.2} parent=95 // pred_check
          %p1134 = pneg %p512
        $region162: #{gpt_forward.2} parent=95 // pred_check_branch
          %1136 = sbr.rel (%p1134) target = $region164
        $region163: #{gpt_forward.2} parent=95 // pred_region
          %1137 = dma.done %s1130, 32
        $region164: #{gpt_forward.2} parent=95 // pred_fallthru
          _
        %s1138 = sand.u32 %s63, 1
        %s1139 = scalar_lea.sflag [#allocation33], %s1138
        %s1140 = sand.u32 %s525, 1
        %s1141 = smul.addr %s1140, 2
        %s1142 = scalar_lea.vmem [#allocation32], %s1141
        // Predicated region
        $region165: #{gpt_forward.2} parent=95 // pred_check
          %p1143 = pneg %p538
        $region166: #{gpt_forward.2} parent=95 // pred_check_branch
          %1145 = sbr.rel (%p1143) target = $region168
        $region167: #{gpt_forward.2} parent=95 // pred_region
          %1146 = dma.done %s1139, 32
        $region168: #{gpt_forward.2} parent=95 // pred_fallthru
          _
        %s1147 = sand.u32 %s63, 1
        %s1148 = scalar_lea.sflag [#allocation33], %s1147
        %s1149 = sand.u32 %s551, 1
        %s1150 = smul.addr %s1149, 2
        %s1151 = scalar_lea.vmem [#allocation34], %s1150
        // Predicated region
        $region169: #{gpt_forward.2} parent=95 // pred_check
          %p1152 = pneg %p564
        $region170: #{gpt_forward.2} parent=95 // pred_check_branch
          %1154 = sbr.rel (%p1152) target = $region172
        $region171: #{gpt_forward.2} parent=95 // pred_region
          %1155 = dma.done %s1148, 32
        $region172: #{gpt_forward.2} parent=95 // pred_fallthru
          _
        %s1156 = sand.u32 %s83, 1
        %s1157 = scalar_lea.sflag [#allocation6], %s1156
        %s1158 = sand.u32 %s83, 1
        %s1159 = smul.addr %s1158, 16
        %s1160 = scalar_lea.vmem [#allocation5], %s1159
        %p1161 = pneg %p96
        %p1162 = pneg %p93
        %s1163 = sand.u32 %s63, 1
        %s1164 = scalar_lea.sflag [#allocation9], %s1163
        %s1165 = sand.u32 %s109, 1
        %s1166 = scalar_lea.vmem [#allocation8], %s1165
        %p1167 = pneg %p122
        %p1168 = pneg %p119
        %s1169 = sand.u32 %s63, 1
        %s1170 = scalar_lea.sflag [#allocation9], %s1169
        %s1171 = sand.u32 %s135, 1
        %s1172 = smul.addr %s1171, 8
        %s1173 = scalar_lea.vmem [#allocation10], %s1172
        %p1174 = pneg %p148
        %p1175 = pneg %p145
        %s1176 = sand.u32 %s63, 1
        %s1177 = scalar_lea.sflag [#allocation12], %s1176
        %s1178 = sand.u32 %s161, 1
        %s1179 = smul.addr %s1178, 256
        %s1180 = scalar_lea.vmem [#allocation11], %s1179
        %p1181 = pneg %p174
        %p1182 = pneg %p171
        %s1183 = sand.u32 %s63, 1
        %s1184 = scalar_lea.sflag [#allocation12], %s1183
        %s1185 = sand.u32 %s187, 1
        %s1186 = smul.addr %s1185, 2
        %s1187 = scalar_lea.vmem [#allocation13], %s1186
        %p1188 = pneg %p200
        %p1189 = pneg %p197
        %s1190 = sand.u32 %s63, 1
        %s1191 = scalar_lea.sflag [#allocation15], %s1190
        %s1192 = sand.u32 %s213, 1
        %s1193 = smul.addr %s1192, 256
        %s1194 = scalar_lea.vmem [#allocation14], %s1193
        %p1195 = pneg %p226
        %p1196 = pneg %p223
        %s1197 = sand.u32 %s63, 1
        %s1198 = scalar_lea.sflag [#allocation15], %s1197
        %s1199 = sand.u32 %s239, 1
        %s1200 = smul.addr %s1199, 2
        %s1201 = scalar_lea.vmem [#allocation16], %s1200
        %p1202 = pneg %p252
        %p1203 = pneg %p249
        %s1204 = sand.u32 %s63, 1
        %s1205 = scalar_lea.sflag [#allocation18], %s1204
        %s1206 = sand.u32 %s265, 1
        %s1207 = smul.addr %s1206, 256
        %s1208 = scalar_lea.vmem [#allocation17], %s1207
        %p1209 = pneg %p278
        %p1210 = pneg %p275
        %s1211 = sand.u32 %s63, 1
        %s1212 = scalar_lea.sflag [#allocation18], %s1211
        %s1213 = sand.u32 %s291, 1
        %s1214 = smul.addr %s1213, 2
        %s1215 = scalar_lea.vmem [#allocation19], %s1214
        %p1216 = pneg %p304
        %p1217 = pneg %p301
        %s1218 = sand.u32 %s63, 1
        %s1219 = scalar_lea.sflag [#allocation21], %s1218
        %s1220 = sand.u32 %s317, 1
        %s1221 = smul.addr %s1220, 256
        %s1222 = scalar_lea.vmem [#allocation20], %s1221
        %p1223 = pneg %p330
        %p1224 = pneg %p327
        %s1225 = sand.u32 %s63, 1
        %s1226 = scalar_lea.sflag [#allocation21], %s1225
        %s1227 = sand.u32 %s343, 1
        %s1228 = smul.addr %s1227, 2
        %s1229 = scalar_lea.vmem [#allocation22], %s1228
        %p1230 = pneg %p356
        %p1231 = pneg %p353
        %s1232 = sand.u32 %s63, 1
        %s1233 = scalar_lea.sflag [#allocation24], %s1232
        %s1234 = sand.u32 %s369, 1
        %s1235 = smul.addr %s1234, 2
        %s1236 = scalar_lea.vmem [#allocation23], %s1235
        %p1237 = pneg %p382
        %p1238 = pneg %p379
        %s1239 = sand.u32 %s63, 1
        %s1240 = scalar_lea.sflag [#allocation24], %s1239
        %s1241 = sand.u32 %s395, 1
        %s1242 = smul.addr %s1241, 2
        %s1243 = scalar_lea.vmem [#allocation25], %s1242
        %p1244 = pneg %p408
        %p1245 = pneg %p405
        %s1246 = sand.u32 %s63, 1
        %s1247 = scalar_lea.sflag [#allocation27], %s1246
        %s1248 = sand.u32 %s421, 1
        %s1249 = smul.addr %s1248, 512
        %s1250 = scalar_lea.vmem [#allocation26], %s1249
        %p1251 = pneg %p434
        %p1252 = pneg %p431
        %s1253 = sand.u32 %s63, 1
        %s1254 = scalar_lea.sflag [#allocation27], %s1253
        %s1255 = sand.u32 %s447, 1
        %s1256 = smul.addr %s1255, 4
        %s1257 = scalar_lea.vmem [#allocation28], %s1256
        %p1258 = pneg %p460
        %p1259 = pneg %p457
        %s1260 = sand.u32 %s63, 1
        %s1261 = scalar_lea.sflag [#allocation30], %s1260
        %s1262 = sand.u32 %s473, 1
        %s1263 = smul.addr %s1262, 512
        %s1264 = scalar_lea.vmem [#allocation29], %s1263
        %p1265 = pneg %p486
        %p1266 = pneg %p483
        %s1267 = sand.u32 %s63, 1
        %s1268 = scalar_lea.sflag [#allocation30], %s1267
        %s1269 = sand.u32 %s499, 1
        %s1270 = smul.addr %s1269, 2
        %s1271 = scalar_lea.vmem [#allocation31], %s1270
        %p1272 = pneg %p512
        %p1273 = pneg %p509
        %s1274 = sand.u32 %s63, 1
        %s1275 = scalar_lea.sflag [#allocation33], %s1274
        %s1276 = sand.u32 %s525, 1
        %s1277 = smul.addr %s1276, 2
        %s1278 = scalar_lea.vmem [#allocation32], %s1277
        %p1279 = pneg %p538
        %p1280 = pneg %p535
        %s1281 = sand.u32 %s63, 1
        %s1282 = scalar_lea.sflag [#allocation33], %s1281
        %s1283 = sand.u32 %s551, 1
        %s1284 = smul.addr %s1283, 2
        %s1285 = scalar_lea.vmem [#allocation34], %s1284
        %p1286 = pneg %p564
        %p1287 = pneg %p561
        %p1288 = pneg %p590
        %p1289 = pneg %p587
        %s1290 = sand.u32 %s577, 1
        %s1291 = scalar_lea.sflag [#allocation7], %s1290
        %s1292 = sand.u32 %s577, 1
        %s1293 = smul.addr %s1292, 16
        %s1294 = scalar_lea.vmem [#allocation35], %s1293
        %p1296 = scmp.eq.s32.totalorder %s68, 0
        // Predicated region
        $region173: #{gpt_forward.2} parent=95 // pred_check
          %p1297 = pneg %p1296
        $region174: #{gpt_forward.2} parent=95 // pred_check_branch
          %1299 = sbr.rel (%p1297) target = $region176
        $region175: #{gpt_forward.2} parent=95 // pred_region
          %v1300 = vld [vmem:[%s990] sm:$0xff]
          %v1301 = vld [vmem:[%s990 + $0x8] sm:$0xff]
          %1302 = vst [vmem:[#allocation2] sm:$0xff] %v1300
          %1303 = vst [vmem:[#allocation2 + $0x8] sm:$0xff] %v1301
        $region176: #{gpt_forward.2} parent=95 // pred_fallthru
          _
        %v1304 = vld [vmem:[#allocation2] sm:$0xff]
        %v1305 = vld [vmem:[#allocation2 + $0x8] sm:$0xff]
        %v1306 = vpack.c.bf16 %v1304, %v1304
        %v1307 = vpack.c.bf16 %v1305, %v1305
        %v1308 = vld [vmem:[%s1016] sm:$0xff]
        %v1309 = vld [vmem:[%s1016 + $0x8] sm:$0xff]
        %v1310 = vld [vmem:[%s1016 + $0x10] sm:$0xff]
        %v1311 = vld [vmem:[%s1016 + $0x18] sm:$0xff]
        %v1312 = vld [vmem:[%s1016 + $0x20] sm:$0xff]
        %v1313 = vld [vmem:[%s1016 + $0x28] sm:$0xff]
        %v1314 = vld [vmem:[%s1016 + $0x30] sm:$0xff]
        %v1315 = vld [vmem:[%s1016 + $0x38] sm:$0xff]
        %v1316 = vld [vmem:[%s1016 + $0x40] sm:$0xff]
        %v1317 = vld [vmem:[%s1016 + $0x48] sm:$0xff]
        %v1318 = vld [vmem:[%s1016 + $0x50] sm:$0xff]
        %v1319 = vld [vmem:[%s1016 + $0x58] sm:$0xff]
        %v1320 = vld [vmem:[%s1016 + $0x60] sm:$0xff]
        %v1321 = vld [vmem:[%s1016 + $0x68] sm:$0xff]
        %v1322 = vld [vmem:[%s1016 + $0x70] sm:$0xff]
        %v1323 = vld [vmem:[%s1016 + $0x78] sm:$0xff]
        %v1324 = vld [vmem:[%s1016 + $0x80] sm:$0xff]
        %v1325 = vld [vmem:[%s1016 + $0x88] sm:$0xff]
        %v1326 = vld [vmem:[%s1016 + $0x90] sm:$0xff]
        %v1327 = vld [vmem:[%s1016 + $0x98] sm:$0xff]
        %v1328 = vld [vmem:[%s1016 + $0xa0] sm:$0xff]
        %v1329 = vld [vmem:[%s1016 + $0xa8] sm:$0xff]
        %v1330 = vld [vmem:[%s1016 + $0xb0] sm:$0xff]
        %v1331 = vld [vmem:[%s1016 + $0xb8] sm:$0xff]
        %v1332 = vld [vmem:[%s1016 + $0xc0] sm:$0xff]
        %v1333 = vld [vmem:[%s1016 + $0xc8] sm:$0xff]
        %v1334 = vld [vmem:[%s1016 + $0xd0] sm:$0xff]
        %v1335 = vld [vmem:[%s1016 + $0xd8] sm:$0xff]
        %v1336 = vld [vmem:[%s1016 + $0xe0] sm:$0xff]
        %v1337 = vld [vmem:[%s1016 + $0xe8] sm:$0xff]
        %v1338 = vld [vmem:[%s1016 + $0xf0] sm:$0xff]
        %v1339 = vld [vmem:[%s1016 + $0xf8] sm:$0xff]
        %v1340 = vld [vmem:[%s1025] sm:$0x3]
        %v1342 = vlaneseq
        %v1343 = vshrl.u32 %v1342, 7
        %v1344 = vsub.s32 0, %v1343
        %v1345 = vrot.slane %v1340, %v1344
        %v1346 = vlaneseq
        %v1347 = vshrl.u32 %v1346, 7
        %v1348 = vsub.s32 1, %v1347
        %v1349 = vrot.slane %v1340, %v1348
        %v1384 = vunpack.c.l.b16 %v1308
        %v1385 = vunpack.c.h.b16 %v1308
        %v1386 = vunpack.c.l.b16 %v1309
        %v1387 = vunpack.c.h.b16 %v1309
        %v1388 = vunpack.c.l.b16 %v1310
        %v1389 = vunpack.c.h.b16 %v1310
        %v1390 = vunpack.c.l.b16 %v1311
        %v1391 = vunpack.c.h.b16 %v1311
        %v1392 = vunpack.c.l.b16 %v1312
        %v1393 = vunpack.c.h.b16 %v1312
        %v1394 = vunpack.c.l.b16 %v1313
        %v1395 = vunpack.c.h.b16 %v1313
        %v1396 = vunpack.c.l.b16 %v1314
        %v1397 = vunpack.c.h.b16 %v1314
        %v1398 = vunpack.c.l.b16 %v1315
        %v1399 = vunpack.c.h.b16 %v1315
        %v1400 = vunpack.c.l.b16 %v1316
        %v1401 = vunpack.c.h.b16 %v1316
        %v1402 = vunpack.c.l.b16 %v1317
        %v1403 = vunpack.c.h.b16 %v1317
        %v1404 = vunpack.c.l.b16 %v1318
        %v1405 = vunpack.c.h.b16 %v1318
        %v1406 = vunpack.c.l.b16 %v1319
        %v1407 = vunpack.c.h.b16 %v1319
        %v1408 = vunpack.c.l.b16 %v1320
        %v1409 = vunpack.c.h.b16 %v1320
        %v1410 = vunpack.c.l.b16 %v1321
        %v1411 = vunpack.c.h.b16 %v1321
        %v1412 = vunpack.c.l.b16 %v1322
        %v1413 = vunpack.c.h.b16 %v1322
        %v1414 = vunpack.c.l.b16 %v1323
        %v1415 = vunpack.c.h.b16 %v1323
        %v1416 = vunpack.c.l.b16 %v1324
        %v1417 = vunpack.c.h.b16 %v1324
        %v1418 = vunpack.c.l.b16 %v1325
        %v1419 = vunpack.c.h.b16 %v1325
        %v1420 = vunpack.c.l.b16 %v1326
        %v1421 = vunpack.c.h.b16 %v1326
        %v1422 = vunpack.c.l.b16 %v1327
        %v1423 = vunpack.c.h.b16 %v1327
        %v1424 = vunpack.c.l.b16 %v1328
        %v1425 = vunpack.c.h.b16 %v1328
        %v1426 = vunpack.c.l.b16 %v1329
        %v1427 = vunpack.c.h.b16 %v1329
        %v1428 = vunpack.c.l.b16 %v1330
        %v1429 = vunpack.c.h.b16 %v1330
        %v1430 = vunpack.c.l.b16 %v1331
        %v1431 = vunpack.c.h.b16 %v1331
        %v1432 = vunpack.c.l.b16 %v1332
        %v1433 = vunpack.c.h.b16 %v1332
        %v1434 = vunpack.c.l.b16 %v1333
        %v1435 = vunpack.c.h.b16 %v1333
        %v1436 = vunpack.c.l.b16 %v1334
        %v1437 = vunpack.c.h.b16 %v1334
        %v1438 = vunpack.c.l.b16 %v1335
        %v1439 = vunpack.c.h.b16 %v1335
        %v1440 = vunpack.c.l.b16 %v1336
        %v1441 = vunpack.c.h.b16 %v1336
        %v1442 = vunpack.c.l.b16 %v1337
        %v1443 = vunpack.c.h.b16 %v1337
        %v1444 = vunpack.c.l.b16 %v1338
        %v1445 = vunpack.c.h.b16 %v1338
        %v1446 = vunpack.c.l.b16 %v1339
        %v1447 = vunpack.c.h.b16 %v1339
        %v1448 = vpack.c.b16 %v1386, %v1384
        %v1449 = vpack.c.b16 %v1387, %v1385
        %v1450 = vpack.c.b16 %v1390, %v1388
        %v1451 = vpack.c.b16 %v1391, %v1389
        %v1452 = vpack.c.b16 %v1394, %v1392
        %v1453 = vpack.c.b16 %v1395, %v1393
        %v1454 = vpack.c.b16 %v1398, %v1396
        %v1455 = vpack.c.b16 %v1399, %v1397
        %v1456 = vpack.c.b16 %v1402, %v1400
        %v1457 = vpack.c.b16 %v1403, %v1401
        %v1458 = vpack.c.b16 %v1406, %v1404
        %v1459 = vpack.c.b16 %v1407, %v1405
        %v1460 = vpack.c.b16 %v1410, %v1408
        %v1461 = vpack.c.b16 %v1411, %v1409
        %v1462 = vpack.c.b16 %v1414, %v1412
        %v1463 = vpack.c.b16 %v1415, %v1413
        %v1464 = vpack.c.b16 %v1418, %v1416
        %v1465 = vpack.c.b16 %v1419, %v1417
        %v1466 = vpack.c.b16 %v1422, %v1420
        %v1467 = vpack.c.b16 %v1423, %v1421
        %v1468 = vpack.c.b16 %v1426, %v1424
        %v1469 = vpack.c.b16 %v1427, %v1425
        %v1470 = vpack.c.b16 %v1430, %v1428
        %v1471 = vpack.c.b16 %v1431, %v1429
        %v1472 = vpack.c.b16 %v1434, %v1432
        %v1473 = vpack.c.b16 %v1435, %v1433
        %v1474 = vpack.c.b16 %v1438, %v1436
        %v1475 = vpack.c.b16 %v1439, %v1437
        %v1476 = vpack.c.b16 %v1442, %v1440
        %v1477 = vpack.c.b16 %v1443, %v1441
        %v1478 = vpack.c.b16 %v1446, %v1444
        %v1479 = vpack.c.b16 %v1447, %v1445
        %1512 = vmatprep.subr.bf16.mxu0 %v1449
        %1513 = vmatpush1.bf16.msra.mxu0 %v1448
        %1514 = vmatprep.subr.bf16.mxu0 %v1451
        %1515 = vmatpush1.bf16.msra.mxu0 %v1450
        %1516 = vmatprep.subr.bf16.mxu0 %v1453
        %1517 = vmatpush1.bf16.msra.mxu0 %v1452
        %1518 = vmatprep.subr.bf16.mxu0 %v1455
        %1519 = vmatpush1.bf16.msra.mxu0 %v1454
        %1520 = vmatprep.subr.bf16.mxu0 %v1457
        %1521 = vmatpush1.bf16.msra.mxu0 %v1456
        %1522 = vmatprep.subr.bf16.mxu0 %v1459
        %1523 = vmatpush1.bf16.msra.mxu0 %v1458
        %1524 = vmatprep.subr.bf16.mxu0 %v1461
        %1525 = vmatpush1.bf16.msra.mxu0 %v1460
        %1526 = vmatprep.subr.bf16.mxu0 %v1463
        %1527 = vmatpush1.bf16.msra.mxu0 %v1462
        %1528 = vmatprep.subr.bf16.mxu0 %v1465
        %1529 = vmatpush1.bf16.msra.mxu0 %v1464
        %1530 = vmatprep.subr.bf16.mxu0 %v1467
        %1531 = vmatpush1.bf16.msra.mxu0 %v1466
        %1532 = vmatprep.subr.bf16.mxu0 %v1469
        %1533 = vmatpush1.bf16.msra.mxu0 %v1468
        %1534 = vmatprep.subr.bf16.mxu0 %v1471
        %1535 = vmatpush1.bf16.msra.mxu0 %v1470
        %1536 = vmatprep.subr.bf16.mxu0 %v1473
        %1537 = vmatpush1.bf16.msra.mxu0 %v1472
        %1538 = vmatprep.subr.bf16.mxu0 %v1475
        %1539 = vmatpush1.bf16.msra.mxu0 %v1474
        %1540 = vmatprep.subr.bf16.mxu0 %v1477
        %1541 = vmatpush1.bf16.msra.mxu0 %v1476
        %1542 = vmatprep.subr.bf16.mxu0 %v1479
        %1543 = vmatpush1.bf16.msra.mxu0 %v1478
        %1544 = vmatprep.mubr.bf16.mxu0 %v1307
        %1545 = vmatmul.mubr.bf16.gmra.mrb[0].mxu0 %v1306
        %v1546 = vpop.f32.mrb[0].mxu0
        %v1547 = vadd.f32 %v1345, %v1546
        %v1548 = vpop.f32.mrb[0].mxu0
        %v1549 = vadd.f32 %v1349, %v1548
        %v1550 = vpop.f32.mrb[0].mxu0
        %v1551 = vpop.f32.mrb[0].mxu0
        %1552 = vdwg.mxu0
        %v1553 = vld [vmem:[%s1034] sm:$0xff]
        %v1554 = vld [vmem:[%s1034 + $0x8] sm:$0xff]
        %v1555 = vld [vmem:[%s1034 + $0x10] sm:$0xff]
        %v1556 = vld [vmem:[%s1034 + $0x18] sm:$0xff]
        %v1557 = vld [vmem:[%s1034 + $0x20] sm:$0xff]
        %v1558 = vld [vmem:[%s1034 + $0x28] sm:$0xff]
        %v1559 = vld [vmem:[%s1034 + $0x30] sm:$0xff]
        %v1560 = vld [vmem:[%s1034 + $0x38] sm:$0xff]
        %v1561 = vld [vmem:[%s1034 + $0x40] sm:$0xff]
        %v1562 = vld [vmem:[%s1034 + $0x48] sm:$0xff]
        %v1563 = vld [vmem:[%s1034 + $0x50] sm:$0xff]
        %v1564 = vld [vmem:[%s1034 + $0x58] sm:$0xff]
        %v1565 = vld [vmem:[%s1034 + $0x60] sm:$0xff]
        %v1566 = vld [vmem:[%s1034 + $0x68] sm:$0xff]
        %v1567 = vld [vmem:[%s1034 + $0x70] sm:$0xff]
        %v1568 = vld [vmem:[%s1034 + $0x78] sm:$0xff]
        %v1569 = vld [vmem:[%s1034 + $0x80] sm:$0xff]
        %v1570 = vld [vmem:[%s1034 + $0x88] sm:$0xff]
        %v1571 = vld [vmem:[%s1034 + $0x90] sm:$0xff]
        %v1572 = vld [vmem:[%s1034 + $0x98] sm:$0xff]
        %v1573 = vld [vmem:[%s1034 + $0xa0] sm:$0xff]
        %v1574 = vld [vmem:[%s1034 + $0xa8] sm:$0xff]
        %v1575 = vld [vmem:[%s1034 + $0xb0] sm:$0xff]
        %v1576 = vld [vmem:[%s1034 + $0xb8] sm:$0xff]
        %v1577 = vld [vmem:[%s1034 + $0xc0] sm:$0xff]
        %v1578 = vld [vmem:[%s1034 + $0xc8] sm:$0xff]
        %v1579 = vld [vmem:[%s1034 + $0xd0] sm:$0xff]
        %v1580 = vld [vmem:[%s1034 + $0xd8] sm:$0xff]
        %v1581 = vld [vmem:[%s1034 + $0xe0] sm:$0xff]
        %v1582 = vld [vmem:[%s1034 + $0xe8] sm:$0xff]
        %v1583 = vld [vmem:[%s1034 + $0xf0] sm:$0xff]
        %v1584 = vld [vmem:[%s1034 + $0xf8] sm:$0xff]
        %v1585 = vld [vmem:[%s1043] sm:$0x3]
        %v1587 = vlaneseq
        %v1588 = vshrl.u32 %v1587, 7
        %v1589 = vsub.s32 0, %v1588
        %v1590 = vrot.slane %v1585, %v1589
        %v1591 = vlaneseq
        %v1592 = vshrl.u32 %v1591, 7
        %v1593 = vsub.s32 1, %v1592
        %v1594 = vrot.slane %v1585, %v1593
        %v1629 = vunpack.c.l.b16 %v1553
        %v1630 = vunpack.c.h.b16 %v1553
        %v1631 = vunpack.c.l.b16 %v1554
        %v1632 = vunpack.c.h.b16 %v1554
        %v1633 = vunpack.c.l.b16 %v1555
        %v1634 = vunpack.c.h.b16 %v1555
        %v1635 = vunpack.c.l.b16 %v1556
        %v1636 = vunpack.c.h.b16 %v1556
        %v1637 = vunpack.c.l.b16 %v1557
        %v1638 = vunpack.c.h.b16 %v1557
        %v1639 = vunpack.c.l.b16 %v1558
        %v1640 = vunpack.c.h.b16 %v1558
        %v1641 = vunpack.c.l.b16 %v1559
        %v1642 = vunpack.c.h.b16 %v1559
        %v1643 = vunpack.c.l.b16 %v1560
        %v1644 = vunpack.c.h.b16 %v1560
        %v1645 = vunpack.c.l.b16 %v1561
        %v1646 = vunpack.c.h.b16 %v1561
        %v1647 = vunpack.c.l.b16 %v1562
        %v1648 = vunpack.c.h.b16 %v1562
        %v1649 = vunpack.c.l.b16 %v1563
        %v1650 = vunpack.c.h.b16 %v1563
        %v1651 = vunpack.c.l.b16 %v1564
        %v1652 = vunpack.c.h.b16 %v1564
        %v1653 = vunpack.c.l.b16 %v1565
        %v1654 = vunpack.c.h.b16 %v1565
        %v1655 = vunpack.c.l.b16 %v1566
        %v1656 = vunpack.c.h.b16 %v1566
        %v1657 = vunpack.c.l.b16 %v1567
        %v1658 = vunpack.c.h.b16 %v1567
        %v1659 = vunpack.c.l.b16 %v1568
        %v1660 = vunpack.c.h.b16 %v1568
        %v1661 = vunpack.c.l.b16 %v1569
        %v1662 = vunpack.c.h.b16 %v1569
        %v1663 = vunpack.c.l.b16 %v1570
        %v1664 = vunpack.c.h.b16 %v1570
        %v1665 = vunpack.c.l.b16 %v1571
        %v1666 = vunpack.c.h.b16 %v1571
        %v1667 = vunpack.c.l.b16 %v1572
        %v1668 = vunpack.c.h.b16 %v1572
        %v1669 = vunpack.c.l.b16 %v1573
        %v1670 = vunpack.c.h.b16 %v1573
        %v1671 = vunpack.c.l.b16 %v1574
        %v1672 = vunpack.c.h.b16 %v1574
        %v1673 = vunpack.c.l.b16 %v1575
        %v1674 = vunpack.c.h.b16 %v1575
        %v1675 = vunpack.c.l.b16 %v1576
        %v1676 = vunpack.c.h.b16 %v1576
        %v1677 = vunpack.c.l.b16 %v1577
        %v1678 = vunpack.c.h.b16 %v1577
        %v1679 = vunpack.c.l.b16 %v1578
        %v1680 = vunpack.c.h.b16 %v1578
        %v1681 = vunpack.c.l.b16 %v1579
        %v1682 = vunpack.c.h.b16 %v1579
        %v1683 = vunpack.c.l.b16 %v1580
        %v1684 = vunpack.c.h.b16 %v1580
        %v1685 = vunpack.c.l.b16 %v1581
        %v1686 = vunpack.c.h.b16 %v1581
        %v1687 = vunpack.c.l.b16 %v1582
        %v1688 = vunpack.c.h.b16 %v1582
        %v1689 = vunpack.c.l.b16 %v1583
        %v1690 = vunpack.c.h.b16 %v1583
        %v1691 = vunpack.c.l.b16 %v1584
        %v1692 = vunpack.c.h.b16 %v1584
        %v1693 = vpack.c.b16 %v1631, %v1629
        %v1694 = vpack.c.b16 %v1632, %v1630
        %v1695 = vpack.c.b16 %v1635, %v1633
        %v1696 = vpack.c.b16 %v1636, %v1634
        %v1697 = vpack.c.b16 %v1639, %v1637
        %v1698 = vpack.c.b16 %v1640, %v1638
        %v1699 = vpack.c.b16 %v1643, %v1641
        %v1700 = vpack.c.b16 %v1644, %v1642
        %v1701 = vpack.c.b16 %v1647, %v1645
        %v1702 = vpack.c.b16 %v1648, %v1646
        %v1703 = vpack.c.b16 %v1651, %v1649
        %v1704 = vpack.c.b16 %v1652, %v1650
        %v1705 = vpack.c.b16 %v1655, %v1653
        %v1706 = vpack.c.b16 %v1656, %v1654
        %v1707 = vpack.c.b16 %v1659, %v1657
        %v1708 = vpack.c.b16 %v1660, %v1658
        %v1709 = vpack.c.b16 %v1663, %v1661
        %v1710 = vpack.c.b16 %v1664, %v1662
        %v1711 = vpack.c.b16 %v1667, %v1665
        %v1712 = vpack.c.b16 %v1668, %v1666
        %v1713 = vpack.c.b16 %v1671, %v1669
        %v1714 = vpack.c.b16 %v1672, %v1670
        %v1715 = vpack.c.b16 %v1675, %v1673
        %v1716 = vpack.c.b16 %v1676, %v1674
        %v1717 = vpack.c.b16 %v1679, %v1677
        %v1718 = vpack.c.b16 %v1680, %v1678
        %v1719 = vpack.c.b16 %v1683, %v1681
        %v1720 = vpack.c.b16 %v1684, %v1682
        %v1721 = vpack.c.b16 %v1687, %v1685
        %v1722 = vpack.c.b16 %v1688, %v1686
        %v1723 = vpack.c.b16 %v1691, %v1689
        %v1724 = vpack.c.b16 %v1692, %v1690
        %1757 = vmatprep.subr.bf16.mxu0 %v1694
        %1758 = vmatpush1.bf16.msra.mxu0 %v1693
        %1759 = vmatprep.subr.bf16.mxu0 %v1696
        %1760 = vmatpush1.bf16.msra.mxu0 %v1695
        %1761 = vmatprep.subr.bf16.mxu0 %v1698
        %1762 = vmatpush1.bf16.msra.mxu0 %v1697
        %1763 = vmatprep.subr.bf16.mxu0 %v1700
        %1764 = vmatpush1.bf16.msra.mxu0 %v1699
        %1765 = vmatprep.subr.bf16.mxu0 %v1702
        %1766 = vmatpush1.bf16.msra.mxu0 %v1701
        %1767 = vmatprep.subr.bf16.mxu0 %v1704
        %1768 = vmatpush1.bf16.msra.mxu0 %v1703
        %1769 = vmatprep.subr.bf16.mxu0 %v1706
        %1770 = vmatpush1.bf16.msra.mxu0 %v1705
        %1771 = vmatprep.subr.bf16.mxu0 %v1708
        %1772 = vmatpush1.bf16.msra.mxu0 %v1707
        %1773 = vmatprep.subr.bf16.mxu0 %v1710
        %1774 = vmatpush1.bf16.msra.mxu0 %v1709
        %1775 = vmatprep.subr.bf16.mxu0 %v1712
        %1776 = vmatpush1.bf16.msra.mxu0 %v1711
        %1777 = vmatprep.subr.bf16.mxu0 %v1714
        %1778 = vmatpush1.bf16.msra.mxu0 %v1713
        %1779 = vmatprep.subr.bf16.mxu0 %v1716
        %1780 = vmatpush1.bf16.msra.mxu0 %v1715
        %1781 = vmatprep.subr.bf16.mxu0 %v1718
        %1782 = vmatpush1.bf16.msra.mxu0 %v1717
        %1783 = vmatprep.subr.bf16.mxu0 %v1720
        %1784 = vmatpush1.bf16.msra.mxu0 %v1719
        %1785 = vmatprep.subr.bf16.mxu0 %v1722
        %1786 = vmatpush1.bf16.msra.mxu0 %v1721
        %1787 = vmatprep.subr.bf16.mxu0 %v1724
        %1788 = vmatpush1.bf16.msra.mxu0 %v1723
        %1789 = vmatprep.mubr.bf16.mxu0 %v1307
        %1790 = vmatmul.mubr.bf16.gmra.mrb[0].mxu0 %v1306
        %v1791 = vpop.f32.mrb[0].mxu0
        %v1792 = vadd.f32 %v1590, %v1791
        %v1793 = vpop.f32.mrb[0].mxu0
        %v1794 = vadd.f32 %v1594, %v1793
        %v1795 = vpop.f32.mrb[0].mxu0
        %v1796 = vpop.f32.mrb[0].mxu0
        %1797 = vdwg.mxu0
        %v1798 = vld [vmem:[%s1052] sm:$0xff]
        %v1799 = vld [vmem:[%s1052 + $0x8] sm:$0xff]
        %v1800 = vld [vmem:[%s1052 + $0x10] sm:$0xff]
        %v1801 = vld [vmem:[%s1052 + $0x18] sm:$0xff]
        %v1802 = vld [vmem:[%s1052 + $0x20] sm:$0xff]
        %v1803 = vld [vmem:[%s1052 + $0x28] sm:$0xff]
        %v1804 = vld [vmem:[%s1052 + $0x30] sm:$0xff]
        %v1805 = vld [vmem:[%s1052 + $0x38] sm:$0xff]
        %v1806 = vld [vmem:[%s1052 + $0x40] sm:$0xff]
        %v1807 = vld [vmem:[%s1052 + $0x48] sm:$0xff]
        %v1808 = vld [vmem:[%s1052 + $0x50] sm:$0xff]
        %v1809 = vld [vmem:[%s1052 + $0x58] sm:$0xff]
        %v1810 = vld [vmem:[%s1052 + $0x60] sm:$0xff]
        %v1811 = vld [vmem:[%s1052 + $0x68] sm:$0xff]
        %v1812 = vld [vmem:[%s1052 + $0x70] sm:$0xff]
        %v1813 = vld [vmem:[%s1052 + $0x78] sm:$0xff]
        %v1814 = vld [vmem:[%s1052 + $0x80] sm:$0xff]
        %v1815 = vld [vmem:[%s1052 + $0x88] sm:$0xff]
        %v1816 = vld [vmem:[%s1052 + $0x90] sm:$0xff]
        %v1817 = vld [vmem:[%s1052 + $0x98] sm:$0xff]
        %v1818 = vld [vmem:[%s1052 + $0xa0] sm:$0xff]
        %v1819 = vld [vmem:[%s1052 + $0xa8] sm:$0xff]
        %v1820 = vld [vmem:[%s1052 + $0xb0] sm:$0xff]
        %v1821 = vld [vmem:[%s1052 + $0xb8] sm:$0xff]
        %v1822 = vld [vmem:[%s1052 + $0xc0] sm:$0xff]
        %v1823 = vld [vmem:[%s1052 + $0xc8] sm:$0xff]
        %v1824 = vld [vmem:[%s1052 + $0xd0] sm:$0xff]
        %v1825 = vld [vmem:[%s1052 + $0xd8] sm:$0xff]
        %v1826 = vld [vmem:[%s1052 + $0xe0] sm:$0xff]
        %v1827 = vld [vmem:[%s1052 + $0xe8] sm:$0xff]
        %v1828 = vld [vmem:[%s1052 + $0xf0] sm:$0xff]
        %v1829 = vld [vmem:[%s1052 + $0xf8] sm:$0xff]
        %v1830 = vld [vmem:[%s1061] sm:$0x3]
        %v1832 = vlaneseq
        %v1833 = vshrl.u32 %v1832, 7
        %v1834 = vsub.s32 0, %v1833
        %v1835 = vrot.slane %v1830, %v1834
        %v1836 = vlaneseq
        %v1837 = vshrl.u32 %v1836, 7
        %v1838 = vsub.s32 1, %v1837
        %v1839 = vrot.slane %v1830, %v1838
        %v1874 = vunpack.c.l.b16 %v1798
        %v1875 = vunpack.c.h.b16 %v1798
        %v1876 = vunpack.c.l.b16 %v1799
        %v1877 = vunpack.c.h.b16 %v1799
        %v1878 = vunpack.c.l.b16 %v1800
        %v1879 = vunpack.c.h.b16 %v1800
        %v1880 = vunpack.c.l.b16 %v1801
        %v1881 = vunpack.c.h.b16 %v1801
        %v1882 = vunpack.c.l.b16 %v1802
        %v1883 = vunpack.c.h.b16 %v1802
        %v1884 = vunpack.c.l.b16 %v1803
        %v1885 = vunpack.c.h.b16 %v1803
        %v1886 = vunpack.c.l.b16 %v1804
        %v1887 = vunpack.c.h.b16 %v1804
        %v1888 = vunpack.c.l.b16 %v1805
        %v1889 = vunpack.c.h.b16 %v1805
        %v1890 = vunpack.c.l.b16 %v1806
        %v1891 = vunpack.c.h.b16 %v1806
        %v1892 = vunpack.c.l.b16 %v1807
        %v1893 = vunpack.c.h.b16 %v1807
        %v1894 = vunpack.c.l.b16 %v1808
        %v1895 = vunpack.c.h.b16 %v1808
        %v1896 = vunpack.c.l.b16 %v1809
        %v1897 = vunpack.c.h.b16 %v1809
        %v1898 = vunpack.c.l.b16 %v1810
        %v1899 = vunpack.c.h.b16 %v1810
        %v1900 = vunpack.c.l.b16 %v1811
        %v1901 = vunpack.c.h.b16 %v1811
        %v1902 = vunpack.c.l.b16 %v1812
        %v1903 = vunpack.c.h.b16 %v1812
        %v1904 = vunpack.c.l.b16 %v1813
        %v1905 = vunpack.c.h.b16 %v1813
        %v1906 = vunpack.c.l.b16 %v1814
        %v1907 = vunpack.c.h.b16 %v1814
        %v1908 = vunpack.c.l.b16 %v1815
        %v1909 = vunpack.c.h.b16 %v1815
        %v1910 = vunpack.c.l.b16 %v1816
        %v1911 = vunpack.c.h.b16 %v1816
        %v1912 = vunpack.c.l.b16 %v1817
        %v1913 = vunpack.c.h.b16 %v1817
        %v1914 = vunpack.c.l.b16 %v1818
        %v1915 = vunpack.c.h.b16 %v1818
        %v1916 = vunpack.c.l.b16 %v1819
        %v1917 = vunpack.c.h.b16 %v1819
        %v1918 = vunpack.c.l.b16 %v1820
        %v1919 = vunpack.c.h.b16 %v1820
        %v1920 = vunpack.c.l.b16 %v1821
        %v1921 = vunpack.c.h.b16 %v1821
        %v1922 = vunpack.c.l.b16 %v1822
        %v1923 = vunpack.c.h.b16 %v1822
        %v1924 = vunpack.c.l.b16 %v1823
        %v1925 = vunpack.c.h.b16 %v1823
        %v1926 = vunpack.c.l.b16 %v1824
        %v1927 = vunpack.c.h.b16 %v1824
        %v1928 = vunpack.c.l.b16 %v1825
        %v1929 = vunpack.c.h.b16 %v1825
        %v1930 = vunpack.c.l.b16 %v1826
        %v1931 = vunpack.c.h.b16 %v1826
        %v1932 = vunpack.c.l.b16 %v1827
        %v1933 = vunpack.c.h.b16 %v1827
        %v1934 = vunpack.c.l.b16 %v1828
        %v1935 = vunpack.c.h.b16 %v1828
        %v1936 = vunpack.c.l.b16 %v1829
        %v1937 = vunpack.c.h.b16 %v1829
        %v1938 = vpack.c.b16 %v1876, %v1874
        %v1939 = vpack.c.b16 %v1877, %v1875
        %v1940 = vpack.c.b16 %v1880, %v1878
        %v1941 = vpack.c.b16 %v1881, %v1879
        %v1942 = vpack.c.b16 %v1884, %v1882
        %v1943 = vpack.c.b16 %v1885, %v1883
        %v1944 = vpack.c.b16 %v1888, %v1886
        %v1945 = vpack.c.b16 %v1889, %v1887
        %v1946 = vpack.c.b16 %v1892, %v1890
        %v1947 = vpack.c.b16 %v1893, %v1891
        %v1948 = vpack.c.b16 %v1896, %v1894
        %v1949 = vpack.c.b16 %v1897, %v1895
        %v1950 = vpack.c.b16 %v1900, %v1898
        %v1951 = vpack.c.b16 %v1901, %v1899
        %v1952 = vpack.c.b16 %v1904, %v1902
        %v1953 = vpack.c.b16 %v1905, %v1903
        %v1954 = vpack.c.b16 %v1908, %v1906
        %v1955 = vpack.c.b16 %v1909, %v1907
        %v1956 = vpack.c.b16 %v1912, %v1910
        %v1957 = vpack.c.b16 %v1913, %v1911
        %v1958 = vpack.c.b16 %v1916, %v1914
        %v1959 = vpack.c.b16 %v1917, %v1915
        %v1960 = vpack.c.b16 %v1920, %v1918
        %v1961 = vpack.c.b16 %v1921, %v1919
        %v1962 = vpack.c.b16 %v1924, %v1922
        %v1963 = vpack.c.b16 %v1925, %v1923
        %v1964 = vpack.c.b16 %v1928, %v1926
        %v1965 = vpack.c.b16 %v1929, %v1927
        %v1966 = vpack.c.b16 %v1932, %v1930
        %v1967 = vpack.c.b16 %v1933, %v1931
        %v1968 = vpack.c.b16 %v1936, %v1934
        %v1969 = vpack.c.b16 %v1937, %v1935
        %2002 = vmatprep.subr.bf16.mxu0 %v1939
        %2003 = vmatpush1.bf16.msra.mxu0 %v1938
        %2004 = vmatprep.subr.bf16.mxu0 %v1941
        %2005 = vmatpush1.bf16.msra.mxu0 %v1940
        %2006 = vmatprep.subr.bf16.mxu0 %v1943
        %2007 = vmatpush1.bf16.msra.mxu0 %v1942
        %2008 = vmatprep.subr.bf16.mxu0 %v1945
        %2009 = vmatpush1.bf16.msra.mxu0 %v1944
        %2010 = vmatprep.subr.bf16.mxu0 %v1947
        %2011 = vmatpush1.bf16.msra.mxu0 %v1946
        %2012 = vmatprep.subr.bf16.mxu0 %v1949
        %2013 = vmatpush1.bf16.msra.mxu0 %v1948
        %2014 = vmatprep.subr.bf16.mxu0 %v1951
        %2015 = vmatpush1.bf16.msra.mxu0 %v1950
        %2016 = vmatprep.subr.bf16.mxu0 %v1953
        %2017 = vmatpush1.bf16.msra.mxu0 %v1952
        %2018 = vmatprep.subr.bf16.mxu0 %v1955
        %2019 = vmatpush1.bf16.msra.mxu0 %v1954
        %2020 = vmatprep.subr.bf16.mxu0 %v1957
        %2021 = vmatpush1.bf16.msra.mxu0 %v1956
        %2022 = vmatprep.subr.bf16.mxu0 %v1959
        %2023 = vmatpush1.bf16.msra.mxu0 %v1958
        %2024 = vmatprep.subr.bf16.mxu0 %v1961
        %2025 = vmatpush1.bf16.msra.mxu0 %v1960
        %2026 = vmatprep.subr.bf16.mxu0 %v1963
        %2027 = vmatpush1.bf16.msra.mxu0 %v1962
        %2028 = vmatprep.subr.bf16.mxu0 %v1965
        %2029 = vmatpush1.bf16.msra.mxu0 %v1964
        %2030 = vmatprep.subr.bf16.mxu0 %v1967
        %2031 = vmatpush1.bf16.msra.mxu0 %v1966
        %2032 = vmatprep.subr.bf16.mxu0 %v1969
        %2033 = vmatpush1.bf16.msra.mxu0 %v1968
        %2034 = vmatprep.mubr.bf16.mxu0 %v1307
        %2035 = vmatmul.mubr.bf16.gmra.mrb[0].mxu0 %v1306
        %v2036 = vpop.f32.mrb[0].mxu0
        %v2037 = vadd.f32 %v1835, %v2036
        %v2038 = vpop.f32.mrb[0].mxu0
        %v2039 = vadd.f32 %v1839, %v2038
        %v2040 = vpop.f32.mrb[0].mxu0
        %v2041 = vpop.f32.mrb[0].mxu0
        %2042 = vdwg.mxu0
        %v2043 = vcombine.high %v1547, 0.0
        %v2045 = vunpack.c.l.s4 1983009808
        %v2046 = vunpack.c.0.s8 %v2045
        %v2047 = vlaneseq
        %v2048 = vshrl.u32 %v2047, 7
        %v2049 = vsub.s32 %v2046, %v2048
        %v2050 = vrot.slane %v1547, %v2049
        %v2052 = vunpack.c.l.s4 1983009808
        %v2053 = vunpack.c.0.s8 %v2052
        %v2054 = vlaneseq
        %v2055 = vshrl.u32 %v2054, 7
        %v2056 = vsub.s32 %v2053, %v2055
        %v2057 = vrot.slane %v2043, %v2056
        %v2058 = vcombine.high %v1549, 0.0
        %v2060 = vunpack.c.l.s4 1983009808
        %v2061 = vunpack.c.0.s8 %v2060
        %v2062 = vlaneseq
        %v2063 = vshrl.u32 %v2062, 7
        %v2064 = vsub.s32 %v2061, %v2063
        %v2065 = vrot.slane %v1549, %v2064
        %v2067 = vunpack.c.l.s4 1983009808
        %v2068 = vunpack.c.0.s8 %v2067
        %v2069 = vlaneseq
        %v2070 = vshrl.u32 %v2069, 7
        %v2071 = vsub.s32 %v2068, %v2070
        %v2072 = vrot.slane %v2058, %v2071
        %v2073 = vcombine.low %v2050, %v2065
        %v2074 = vcombine.high %v2050, %v2065
        %v2076 = vunpack.c.l.s4 1934713408
        %v2077 = vunpack.c.0.s8 %v2076
        %v2078 = vlaneseq
        %v2079 = vshrl.u32 %v2078, 7
        %v2080 = vsub.s32 %v2077, %v2079
        %v2081 = vrot.slane %v2073, %v2080
        %v2083 = vunpack.c.l.s4 1934713408
        %v2084 = vunpack.c.0.s8 %v2083
        %v2085 = vlaneseq
        %v2086 = vshrl.u32 %v2085, 7
        %v2087 = vsub.s32 %v2084, %v2086
        %v2088 = vrot.slane %v2074, %v2087
        %v2089 = vcombine.low %v2057, %v2072
        %v2090 = vcombine.high %v2057, %v2072
        %v2092 = vunpack.c.l.s4 1934713408
        %v2093 = vunpack.c.0.s8 %v2092
        %v2094 = vlaneseq
        %v2095 = vshrl.u32 %v2094, 7
        %v2096 = vsub.s32 %v2093, %v2095
        %v2097 = vrot.slane %v2089, %v2096
        %v2099 = vunpack.c.l.s4 1934713408
        %v2100 = vunpack.c.0.s8 %v2099
        %v2101 = vlaneseq
        %v2102 = vshrl.u32 %v2101, 7
        %v2103 = vsub.s32 %v2100, %v2102
        %v2104 = vrot.slane %v2090, %v2103
        %v2105 = vcombine.high %v2081, 0.0
        %v2106 = vcombine.high %v2088, 0.0
        %v2107 = vcombine.high %v2097, 0.0
        %v2108 = vcombine.high %v2104, 0.0
        %v2109 = vcombine.low %v2081, %v2088
        %v2111 = vunpack.c.l.s4 1983009808
        %v2112 = vunpack.c.0.s8 %v2111
        %v2113 = vlaneseq
        %v2114 = vshrl.u32 %v2113, 7
        %v2115 = vsub.s32 %v2112, %v2114
        %v2116 = vrot.slane %v2109, %v2115
        %v2117 = vcombine.low %v2105, %v2106
        %v2119 = vunpack.c.l.s4 1983009808
        %v2120 = vunpack.c.0.s8 %v2119
        %v2121 = vlaneseq
        %v2122 = vshrl.u32 %v2121, 7
        %v2123 = vsub.s32 %v2120, %v2122
        %v2124 = vrot.slane %v2117, %v2123
        %v2125 = vcombine.low %v2097, %v2104
        %v2127 = vunpack.c.l.s4 1983009808
        %v2128 = vunpack.c.0.s8 %v2127
        %v2129 = vlaneseq
        %v2130 = vshrl.u32 %v2129, 7
        %v2131 = vsub.s32 %v2128, %v2130
        %v2132 = vrot.slane %v2125, %v2131
        %v2133 = vcombine.low %v2107, %v2108
        %v2135 = vunpack.c.l.s4 1983009808
        %v2136 = vunpack.c.0.s8 %v2135
        %v2137 = vlaneseq
        %v2138 = vshrl.u32 %v2137, 7
        %v2139 = vsub.s32 %v2136, %v2138
        %v2140 = vrot.slane %v2133, %v2139
        %v2141 = vcombine.low %v2116, %v2124
        %v2143 = vunpack.c.l.s4 1934713408
        %v2144 = vunpack.c.0.s8 %v2143
        %v2145 = vlaneseq
        %v2146 = vshrl.u32 %v2145, 7
        %v2147 = vsub.s32 %v2144, %v2146
        %v2148 = vrot.slane %v2141, %v2147
        %v2149 = vcombine.low %v2132, %v2140
        %v2151 = vunpack.c.l.s4 1934713408
        %v2152 = vunpack.c.0.s8 %v2151
        %v2153 = vlaneseq
        %v2154 = vshrl.u32 %v2153, 7
        %v2155 = vsub.s32 %v2152, %v2154
        %v2156 = vrot.slane %v2149, %v2155
        %v2157 = vcombine.low %v2148, %v2156
        %v2158 = vcombine.high %v2148, %v2156
        %v2159 = vpack.c.bf16 %v2157, %v2157
        %v2160 = vpack.c.bf16 %v2158, %v2158
        %v2161 = vcombine.high %v1792, 0.0
        %v2163 = vunpack.c.l.s4 1983009808
        %v2164 = vunpack.c.0.s8 %v2163
        %v2165 = vlaneseq
        %v2166 = vshrl.u32 %v2165, 7
        %v2167 = vsub.s32 %v2164, %v2166
        %v2168 = vrot.slane %v1792, %v2167
        %v2170 = vunpack.c.l.s4 1983009808
        %v2171 = vunpack.c.0.s8 %v2170
        %v2172 = vlaneseq
        %v2173 = vshrl.u32 %v2172, 7
        %v2174 = vsub.s32 %v2171, %v2173
        %v2175 = vrot.slane %v2161, %v2174
        %v2176 = vcombine.high %v1794, 0.0
        %v2178 = vunpack.c.l.s4 1983009808
        %v2179 = vunpack.c.0.s8 %v2178
        %v2180 = vlaneseq
        %v2181 = vshrl.u32 %v2180, 7
        %v2182 = vsub.s32 %v2179, %v2181
        %v2183 = vrot.slane %v1794, %v2182
        %v2185 = vunpack.c.l.s4 1983009808
        %v2186 = vunpack.c.0.s8 %v2185
        %v2187 = vlaneseq
        %v2188 = vshrl.u32 %v2187, 7
        %v2189 = vsub.s32 %v2186, %v2188
        %v2190 = vrot.slane %v2176, %v2189
        %v2191 = vcombine.low %v2168, %v2183
        %v2192 = vcombine.high %v2168, %v2183
        %v2194 = vunpack.c.l.s4 1934713408
        %v2195 = vunpack.c.0.s8 %v2194
        %v2196 = vlaneseq
        %v2197 = vshrl.u32 %v2196, 7
        %v2198 = vsub.s32 %v2195, %v2197
        %v2199 = vrot.slane %v2191, %v2198
        %v2201 = vunpack.c.l.s4 1934713408
        %v2202 = vunpack.c.0.s8 %v2201
        %v2203 = vlaneseq
        %v2204 = vshrl.u32 %v2203, 7
        %v2205 = vsub.s32 %v2202, %v2204
        %v2206 = vrot.slane %v2192, %v2205
        %v2207 = vcombine.low %v2175, %v2190
        %v2208 = vcombine.high %v2175, %v2190
        %v2210 = vunpack.c.l.s4 1934713408
        %v2211 = vunpack.c.0.s8 %v2210
        %v2212 = vlaneseq
        %v2213 = vshrl.u32 %v2212, 7
        %v2214 = vsub.s32 %v2211, %v2213
        %v2215 = vrot.slane %v2207, %v2214
        %v2217 = vunpack.c.l.s4 1934713408
        %v2218 = vunpack.c.0.s8 %v2217
        %v2219 = vlaneseq
        %v2220 = vshrl.u32 %v2219, 7
        %v2221 = vsub.s32 %v2218, %v2220
        %v2222 = vrot.slane %v2208, %v2221
        %v2223 = vcombine.high %v2199, 0.0
        %v2224 = vcombine.high %v2206, 0.0
        %v2225 = vcombine.high %v2215, 0.0
        %v2226 = vcombine.high %v2222, 0.0
        %v2227 = vcombine.low %v2199, %v2206
        %v2229 = vunpack.c.l.s4 1983009808
        %v2230 = vunpack.c.0.s8 %v2229
        %v2231 = vlaneseq
        %v2232 = vshrl.u32 %v2231, 7
        %v2233 = vsub.s32 %v2230, %v2232
        %v2234 = vrot.slane %v2227, %v2233
        %v2235 = vcombine.low %v2223, %v2224
        %v2237 = vunpack.c.l.s4 1983009808
        %v2238 = vunpack.c.0.s8 %v2237
        %v2239 = vlaneseq
        %v2240 = vshrl.u32 %v2239, 7
        %v2241 = vsub.s32 %v2238, %v2240
        %v2242 = vrot.slane %v2235, %v2241
        %v2243 = vcombine.low %v2215, %v2222
        %v2245 = vunpack.c.l.s4 1983009808
        %v2246 = vunpack.c.0.s8 %v2245
        %v2247 = vlaneseq
        %v2248 = vshrl.u32 %v2247, 7
        %v2249 = vsub.s32 %v2246, %v2248
        %v2250 = vrot.slane %v2243, %v2249
        %v2251 = vcombine.low %v2225, %v2226
        %v2253 = vunpack.c.l.s4 1983009808
        %v2254 = vunpack.c.0.s8 %v2253
        %v2255 = vlaneseq
        %v2256 = vshrl.u32 %v2255, 7
        %v2257 = vsub.s32 %v2254, %v2256
        %v2258 = vrot.slane %v2251, %v2257
        %v2259 = vcombine.low %v2234, %v2242
        %v2261 = vunpack.c.l.s4 1934713408
        %v2262 = vunpack.c.0.s8 %v2261
        %v2263 = vlaneseq
        %v2264 = vshrl.u32 %v2263, 7
        %v2265 = vsub.s32 %v2262, %v2264
        %v2266 = vrot.slane %v2259, %v2265
        %v2267 = vcombine.low %v2250, %v2258
        %v2269 = vunpack.c.l.s4 1934713408
        %v2270 = vunpack.c.0.s8 %v2269
        %v2271 = vlaneseq
        %v2272 = vshrl.u32 %v2271, 7
        %v2273 = vsub.s32 %v2270, %v2272
        %v2274 = vrot.slane %v2267, %v2273
        %v2275 = vcombine.low %v2266, %v2274
        %v2276 = vcombine.high %v2266, %v2274
        %v2277 = vpack.c.bf16 %v2275, %v2275
        %v2278 = vpack.c.bf16 %v2276, %v2276
        %2279 = vst [vmem:[#allocation3] sm:$0xf] %v2277
        %2280 = vst [vmem:[#allocation3 + $0x4] sm:$0xf] %v2278
        %v2281 = vcombine.high %v2037, 0.0
        %v2283 = vunpack.c.l.s4 1983009808
        %v2284 = vunpack.c.0.s8 %v2283
        %v2285 = vlaneseq
        %v2286 = vshrl.u32 %v2285, 7
        %v2287 = vsub.s32 %v2284, %v2286
        %v2288 = vrot.slane %v2037, %v2287
        %v2290 = vunpack.c.l.s4 1983009808
        %v2291 = vunpack.c.0.s8 %v2290
        %v2292 = vlaneseq
        %v2293 = vshrl.u32 %v2292, 7
        %v2294 = vsub.s32 %v2291, %v2293
        %v2295 = vrot.slane %v2281, %v2294
        %v2296 = vcombine.high %v2039, 0.0
        %v2298 = vunpack.c.l.s4 1983009808
        %v2299 = vunpack.c.0.s8 %v2298
        %v2300 = vlaneseq
        %v2301 = vshrl.u32 %v2300, 7
        %v2302 = vsub.s32 %v2299, %v2301
        %v2303 = vrot.slane %v2039, %v2302
        %v2305 = vunpack.c.l.s4 1983009808
        %v2306 = vunpack.c.0.s8 %v2305
        %v2307 = vlaneseq
        %v2308 = vshrl.u32 %v2307, 7
        %v2309 = vsub.s32 %v2306, %v2308
        %v2310 = vrot.slane %v2296, %v2309
        %v2311 = vcombine.low %v2288, %v2303
        %v2312 = vcombine.high %v2288, %v2303
        %v2314 = vunpack.c.l.s4 1934713408
        %v2315 = vunpack.c.0.s8 %v2314
        %v2316 = vlaneseq
        %v2317 = vshrl.u32 %v2316, 7
        %v2318 = vsub.s32 %v2315, %v2317
        %v2319 = vrot.slane %v2311, %v2318
        %v2321 = vunpack.c.l.s4 1934713408
        %v2322 = vunpack.c.0.s8 %v2321
        %v2323 = vlaneseq
        %v2324 = vshrl.u32 %v2323, 7
        %v2325 = vsub.s32 %v2322, %v2324
        %v2326 = vrot.slane %v2312, %v2325
        %v2327 = vcombine.low %v2295, %v2310
        %v2328 = vcombine.high %v2295, %v2310
        %v2330 = vunpack.c.l.s4 1934713408
        %v2331 = vunpack.c.0.s8 %v2330
        %v2332 = vlaneseq
        %v2333 = vshrl.u32 %v2332, 7
        %v2334 = vsub.s32 %v2331, %v2333
        %v2335 = vrot.slane %v2327, %v2334
        %v2337 = vunpack.c.l.s4 1934713408
        %v2338 = vunpack.c.0.s8 %v2337
        %v2339 = vlaneseq
        %v2340 = vshrl.u32 %v2339, 7
        %v2341 = vsub.s32 %v2338, %v2340
        %v2342 = vrot.slane %v2328, %v2341
        %v2343 = vcombine.high %v2319, 0.0
        %v2344 = vcombine.high %v2326, 0.0
        %v2345 = vcombine.high %v2335, 0.0
        %v2346 = vcombine.high %v2342, 0.0
        %v2347 = vcombine.low %v2319, %v2326
        %v2349 = vunpack.c.l.s4 1983009808
        %v2350 = vunpack.c.0.s8 %v2349
        %v2351 = vlaneseq
        %v2352 = vshrl.u32 %v2351, 7
        %v2353 = vsub.s32 %v2350, %v2352
        %v2354 = vrot.slane %v2347, %v2353
        %v2355 = vcombine.low %v2343, %v2344
        %v2357 = vunpack.c.l.s4 1983009808
        %v2358 = vunpack.c.0.s8 %v2357
        %v2359 = vlaneseq
        %v2360 = vshrl.u32 %v2359, 7
        %v2361 = vsub.s32 %v2358, %v2360
        %v2362 = vrot.slane %v2355, %v2361
        %v2363 = vcombine.low %v2335, %v2342
        %v2365 = vunpack.c.l.s4 1983009808
        %v2366 = vunpack.c.0.s8 %v2365
        %v2367 = vlaneseq
        %v2368 = vshrl.u32 %v2367, 7
        %v2369 = vsub.s32 %v2366, %v2368
        %v2370 = vrot.slane %v2363, %v2369
        %v2371 = vcombine.low %v2345, %v2346
        %v2373 = vunpack.c.l.s4 1983009808
        %v2374 = vunpack.c.0.s8 %v2373
        %v2375 = vlaneseq
        %v2376 = vshrl.u32 %v2375, 7
        %v2377 = vsub.s32 %v2374, %v2376
        %v2378 = vrot.slane %v2371, %v2377
        %v2379 = vcombine.low %v2354, %v2362
        %v2381 = vunpack.c.l.s4 1934713408
        %v2382 = vunpack.c.0.s8 %v2381
        %v2383 = vlaneseq
        %v2384 = vshrl.u32 %v2383, 7
        %v2385 = vsub.s32 %v2382, %v2384
        %v2386 = vrot.slane %v2379, %v2385
        %v2387 = vcombine.low %v2370, %v2378
        %v2389 = vunpack.c.l.s4 1934713408
        %v2390 = vunpack.c.0.s8 %v2389
        %v2391 = vlaneseq
        %v2392 = vshrl.u32 %v2391, 7
        %v2393 = vsub.s32 %v2390, %v2392
        %v2394 = vrot.slane %v2387, %v2393
        %v2395 = vcombine.low %v2386, %v2394
        %v2396 = vcombine.high %v2386, %v2394
        %v2397 = vpack.c.bf16 %v2395, %v2395
        %v2398 = vpack.c.bf16 %v2396, %v2396
        %2399 = vst [vmem:[#allocation4] sm:$0xf] %v2397
        %2400 = vst [vmem:[#allocation4 + $0x4] sm:$0xf] %v2398
        %v2401 = vlaneseq
        %v2402 = vshrl.u32 %v2401, 7
        %v2403 = vlaneseq
        %v2404 = vand.u32 %v2403, 127
        %v2405 = vld [vmem:[#allocation3] sm:$0xf]
        %v2406 = vld [vmem:[#allocation3 + $0x4] sm:$0xf]
        %v2407 = vld [vmem:[#allocation4] sm:$0xf]
        %v2408 = vld [vmem:[#allocation4 + $0x4] sm:$0xf]
        %v2409 = vld [vmem:[%s998] sm:$0x1]
        %2410 = vmatprep.subr.bf16.mxu0 0
        %2411 = vmatpush1.bf16.xpose.msra.mxu0 %v2405
        %2412 = vmatprep.subr.bf16.mxu0 0
        %2413 = vmatpush1.bf16.xpose.msra.mxu0 0
        %2414 = vmatprep.subr.bf16.mxu0 0
        %2415 = vmatpush1.bf16.xpose.msra.mxu0 0
        %2416 = vmatprep.subr.bf16.mxu0 0
        %2417 = vmatpush1.bf16.xpose.msra.mxu0 0
        %2418 = vmatprep.subr.bf16.mxu0 0
        %2419 = vmatpush1.bf16.xpose.msra.mxu0 0
        %2420 = vmatprep.subr.bf16.mxu0 0
        %2421 = vmatpush1.bf16.xpose.msra.mxu0 0
        %2422 = vmatprep.subr.bf16.mxu0 0
        %2423 = vmatpush1.bf16.xpose.msra.mxu0 0
        %2424 = vmatprep.subr.bf16.mxu0 0
        %2425 = vmatpush1.bf16.xpose.msra.mxu0 0
        %2426 = vmatprep.subr.bf16.mxu0 0
        %2427 = vmatpush1.bf16.xpose.msra.mxu0 0
        %2428 = vmatprep.subr.bf16.mxu0 0
        %2429 = vmatpush1.bf16.xpose.msra.mxu0 0
        %2430 = vmatprep.subr.bf16.mxu0 0
        %2431 = vmatpush1.bf16.xpose.msra.mxu0 0
        %2432 = vmatprep.subr.bf16.mxu0 0
        %2433 = vmatpush1.bf16.xpose.msra.mxu0 0
        %2434 = vmatprep.subr.bf16.mxu0 0
        %2435 = vmatpush1.bf16.xpose.msra.mxu0 0
        %2436 = vmatprep.subr.bf16.mxu0 0
        %2437 = vmatpush1.bf16.xpose.msra.mxu0 0
        %2438 = vmatprep.subr.bf16.mxu0 0
        %2439 = vmatpush1.bf16.xpose.msra.mxu0 0
        %2440 = vmatprep.subr.bf16.mxu0 0
        %2441 = vmatpush1.bf16.xpose.msra.mxu0 0
        %2442 = vmatprep.mubr.bf16.mxu0 0
        %2443 = vmatmul.mubr.bf16.gmra.mrb[0].mxu0 %v2159
        %v2444 = vpop.f32.mrb[0].mxu0
        %v2445 = vadd.f32 0.0, %v2444
        %v2446 = vpop.f32.mrb[0].mxu0
        %v2447 = vpop.f32.mrb[0].mxu0
        %v2448 = vpop.f32.mrb[0].mxu0
        %2449 = vdwg.mxu0
        %2450 = vmatprep.subr.bf16.mxu0 0
        %2451 = vmatpush1.bf16.xpose.msra.mxu0 %v2406
        %2452 = vmatprep.subr.bf16.mxu0 0
        %2453 = vmatpush1.bf16.xpose.msra.mxu0 0
        %2454 = vmatprep.subr.bf16.mxu0 0
        %2455 = vmatpush1.bf16.xpose.msra.mxu0 0
        %2456 = vmatprep.subr.bf16.mxu0 0
        %2457 = vmatpush1.bf16.xpose.msra.mxu0 0
        %2458 = vmatprep.subr.bf16.mxu0 0
        %2459 = vmatpush1.bf16.xpose.msra.mxu0 0
        %2460 = vmatprep.subr.bf16.mxu0 0
        %2461 = vmatpush1.bf16.xpose.msra.mxu0 0
        %2462 = vmatprep.subr.bf16.mxu0 0
        %2463 = vmatpush1.bf16.xpose.msra.mxu0 0
        %2464 = vmatprep.subr.bf16.mxu0 0
        %2465 = vmatpush1.bf16.xpose.msra.mxu0 0
        %2466 = vmatprep.subr.bf16.mxu0 0
        %2467 = vmatpush1.bf16.xpose.msra.mxu0 0
        %2468 = vmatprep.subr.bf16.mxu0 0
        %2469 = vmatpush1.bf16.xpose.msra.mxu0 0
        %2470 = vmatprep.subr.bf16.mxu0 0
        %2471 = vmatpush1.bf16.xpose.msra.mxu0 0
        %2472 = vmatprep.subr.bf16.mxu0 0
        %2473 = vmatpush1.bf16.xpose.msra.mxu0 0
        %2474 = vmatprep.subr.bf16.mxu0 0
        %2475 = vmatpush1.bf16.xpose.msra.mxu0 0
        %2476 = vmatprep.subr.bf16.mxu0 0
        %2477 = vmatpush1.bf16.xpose.msra.mxu0 0
        %2478 = vmatprep.subr.bf16.mxu0 0
        %2479 = vmatpush1.bf16.xpose.msra.mxu0 0
        %2480 = vmatprep.subr.bf16.mxu0 0
        %2481 = vmatpush1.bf16.xpose.msra.mxu0 0
        %2482 = vmatprep.mubr.bf16.mxu0 0
        %2483 = vmatmul.mubr.bf16.gmra.mrb[0].mxu0 %v2160
        %v2484 = vpop.f32.mrb[0].mxu0
        %v2485 = vadd.f32 0.0, %v2484
        %v2486 = vpop.f32.mrb[0].mxu0
        %v2487 = vpop.f32.mrb[0].mxu0
        %v2488 = vpop.f32.mrb[0].mxu0
        %2489 = vdwg.mxu0
        %v2490 = vstv 0
        %v2491 = vadd.s32 %v2404, %v2490
        %vm2492 = vcmp.gt.s32.totalorder %v2491, %v2402
        %v2493 = vsel %vm2492, -1e+30, 0.0
        %vm2494 = vcmp.gt.f32.partialorder %v2409, 0.5
        %v2495 = vsel %vm2494, -1e+30, 0.0
        %v2496 = vadd.f32 %v2445, %v2493
        %v2497 = vadd.f32 %v2485, %v2493
        %v2499 = vlaneseq
        %v2500 = vshrl.u32 %v2499, 7
        %v2501 = vsub.s32 0, %v2500
        %v2502 = vrot.slane %v2495, %v2501
        %v2504 = vadd.f32 %v2496, %v2502
        %v2505 = vadd.f32 %v2497, %v2502
        %vm2506 = vcmask 64512
        %v2507 = vsel %vm2506, %v2504, -inf
        %2508 = vmax.xlane.f32.xlu0 %v2507
        %v2509 = vpop.xlane.xlu0 %2508
        %v2510 = vsel %vm2506, %v2505, -inf
        %2511 = vmax.xlane.f32.xlu0 %v2510
        %v2512 = vpop.xlane.xlu0 %2511
        %v2513 = vsub.f32 -inf, %v2509
        %v2514 = vsub.f32 -inf, %v2512
        %v2515 = vmul.f32 %v2513, 1.442695
        %v2516 = vpow.pop %v2515
        %v2517 = vmul.f32 %v2514, 1.442695
        %v2518 = vpow.pop %v2517
        %v2519 = vsub.f32 %v2504, %v2509
        %v2520 = vsub.f32 %v2505, %v2512
        %v2521 = vmul.f32 %v2519, 1.442695
        %v2522 = vpow.pop %v2521
        %v2523 = vmul.f32 %v2520, 1.442695
        %v2524 = vpow.pop %v2523
        %v2525 = vmul.f32 %v2516, 0.0
        %v2526 = vmul.f32 %v2518, 0.0
        %v2527 = vsel %vm2506, %v2522, 0.0
        %2528 = vadd.xlane.f32.xlu0 %v2527
        %v2529 = vpop.xlane.xlu0 %2528
        %v2530 = vsel %vm2506, %v2524, 0.0
        %2531 = vadd.xlane.f32.xlu0 %v2530
        %v2532 = vpop.xlane.xlu0 %2531
        %v2533 = vadd.f32 %v2525, %v2529
        %v2534 = vadd.f32 %v2526, %v2532
        %v2535 = vpack.c.bf16 %v2522, %v2522
        %v2536 = vpack.c.bf16 %v2524, %v2524
        %v2538 = vsel %vm2506, %v2535, 0
        %vm2540 = vcmask 1043456
        %v2542 = vsel %vm2540, %v2407, 0
        %2544 = vmatprep.subr.bf16.mxu0 0
        %2545 = vmatpush1.bf16.msra.mxu0 %v2542
        %2546 = vmatprep.subr.bf16.mxu0 0
        %2547 = vmatpush1.bf16.msra.mxu0 0
        %2548 = vmatprep.subr.bf16.mxu0 0
        %2549 = vmatpush1.bf16.msra.mxu0 0
        %2550 = vmatprep.subr.bf16.mxu0 0
        %2551 = vmatpush1.bf16.msra.mxu0 0
        %2552 = vmatprep.subr.bf16.mxu0 0
        %2553 = vmatpush1.bf16.msra.mxu0 0
        %2554 = vmatprep.subr.bf16.mxu0 0
        %2555 = vmatpush1.bf16.msra.mxu0 0
        %2556 = vmatprep.subr.bf16.mxu0 0
        %2557 = vmatpush1.bf16.msra.mxu0 0
        %2558 = vmatprep.subr.bf16.mxu0 0
        %2559 = vmatpush1.bf16.msra.mxu0 0
        %2560 = vmatprep.subr.bf16.mxu0 0
        %2561 = vmatpush1.bf16.msra.mxu0 0
        %2562 = vmatprep.subr.bf16.mxu0 0
        %2563 = vmatpush1.bf16.msra.mxu0 0
        %2564 = vmatprep.subr.bf16.mxu0 0
        %2565 = vmatpush1.bf16.msra.mxu0 0
        %2566 = vmatprep.subr.bf16.mxu0 0
        %2567 = vmatpush1.bf16.msra.mxu0 0
        %2568 = vmatprep.subr.bf16.mxu0 0
        %2569 = vmatpush1.bf16.msra.mxu0 0
        %2570 = vmatprep.subr.bf16.mxu0 0
        %2571 = vmatpush1.bf16.msra.mxu0 0
        %2572 = vmatprep.subr.bf16.mxu0 0
        %2573 = vmatpush1.bf16.msra.mxu0 0
        %2574 = vmatprep.subr.bf16.mxu0 0
        %2575 = vmatpush1.bf16.msra.mxu0 0
        %2576 = vmatprep.mubr.bf16.mxu0 0
        %2577 = vmatmul.mubr.bf16.gmra.mrb[0].mxu0 %v2538
        %v2578 = vpop.f32.mrb[0].mxu0
        %v2579 = vadd.f32 0.0, %v2578
        %v2580 = vpop.f32.mrb[0].mxu0
        %v2581 = vpop.f32.mrb[0].mxu0
        %v2582 = vpop.f32.mrb[0].mxu0
        %2583 = vdwg.mxu0
        %v2585 = vsel %vm2506, %v2536, 0
        %v2588 = vsel %vm2540, %v2408, 0
        %2590 = vmatprep.subr.bf16.mxu0 0
        %2591 = vmatpush1.bf16.msra.mxu0 %v2588
        %2592 = vmatprep.subr.bf16.mxu0 0
        %2593 = vmatpush1.bf16.msra.mxu0 0
        %2594 = vmatprep.subr.bf16.mxu0 0
        %2595 = vmatpush1.bf16.msra.mxu0 0
        %2596 = vmatprep.subr.bf16.mxu0 0
        %2597 = vmatpush1.bf16.msra.mxu0 0
        %2598 = vmatprep.subr.bf16.mxu0 0
        %2599 = vmatpush1.bf16.msra.mxu0 0
        %2600 = vmatprep.subr.bf16.mxu0 0
        %2601 = vmatpush1.bf16.msra.mxu0 0
        %2602 = vmatprep.subr.bf16.mxu0 0
        %2603 = vmatpush1.bf16.msra.mxu0 0
        %2604 = vmatprep.subr.bf16.mxu0 0
        %2605 = vmatpush1.bf16.msra.mxu0 0
        %2606 = vmatprep.subr.bf16.mxu0 0
        %2607 = vmatpush1.bf16.msra.mxu0 0
        %2608 = vmatprep.subr.bf16.mxu0 0
        %2609 = vmatpush1.bf16.msra.mxu0 0
        %2610 = vmatprep.subr.bf16.mxu0 0
        %2611 = vmatpush1.bf16.msra.mxu0 0
        %2612 = vmatprep.subr.bf16.mxu0 0
        %2613 = vmatpush1.bf16.msra.mxu0 0
        %2614 = vmatprep.subr.bf16.mxu0 0
        %2615 = vmatpush1.bf16.msra.mxu0 0
        %2616 = vmatprep.subr.bf16.mxu0 0
        %2617 = vmatpush1.bf16.msra.mxu0 0
        %2618 = vmatprep.subr.bf16.mxu0 0
        %2619 = vmatpush1.bf16.msra.mxu0 0
        %2620 = vmatprep.subr.bf16.mxu0 0
        %2621 = vmatpush1.bf16.msra.mxu0 0
        %2622 = vmatprep.mubr.bf16.mxu0 0
        %2623 = vmatmul.mubr.bf16.gmra.mrb[0].mxu0 %v2585
        %v2624 = vpop.f32.mrb[0].mxu0
        %v2625 = vadd.f32 0.0, %v2624
        %v2626 = vpop.f32.mrb[0].mxu0
        %v2627 = vpop.f32.mrb[0].mxu0
        %v2628 = vpop.f32.mrb[0].mxu0
        %2629 = vdwg.mxu0
        %v2630 = vadd.f32 %v2525, %v2579
        %v2631 = vadd.f32 %v2526, %v2625
        %v2632 = vrcp.pop %v2533
        %v2633 = vrcp.pop %v2534
        %v2634 = vmul.f32 %v2630, %v2632
        %v2635 = vmul.f32 %v2631, %v2633
        %v2636 = vcombine.high %v2634, 0.0
        %v2638 = vunpack.c.l.s4 1983009808
        %v2639 = vunpack.c.0.s8 %v2638
        %v2640 = vlaneseq
        %v2641 = vshrl.u32 %v2640, 7
        %v2642 = vsub.s32 %v2639, %v2641
        %v2643 = vrot.slane %v2634, %v2642
        %v2645 = vunpack.c.l.s4 1983009808
        %v2646 = vunpack.c.0.s8 %v2645
        %v2647 = vlaneseq
        %v2648 = vshrl.u32 %v2647, 7
        %v2649 = vsub.s32 %v2646, %v2648
        %v2650 = vrot.slane %v2636, %v2649
        %v2651 = vcombine.high %v2635, 0.0
        %v2653 = vunpack.c.l.s4 1983009808
        %v2654 = vunpack.c.0.s8 %v2653
        %v2655 = vlaneseq
        %v2656 = vshrl.u32 %v2655, 7
        %v2657 = vsub.s32 %v2654, %v2656
        %v2658 = vrot.slane %v2635, %v2657
        %v2660 = vunpack.c.l.s4 1983009808
        %v2661 = vunpack.c.0.s8 %v2660
        %v2662 = vlaneseq
        %v2663 = vshrl.u32 %v2662, 7
        %v2664 = vsub.s32 %v2661, %v2663
        %v2665 = vrot.slane %v2651, %v2664
        %v2666 = vcombine.low %v2643, %v2658
        %v2667 = vcombine.high %v2643, %v2658
        %v2669 = vunpack.c.l.s4 1934713408
        %v2670 = vunpack.c.0.s8 %v2669
        %v2671 = vlaneseq
        %v2672 = vshrl.u32 %v2671, 7
        %v2673 = vsub.s32 %v2670, %v2672
        %v2674 = vrot.slane %v2666, %v2673
        %v2676 = vunpack.c.l.s4 1934713408
        %v2677 = vunpack.c.0.s8 %v2676
        %v2678 = vlaneseq
        %v2679 = vshrl.u32 %v2678, 7
        %v2680 = vsub.s32 %v2677, %v2679
        %v2681 = vrot.slane %v2667, %v2680
        %v2682 = vcombine.low %v2650, %v2665
        %v2683 = vcombine.high %v2650, %v2665
        %v2685 = vunpack.c.l.s4 1934713408
        %v2686 = vunpack.c.0.s8 %v2685
        %v2687 = vlaneseq
        %v2688 = vshrl.u32 %v2687, 7
        %v2689 = vsub.s32 %v2686, %v2688
        %v2690 = vrot.slane %v2682, %v2689
        %v2692 = vunpack.c.l.s4 1934713408
        %v2693 = vunpack.c.0.s8 %v2692
        %v2694 = vlaneseq
        %v2695 = vshrl.u32 %v2694, 7
        %v2696 = vsub.s32 %v2693, %v2695
        %v2697 = vrot.slane %v2683, %v2696
        %v2698 = vcombine.high %v2674, 0.0
        %v2699 = vcombine.high %v2681, 0.0
        %v2700 = vcombine.high %v2690, 0.0
        %v2701 = vcombine.high %v2697, 0.0
        %v2702 = vcombine.low %v2674, %v2681
        %v2704 = vunpack.c.l.s4 1983009808
        %v2705 = vunpack.c.0.s8 %v2704
        %v2706 = vlaneseq
        %v2707 = vshrl.u32 %v2706, 7
        %v2708 = vsub.s32 %v2705, %v2707
        %v2709 = vrot.slane %v2702, %v2708
        %v2710 = vcombine.low %v2698, %v2699
        %v2712 = vunpack.c.l.s4 1983009808
        %v2713 = vunpack.c.0.s8 %v2712
        %v2714 = vlaneseq
        %v2715 = vshrl.u32 %v2714, 7
        %v2716 = vsub.s32 %v2713, %v2715
        %v2717 = vrot.slane %v2710, %v2716
        %v2718 = vcombine.low %v2690, %v2697
        %v2720 = vunpack.c.l.s4 1983009808
        %v2721 = vunpack.c.0.s8 %v2720
        %v2722 = vlaneseq
        %v2723 = vshrl.u32 %v2722, 7
        %v2724 = vsub.s32 %v2721, %v2723
        %v2725 = vrot.slane %v2718, %v2724
        %v2726 = vcombine.low %v2700, %v2701
        %v2728 = vunpack.c.l.s4 1983009808
        %v2729 = vunpack.c.0.s8 %v2728
        %v2730 = vlaneseq
        %v2731 = vshrl.u32 %v2730, 7
        %v2732 = vsub.s32 %v2729, %v2731
        %v2733 = vrot.slane %v2726, %v2732
        %v2734 = vcombine.low %v2709, %v2717
        %v2736 = vunpack.c.l.s4 1934713408
        %v2737 = vunpack.c.0.s8 %v2736
        %v2738 = vlaneseq
        %v2739 = vshrl.u32 %v2738, 7
        %v2740 = vsub.s32 %v2737, %v2739
        %v2741 = vrot.slane %v2734, %v2740
        %v2742 = vcombine.low %v2725, %v2733
        %v2744 = vunpack.c.l.s4 1934713408
        %v2745 = vunpack.c.0.s8 %v2744
        %v2746 = vlaneseq
        %v2747 = vshrl.u32 %v2746, 7
        %v2748 = vsub.s32 %v2745, %v2747
        %v2749 = vrot.slane %v2742, %v2748
        %v2750 = vcombine.low %v2741, %v2749
        %v2751 = vcombine.high %v2741, %v2749
        %v2752 = vpack.c.bf16 %v2750, %v2750
        %v2753 = vpack.c.bf16 %v2751, %v2751
        %v2754 = vld [vmem:[%s1070] sm:$0xff]
        %v2755 = vld [vmem:[%s1070 + $0x8] sm:$0xff]
        %v2756 = vld [vmem:[%s1070 + $0x10] sm:$0xff]
        %v2757 = vld [vmem:[%s1070 + $0x18] sm:$0xff]
        %v2758 = vld [vmem:[%s1070 + $0x20] sm:$0xff]
        %v2759 = vld [vmem:[%s1070 + $0x28] sm:$0xff]
        %v2760 = vld [vmem:[%s1070 + $0x30] sm:$0xff]
        %v2761 = vld [vmem:[%s1070 + $0x38] sm:$0xff]
        %v2762 = vld [vmem:[%s1070 + $0x40] sm:$0xff]
        %v2763 = vld [vmem:[%s1070 + $0x48] sm:$0xff]
        %v2764 = vld [vmem:[%s1070 + $0x50] sm:$0xff]
        %v2765 = vld [vmem:[%s1070 + $0x58] sm:$0xff]
        %v2766 = vld [vmem:[%s1070 + $0x60] sm:$0xff]
        %v2767 = vld [vmem:[%s1070 + $0x68] sm:$0xff]
        %v2768 = vld [vmem:[%s1070 + $0x70] sm:$0xff]
        %v2769 = vld [vmem:[%s1070 + $0x78] sm:$0xff]
        %v2770 = vld [vmem:[%s1070 + $0x80] sm:$0xff]
        %v2771 = vld [vmem:[%s1070 + $0x88] sm:$0xff]
        %v2772 = vld [vmem:[%s1070 + $0x90] sm:$0xff]
        %v2773 = vld [vmem:[%s1070 + $0x98] sm:$0xff]
        %v2774 = vld [vmem:[%s1070 + $0xa0] sm:$0xff]
        %v2775 = vld [vmem:[%s1070 + $0xa8] sm:$0xff]
        %v2776 = vld [vmem:[%s1070 + $0xb0] sm:$0xff]
        %v2777 = vld [vmem:[%s1070 + $0xb8] sm:$0xff]
        %v2778 = vld [vmem:[%s1070 + $0xc0] sm:$0xff]
        %v2779 = vld [vmem:[%s1070 + $0xc8] sm:$0xff]
        %v2780 = vld [vmem:[%s1070 + $0xd0] sm:$0xff]
        %v2781 = vld [vmem:[%s1070 + $0xd8] sm:$0xff]
        %v2782 = vld [vmem:[%s1070 + $0xe0] sm:$0xff]
        %v2783 = vld [vmem:[%s1070 + $0xe8] sm:$0xff]
        %v2784 = vld [vmem:[%s1070 + $0xf0] sm:$0xff]
        %v2785 = vld [vmem:[%s1070 + $0xf8] sm:$0xff]
        %v2786 = vld [vmem:[%s1079] sm:$0x3]
        %v2788 = vlaneseq
        %v2789 = vshrl.u32 %v2788, 7
        %v2790 = vsub.s32 0, %v2789
        %v2791 = vrot.slane %v2786, %v2790
        %v2792 = vlaneseq
        %v2793 = vshrl.u32 %v2792, 7
        %v2794 = vsub.s32 1, %v2793
        %v2795 = vrot.slane %v2786, %v2794
        %v2830 = vunpack.c.l.b16 %v2754
        %v2831 = vunpack.c.h.b16 %v2754
        %v2832 = vunpack.c.l.b16 %v2755
        %v2833 = vunpack.c.h.b16 %v2755
        %v2834 = vunpack.c.l.b16 %v2756
        %v2835 = vunpack.c.h.b16 %v2756
        %v2836 = vunpack.c.l.b16 %v2757
        %v2837 = vunpack.c.h.b16 %v2757
        %v2838 = vunpack.c.l.b16 %v2758
        %v2839 = vunpack.c.h.b16 %v2758
        %v2840 = vunpack.c.l.b16 %v2759
        %v2841 = vunpack.c.h.b16 %v2759
        %v2842 = vunpack.c.l.b16 %v2760
        %v2843 = vunpack.c.h.b16 %v2760
        %v2844 = vunpack.c.l.b16 %v2761
        %v2845 = vunpack.c.h.b16 %v2761
        %v2846 = vunpack.c.l.b16 %v2762
        %v2847 = vunpack.c.h.b16 %v2762
        %v2848 = vunpack.c.l.b16 %v2763
        %v2849 = vunpack.c.h.b16 %v2763
        %v2850 = vunpack.c.l.b16 %v2764
        %v2851 = vunpack.c.h.b16 %v2764
        %v2852 = vunpack.c.l.b16 %v2765
        %v2853 = vunpack.c.h.b16 %v2765
        %v2854 = vunpack.c.l.b16 %v2766
        %v2855 = vunpack.c.h.b16 %v2766
        %v2856 = vunpack.c.l.b16 %v2767
        %v2857 = vunpack.c.h.b16 %v2767
        %v2858 = vunpack.c.l.b16 %v2768
        %v2859 = vunpack.c.h.b16 %v2768
        %v2860 = vunpack.c.l.b16 %v2769
        %v2861 = vunpack.c.h.b16 %v2769
        %v2862 = vunpack.c.l.b16 %v2770
        %v2863 = vunpack.c.h.b16 %v2770
        %v2864 = vunpack.c.l.b16 %v2771
        %v2865 = vunpack.c.h.b16 %v2771
        %v2866 = vunpack.c.l.b16 %v2772
        %v2867 = vunpack.c.h.b16 %v2772
        %v2868 = vunpack.c.l.b16 %v2773
        %v2869 = vunpack.c.h.b16 %v2773
        %v2870 = vunpack.c.l.b16 %v2774
        %v2871 = vunpack.c.h.b16 %v2774
        %v2872 = vunpack.c.l.b16 %v2775
        %v2873 = vunpack.c.h.b16 %v2775
        %v2874 = vunpack.c.l.b16 %v2776
        %v2875 = vunpack.c.h.b16 %v2776
        %v2876 = vunpack.c.l.b16 %v2777
        %v2877 = vunpack.c.h.b16 %v2777
        %v2878 = vunpack.c.l.b16 %v2778
        %v2879 = vunpack.c.h.b16 %v2778
        %v2880 = vunpack.c.l.b16 %v2779
        %v2881 = vunpack.c.h.b16 %v2779
        %v2882 = vunpack.c.l.b16 %v2780
        %v2883 = vunpack.c.h.b16 %v2780
        %v2884 = vunpack.c.l.b16 %v2781
        %v2885 = vunpack.c.h.b16 %v2781
        %v2886 = vunpack.c.l.b16 %v2782
        %v2887 = vunpack.c.h.b16 %v2782
        %v2888 = vunpack.c.l.b16 %v2783
        %v2889 = vunpack.c.h.b16 %v2783
        %v2890 = vunpack.c.l.b16 %v2784
        %v2891 = vunpack.c.h.b16 %v2784
        %v2892 = vunpack.c.l.b16 %v2785
        %v2893 = vunpack.c.h.b16 %v2785
        %v2894 = vpack.c.b16 %v2832, %v2830
        %v2895 = vpack.c.b16 %v2833, %v2831
        %v2896 = vpack.c.b16 %v2836, %v2834
        %v2897 = vpack.c.b16 %v2837, %v2835
        %v2898 = vpack.c.b16 %v2840, %v2838
        %v2899 = vpack.c.b16 %v2841, %v2839
        %v2900 = vpack.c.b16 %v2844, %v2842
        %v2901 = vpack.c.b16 %v2845, %v2843
        %v2902 = vpack.c.b16 %v2848, %v2846
        %v2903 = vpack.c.b16 %v2849, %v2847
        %v2904 = vpack.c.b16 %v2852, %v2850
        %v2905 = vpack.c.b16 %v2853, %v2851
        %v2906 = vpack.c.b16 %v2856, %v2854
        %v2907 = vpack.c.b16 %v2857, %v2855
        %v2908 = vpack.c.b16 %v2860, %v2858
        %v2909 = vpack.c.b16 %v2861, %v2859
        %v2910 = vpack.c.b16 %v2864, %v2862
        %v2911 = vpack.c.b16 %v2865, %v2863
        %v2912 = vpack.c.b16 %v2868, %v2866
        %v2913 = vpack.c.b16 %v2869, %v2867
        %v2914 = vpack.c.b16 %v2872, %v2870
        %v2915 = vpack.c.b16 %v2873, %v2871
        %v2916 = vpack.c.b16 %v2876, %v2874
        %v2917 = vpack.c.b16 %v2877, %v2875
        %v2918 = vpack.c.b16 %v2880, %v2878
        %v2919 = vpack.c.b16 %v2881, %v2879
        %v2920 = vpack.c.b16 %v2884, %v2882
        %v2921 = vpack.c.b16 %v2885, %v2883
        %v2922 = vpack.c.b16 %v2888, %v2886
        %v2923 = vpack.c.b16 %v2889, %v2887
        %v2924 = vpack.c.b16 %v2892, %v2890
        %v2925 = vpack.c.b16 %v2893, %v2891
        %2958 = vmatprep.subr.bf16.mxu0 %v2895
        %2959 = vmatpush1.bf16.msra.mxu0 %v2894
        %2960 = vmatprep.subr.bf16.mxu0 %v2897
        %2961 = vmatpush1.bf16.msra.mxu0 %v2896
        %2962 = vmatprep.subr.bf16.mxu0 %v2899
        %2963 = vmatpush1.bf16.msra.mxu0 %v2898
        %2964 = vmatprep.subr.bf16.mxu0 %v2901
        %2965 = vmatpush1.bf16.msra.mxu0 %v2900
        %2966 = vmatprep.subr.bf16.mxu0 %v2903
        %2967 = vmatpush1.bf16.msra.mxu0 %v2902
        %2968 = vmatprep.subr.bf16.mxu0 %v2905
        %2969 = vmatpush1.bf16.msra.mxu0 %v2904
        %2970 = vmatprep.subr.bf16.mxu0 %v2907
        %2971 = vmatpush1.bf16.msra.mxu0 %v2906
        %2972 = vmatprep.subr.bf16.mxu0 %v2909
        %2973 = vmatpush1.bf16.msra.mxu0 %v2908
        %2974 = vmatprep.subr.bf16.mxu0 %v2911
        %2975 = vmatpush1.bf16.msra.mxu0 %v2910
        %2976 = vmatprep.subr.bf16.mxu0 %v2913
        %2977 = vmatpush1.bf16.msra.mxu0 %v2912
        %2978 = vmatprep.subr.bf16.mxu0 %v2915
        %2979 = vmatpush1.bf16.msra.mxu0 %v2914
        %2980 = vmatprep.subr.bf16.mxu0 %v2917
        %2981 = vmatpush1.bf16.msra.mxu0 %v2916
        %2982 = vmatprep.subr.bf16.mxu0 %v2919
        %2983 = vmatpush1.bf16.msra.mxu0 %v2918
        %2984 = vmatprep.subr.bf16.mxu0 %v2921
        %2985 = vmatpush1.bf16.msra.mxu0 %v2920
        %2986 = vmatprep.subr.bf16.mxu0 %v2923
        %2987 = vmatpush1.bf16.msra.mxu0 %v2922
        %2988 = vmatprep.subr.bf16.mxu0 %v2925
        %2989 = vmatpush1.bf16.msra.mxu0 %v2924
        %2990 = vmatprep.mubr.bf16.mxu0 %v2753
        %2991 = vmatmul.mubr.bf16.gmra.mrb[0].mxu0 %v2752
        %v2992 = vpop.f32.mrb[0].mxu0
        %v2993 = vadd.f32 %v2791, %v2992
        %v2994 = vpop.f32.mrb[0].mxu0
        %v2995 = vadd.f32 %v2795, %v2994
        %v2996 = vpop.f32.mrb[0].mxu0
        %v2997 = vpop.f32.mrb[0].mxu0
        %2998 = vdwg.mxu0
        %v2999 = vadd.f32 %v1304, %v2993
        %v3000 = vadd.f32 %v1305, %v2995
        %v3001 = vadd.f32 %v2999, %v3000
        %3002 = vadd.xlane.f32.xlu0 %v3001
        %v3003 = vpop.xlane.xlu0 %3002
        %v3004 = vrcp.pop 256.0
        %v3005 = vmul.f32 %v3003, %v3004
        %v3006 = vsub.f32 %v2999, %v3005
        %v3007 = vsub.f32 %v3000, %v3005
        %v3008 = vmul.f32 %v3006, %v3006
        %v3009 = vmul.f32 %v3007, %v3007
        %v3010 = vadd.f32 %v3008, %v3009
        %3011 = vadd.xlane.f32.xlu0 %v3010
        %v3012 = vpop.xlane.xlu0 %3011
        %v3013 = vmul.f32 %v3012, %v3004
        %v3014 = vadd.f32 %v3013, 1e-05
        %v3015 = vrsqrt.pop %v3014
        %v3016 = vmul.f32 %v3006, %v3015
        %v3017 = vmul.f32 %v3007, %v3015
        %v3018 = vld [vmem:[%s1088] sm:$0x3]
        %v3020 = vlaneseq
        %v3021 = vshrl.u32 %v3020, 7
        %v3022 = vsub.s32 0, %v3021
        %v3023 = vrot.slane %v3018, %v3022
        %v3024 = vlaneseq
        %v3025 = vshrl.u32 %v3024, 7
        %v3026 = vsub.s32 1, %v3025
        %v3027 = vrot.slane %v3018, %v3026
        %v3030 = vmul.f32 %v3016, %v3023
        %v3031 = vmul.f32 %v3017, %v3027
        %v3032 = vld [vmem:[%s1097] sm:$0x3]
        %v3034 = vlaneseq
        %v3035 = vshrl.u32 %v3034, 7
        %v3036 = vsub.s32 0, %v3035
        %v3037 = vrot.slane %v3032, %v3036
        %v3038 = vlaneseq
        %v3039 = vshrl.u32 %v3038, 7
        %v3040 = vsub.s32 1, %v3039
        %v3041 = vrot.slane %v3032, %v3040
        %v3044 = vadd.f32 %v3030, %v3037
        %v3045 = vadd.f32 %v3031, %v3041
        %v3046 = vpack.c.bf16 %v3044, %v3044
        %v3047 = vpack.c.bf16 %v3045, %v3045
        %v3048 = vld [vmem:[%s1106] sm:$0xff]
        %v3049 = vld [vmem:[%s1106 + $0x8] sm:$0xff]
        %v3050 = vld [vmem:[%s1106 + $0x10] sm:$0xff]
        %v3051 = vld [vmem:[%s1106 + $0x18] sm:$0xff]
        %v3052 = vld [vmem:[%s1106 + $0x20] sm:$0xff]
        %v3053 = vld [vmem:[%s1106 + $0x28] sm:$0xff]
        %v3054 = vld [vmem:[%s1106 + $0x30] sm:$0xff]
        %v3055 = vld [vmem:[%s1106 + $0x38] sm:$0xff]
        %v3056 = vld [vmem:[%s1106 + $0x40] sm:$0xff]
        %v3057 = vld [vmem:[%s1106 + $0x48] sm:$0xff]
        %v3058 = vld [vmem:[%s1106 + $0x50] sm:$0xff]
        %v3059 = vld [vmem:[%s1106 + $0x58] sm:$0xff]
        %v3060 = vld [vmem:[%s1106 + $0x60] sm:$0xff]
        %v3061 = vld [vmem:[%s1106 + $0x68] sm:$0xff]
        %v3062 = vld [vmem:[%s1106 + $0x70] sm:$0xff]
        %v3063 = vld [vmem:[%s1106 + $0x78] sm:$0xff]
        %v3064 = vld [vmem:[%s1106 + $0x80] sm:$0xff]
        %v3065 = vld [vmem:[%s1106 + $0x88] sm:$0xff]
        %v3066 = vld [vmem:[%s1106 + $0x90] sm:$0xff]
        %v3067 = vld [vmem:[%s1106 + $0x98] sm:$0xff]
        %v3068 = vld [vmem:[%s1106 + $0xa0] sm:$0xff]
        %v3069 = vld [vmem:[%s1106 + $0xa8] sm:$0xff]
        %v3070 = vld [vmem:[%s1106 + $0xb0] sm:$0xff]
        %v3071 = vld [vmem:[%s1106 + $0xb8] sm:$0xff]
        %v3072 = vld [vmem:[%s1106 + $0xc0] sm:$0xff]
        %v3073 = vld [vmem:[%s1106 + $0xc8] sm:$0xff]
        %v3074 = vld [vmem:[%s1106 + $0xd0] sm:$0xff]
        %v3075 = vld [vmem:[%s1106 + $0xd8] sm:$0xff]
        %v3076 = vld [vmem:[%s1106 + $0xe0] sm:$0xff]
        %v3077 = vld [vmem:[%s1106 + $0xe8] sm:$0xff]
        %v3078 = vld [vmem:[%s1106 + $0xf0] sm:$0xff]
        %v3079 = vld [vmem:[%s1106 + $0xf8] sm:$0xff]
        %v3080 = vld [vmem:[%s1106 + $0x100] sm:$0xff]
        %v3081 = vld [vmem:[%s1106 + $0x108] sm:$0xff]
        %v3082 = vld [vmem:[%s1106 + $0x110] sm:$0xff]
        %v3083 = vld [vmem:[%s1106 + $0x118] sm:$0xff]
        %v3084 = vld [vmem:[%s1106 + $0x120] sm:$0xff]
        %v3085 = vld [vmem:[%s1106 + $0x128] sm:$0xff]
        %v3086 = vld [vmem:[%s1106 + $0x130] sm:$0xff]
        %v3087 = vld [vmem:[%s1106 + $0x138] sm:$0xff]
        %v3088 = vld [vmem:[%s1106 + $0x140] sm:$0xff]
        %v3089 = vld [vmem:[%s1106 + $0x148] sm:$0xff]
        %v3090 = vld [vmem:[%s1106 + $0x150] sm:$0xff]
        %v3091 = vld [vmem:[%s1106 + $0x158] sm:$0xff]
        %v3092 = vld [vmem:[%s1106 + $0x160] sm:$0xff]
        %v3093 = vld [vmem:[%s1106 + $0x168] sm:$0xff]
        %v3094 = vld [vmem:[%s1106 + $0x170] sm:$0xff]
        %v3095 = vld [vmem:[%s1106 + $0x178] sm:$0xff]
        %v3096 = vld [vmem:[%s1106 + $0x180] sm:$0xff]
        %v3097 = vld [vmem:[%s1106 + $0x188] sm:$0xff]
        %v3098 = vld [vmem:[%s1106 + $0x190] sm:$0xff]
        %v3099 = vld [vmem:[%s1106 + $0x198] sm:$0xff]
        %v3100 = vld [vmem:[%s1106 + $0x1a0] sm:$0xff]
        %v3101 = vld [vmem:[%s1106 + $0x1a8] sm:$0xff]
        %v3102 = vld [vmem:[%s1106 + $0x1b0] sm:$0xff]
        %v3103 = vld [vmem:[%s1106 + $0x1b8] sm:$0xff]
        %v3104 = vld [vmem:[%s1106 + $0x1c0] sm:$0xff]
        %v3105 = vld [vmem:[%s1106 + $0x1c8] sm:$0xff]
        %v3106 = vld [vmem:[%s1106 + $0x1d0] sm:$0xff]
        %v3107 = vld [vmem:[%s1106 + $0x1d8] sm:$0xff]
        %v3108 = vld [vmem:[%s1106 + $0x1e0] sm:$0xff]
        %v3109 = vld [vmem:[%s1106 + $0x1e8] sm:$0xff]
        %v3110 = vld [vmem:[%s1106 + $0x1f0] sm:$0xff]
        %v3111 = vld [vmem:[%s1106 + $0x1f8] sm:$0xff]
        %v3112 = vld [vmem:[%s1115] sm:$0xf]
        %v3114 = vlaneseq
        %v3115 = vshrl.u32 %v3114, 7
        %v3116 = vsub.s32 0, %v3115
        %v3117 = vrot.slane %v3112, %v3116
        %v3118 = vlaneseq
        %v3119 = vshrl.u32 %v3118, 7
        %v3120 = vsub.s32 1, %v3119
        %v3121 = vrot.slane %v3112, %v3120
        %v3122 = vlaneseq
        %v3123 = vshrl.u32 %v3122, 7
        %v3124 = vsub.s32 2, %v3123
        %v3125 = vrot.slane %v3112, %v3124
        %v3126 = vlaneseq
        %v3127 = vshrl.u32 %v3126, 7
        %v3128 = vsub.s32 3, %v3127
        %v3129 = vrot.slane %v3112, %v3128
        %v3198 = vunpack.c.l.b16 %v3048
        %v3199 = vunpack.c.h.b16 %v3048
        %v3200 = vunpack.c.l.b16 %v3049
        %v3201 = vunpack.c.h.b16 %v3049
        %v3202 = vunpack.c.l.b16 %v3050
        %v3203 = vunpack.c.h.b16 %v3050
        %v3204 = vunpack.c.l.b16 %v3051
        %v3205 = vunpack.c.h.b16 %v3051
        %v3206 = vunpack.c.l.b16 %v3052
        %v3207 = vunpack.c.h.b16 %v3052
        %v3208 = vunpack.c.l.b16 %v3053
        %v3209 = vunpack.c.h.b16 %v3053
        %v3210 = vunpack.c.l.b16 %v3054
        %v3211 = vunpack.c.h.b16 %v3054
        %v3212 = vunpack.c.l.b16 %v3055
        %v3213 = vunpack.c.h.b16 %v3055
        %v3214 = vunpack.c.l.b16 %v3056
        %v3215 = vunpack.c.h.b16 %v3056
        %v3216 = vunpack.c.l.b16 %v3057
        %v3217 = vunpack.c.h.b16 %v3057
        %v3218 = vunpack.c.l.b16 %v3058
        %v3219 = vunpack.c.h.b16 %v3058
        %v3220 = vunpack.c.l.b16 %v3059
        %v3221 = vunpack.c.h.b16 %v3059
        %v3222 = vunpack.c.l.b16 %v3060
        %v3223 = vunpack.c.h.b16 %v3060
        %v3224 = vunpack.c.l.b16 %v3061
        %v3225 = vunpack.c.h.b16 %v3061
        %v3226 = vunpack.c.l.b16 %v3062
        %v3227 = vunpack.c.h.b16 %v3062
        %v3228 = vunpack.c.l.b16 %v3063
        %v3229 = vunpack.c.h.b16 %v3063
        %v3230 = vunpack.c.l.b16 %v3064
        %v3231 = vunpack.c.h.b16 %v3064
        %v3232 = vunpack.c.l.b16 %v3065
        %v3233 = vunpack.c.h.b16 %v3065
        %v3234 = vunpack.c.l.b16 %v3066
        %v3235 = vunpack.c.h.b16 %v3066
        %v3236 = vunpack.c.l.b16 %v3067
        %v3237 = vunpack.c.h.b16 %v3067
        %v3238 = vunpack.c.l.b16 %v3068
        %v3239 = vunpack.c.h.b16 %v3068
        %v3240 = vunpack.c.l.b16 %v3069
        %v3241 = vunpack.c.h.b16 %v3069
        %v3242 = vunpack.c.l.b16 %v3070
        %v3243 = vunpack.c.h.b16 %v3070
        %v3244 = vunpack.c.l.b16 %v3071
        %v3245 = vunpack.c.h.b16 %v3071
        %v3246 = vunpack.c.l.b16 %v3072
        %v3247 = vunpack.c.h.b16 %v3072
        %v3248 = vunpack.c.l.b16 %v3073
        %v3249 = vunpack.c.h.b16 %v3073
        %v3250 = vunpack.c.l.b16 %v3074
        %v3251 = vunpack.c.h.b16 %v3074
        %v3252 = vunpack.c.l.b16 %v3075
        %v3253 = vunpack.c.h.b16 %v3075
        %v3254 = vunpack.c.l.b16 %v3076
        %v3255 = vunpack.c.h.b16 %v3076
        %v3256 = vunpack.c.l.b16 %v3077
        %v3257 = vunpack.c.h.b16 %v3077
        %v3258 = vunpack.c.l.b16 %v3078
        %v3259 = vunpack.c.h.b16 %v3078
        %v3260 = vunpack.c.l.b16 %v3079
        %v3261 = vunpack.c.h.b16 %v3079
        %v3262 = vunpack.c.l.b16 %v3080
        %v3263 = vunpack.c.h.b16 %v3080
        %v3264 = vunpack.c.l.b16 %v3081
        %v3265 = vunpack.c.h.b16 %v3081
        %v3266 = vunpack.c.l.b16 %v3082
        %v3267 = vunpack.c.h.b16 %v3082
        %v3268 = vunpack.c.l.b16 %v3083
        %v3269 = vunpack.c.h.b16 %v3083
        %v3270 = vunpack.c.l.b16 %v3084
        %v3271 = vunpack.c.h.b16 %v3084
        %v3272 = vunpack.c.l.b16 %v3085
        %v3273 = vunpack.c.h.b16 %v3085
        %v3274 = vunpack.c.l.b16 %v3086
        %v3275 = vunpack.c.h.b16 %v3086
        %v3276 = vunpack.c.l.b16 %v3087
        %v3277 = vunpack.c.h.b16 %v3087
        %v3278 = vunpack.c.l.b16 %v3088
        %v3279 = vunpack.c.h.b16 %v3088
        %v3280 = vunpack.c.l.b16 %v3089
        %v3281 = vunpack.c.h.b16 %v3089
        %v3282 = vunpack.c.l.b16 %v3090
        %v3283 = vunpack.c.h.b16 %v3090
        %v3284 = vunpack.c.l.b16 %v3091
        %v3285 = vunpack.c.h.b16 %v3091
        %v3286 = vunpack.c.l.b16 %v3092
        %v3287 = vunpack.c.h.b16 %v3092
        %v3288 = vunpack.c.l.b16 %v3093
        %v3289 = vunpack.c.h.b16 %v3093
        %v3290 = vunpack.c.l.b16 %v3094
        %v3291 = vunpack.c.h.b16 %v3094
        %v3292 = vunpack.c.l.b16 %v3095
        %v3293 = vunpack.c.h.b16 %v3095
        %v3294 = vunpack.c.l.b16 %v3096
        %v3295 = vunpack.c.h.b16 %v3096
        %v3296 = vunpack.c.l.b16 %v3097
        %v3297 = vunpack.c.h.b16 %v3097
        %v3298 = vunpack.c.l.b16 %v3098
        %v3299 = vunpack.c.h.b16 %v3098
        %v3300 = vunpack.c.l.b16 %v3099
        %v3301 = vunpack.c.h.b16 %v3099
        %v3302 = vunpack.c.l.b16 %v3100
        %v3303 = vunpack.c.h.b16 %v3100
        %v3304 = vunpack.c.l.b16 %v3101
        %v3305 = vunpack.c.h.b16 %v3101
        %v3306 = vunpack.c.l.b16 %v3102
        %v3307 = vunpack.c.h.b16 %v3102
        %v3308 = vunpack.c.l.b16 %v3103
        %v3309 = vunpack.c.h.b16 %v3103
        %v3310 = vunpack.c.l.b16 %v3104
        %v3311 = vunpack.c.h.b16 %v3104
        %v3312 = vunpack.c.l.b16 %v3105
        %v3313 = vunpack.c.h.b16 %v3105
        %v3314 = vunpack.c.l.b16 %v3106
        %v3315 = vunpack.c.h.b16 %v3106
        %v3316 = vunpack.c.l.b16 %v3107
        %v3317 = vunpack.c.h.b16 %v3107
        %v3318 = vunpack.c.l.b16 %v3108
        %v3319 = vunpack.c.h.b16 %v3108
        %v3320 = vunpack.c.l.b16 %v3109
        %v3321 = vunpack.c.h.b16 %v3109
        %v3322 = vunpack.c.l.b16 %v3110
        %v3323 = vunpack.c.h.b16 %v3110
        %v3324 = vunpack.c.l.b16 %v3111
        %v3325 = vunpack.c.h.b16 %v3111
        %v3326 = vpack.c.b16 %v3202, %v3198
        %v3327 = vpack.c.b16 %v3203, %v3199
        %v3328 = vpack.c.b16 %v3204, %v3200
        %v3329 = vpack.c.b16 %v3205, %v3201
        %v3330 = vpack.c.b16 %v3210, %v3206
        %v3331 = vpack.c.b16 %v3211, %v3207
        %v3332 = vpack.c.b16 %v3212, %v3208
        %v3333 = vpack.c.b16 %v3213, %v3209
        %v3334 = vpack.c.b16 %v3218, %v3214
        %v3335 = vpack.c.b16 %v3219, %v3215
        %v3336 = vpack.c.b16 %v3220, %v3216
        %v3337 = vpack.c.b16 %v3221, %v3217
        %v3338 = vpack.c.b16 %v3226, %v3222
        %v3339 = vpack.c.b16 %v3227, %v3223
        %v3340 = vpack.c.b16 %v3228, %v3224
        %v3341 = vpack.c.b16 %v3229, %v3225
        %v3342 = vpack.c.b16 %v3234, %v3230
        %v3343 = vpack.c.b16 %v3235, %v3231
        %v3344 = vpack.c.b16 %v3236, %v3232
        %v3345 = vpack.c.b16 %v3237, %v3233
        %v3346 = vpack.c.b16 %v3242, %v3238
        %v3347 = vpack.c.b16 %v3243, %v3239
        %v3348 = vpack.c.b16 %v3244, %v3240
        %v3349 = vpack.c.b16 %v3245, %v3241
        %v3350 = vpack.c.b16 %v3250, %v3246
        %v3351 = vpack.c.b16 %v3251, %v3247
        %v3352 = vpack.c.b16 %v3252, %v3248
        %v3353 = vpack.c.b16 %v3253, %v3249
        %v3354 = vpack.c.b16 %v3258, %v3254
        %v3355 = vpack.c.b16 %v3259, %v3255
        %v3356 = vpack.c.b16 %v3260, %v3256
        %v3357 = vpack.c.b16 %v3261, %v3257
        %v3358 = vpack.c.b16 %v3266, %v3262
        %v3359 = vpack.c.b16 %v3267, %v3263
        %v3360 = vpack.c.b16 %v3268, %v3264
        %v3361 = vpack.c.b16 %v3269, %v3265
        %v3362 = vpack.c.b16 %v3274, %v3270
        %v3363 = vpack.c.b16 %v3275, %v3271
        %v3364 = vpack.c.b16 %v3276, %v3272
        %v3365 = vpack.c.b16 %v3277, %v3273
        %v3366 = vpack.c.b16 %v3282, %v3278
        %v3367 = vpack.c.b16 %v3283, %v3279
        %v3368 = vpack.c.b16 %v3284, %v3280
        %v3369 = vpack.c.b16 %v3285, %v3281
        %v3370 = vpack.c.b16 %v3290, %v3286
        %v3371 = vpack.c.b16 %v3291, %v3287
        %v3372 = vpack.c.b16 %v3292, %v3288
        %v3373 = vpack.c.b16 %v3293, %v3289
        %v3374 = vpack.c.b16 %v3298, %v3294
        %v3375 = vpack.c.b16 %v3299, %v3295
        %v3376 = vpack.c.b16 %v3300, %v3296
        %v3377 = vpack.c.b16 %v3301, %v3297
        %v3378 = vpack.c.b16 %v3306, %v3302
        %v3379 = vpack.c.b16 %v3307, %v3303
        %v3380 = vpack.c.b16 %v3308, %v3304
        %v3381 = vpack.c.b16 %v3309, %v3305
        %v3382 = vpack.c.b16 %v3314, %v3310
        %v3383 = vpack.c.b16 %v3315, %v3311
        %v3384 = vpack.c.b16 %v3316, %v3312
        %v3385 = vpack.c.b16 %v3317, %v3313
        %v3386 = vpack.c.b16 %v3322, %v3318
        %v3387 = vpack.c.b16 %v3323, %v3319
        %v3388 = vpack.c.b16 %v3324, %v3320
        %v3389 = vpack.c.b16 %v3325, %v3321
        %3454 = vmatprep.subr.bf16.mxu0 %v3327
        %3455 = vmatpush1.bf16.msra.mxu0 %v3326
        %3456 = vmatprep.subr.bf16.mxu0 %v3331
        %3457 = vmatpush1.bf16.msra.mxu0 %v3330
        %3458 = vmatprep.subr.bf16.mxu0 %v3335
        %3459 = vmatpush1.bf16.msra.mxu0 %v3334
        %3460 = vmatprep.subr.bf16.mxu0 %v3339
        %3461 = vmatpush1.bf16.msra.mxu0 %v3338
        %3462 = vmatprep.subr.bf16.mxu0 %v3343
        %3463 = vmatpush1.bf16.msra.mxu0 %v3342
        %3464 = vmatprep.subr.bf16.mxu0 %v3347
        %3465 = vmatpush1.bf16.msra.mxu0 %v3346
        %3466 = vmatprep.subr.bf16.mxu0 %v3351
        %3467 = vmatpush1.bf16.msra.mxu0 %v3350
        %3468 = vmatprep.subr.bf16.mxu0 %v3355
        %3469 = vmatpush1.bf16.msra.mxu0 %v3354
        %3470 = vmatprep.subr.bf16.mxu0 %v3359
        %3471 = vmatpush1.bf16.msra.mxu0 %v3358
        %3472 = vmatprep.subr.bf16.mxu0 %v3363
        %3473 = vmatpush1.bf16.msra.mxu0 %v3362
        %3474 = vmatprep.subr.bf16.mxu0 %v3367
        %3475 = vmatpush1.bf16.msra.mxu0 %v3366
        %3476 = vmatprep.subr.bf16.mxu0 %v3371
        %3477 = vmatpush1.bf16.msra.mxu0 %v3370
        %3478 = vmatprep.subr.bf16.mxu0 %v3375
        %3479 = vmatpush1.bf16.msra.mxu0 %v3374
        %3480 = vmatprep.subr.bf16.mxu0 %v3379
        %3481 = vmatpush1.bf16.msra.mxu0 %v3378
        %3482 = vmatprep.subr.bf16.mxu0 %v3383
        %3483 = vmatpush1.bf16.msra.mxu0 %v3382
        %3484 = vmatprep.subr.bf16.mxu0 %v3387
        %3485 = vmatpush1.bf16.msra.mxu0 %v3386
        %3486 = vmatprep.mubr.bf16.mxu0 %v3047
        %3487 = vmatmul.mubr.bf16.gmra.mrb[0].mxu0 %v3046
        %v3488 = vpop.f32.mrb[0].mxu0
        %v3489 = vadd.f32 %v3117, %v3488
        %v3490 = vpop.f32.mrb[0].mxu0
        %v3491 = vadd.f32 %v3121, %v3490
        %v3492 = vpop.f32.mrb[0].mxu0
        %v3493 = vpop.f32.mrb[0].mxu0
        %3494 = vdwg.mxu0
        %3495 = vmatprep.subr.bf16.mxu0 %v3329
        %3496 = vmatpush1.bf16.msra.mxu0 %v3328
        %3497 = vmatprep.subr.bf16.mxu0 %v3333
        %3498 = vmatpush1.bf16.msra.mxu0 %v3332
        %3499 = vmatprep.subr.bf16.mxu0 %v3337
        %3500 = vmatpush1.bf16.msra.mxu0 %v3336
        %3501 = vmatprep.subr.bf16.mxu0 %v3341
        %3502 = vmatpush1.bf16.msra.mxu0 %v3340
        %3503 = vmatprep.subr.bf16.mxu0 %v3345
        %3504 = vmatpush1.bf16.msra.mxu0 %v3344
        %3505 = vmatprep.subr.bf16.mxu0 %v3349
        %3506 = vmatpush1.bf16.msra.mxu0 %v3348
        %3507 = vmatprep.subr.bf16.mxu0 %v3353
        %3508 = vmatpush1.bf16.msra.mxu0 %v3352
        %3509 = vmatprep.subr.bf16.mxu0 %v3357
        %3510 = vmatpush1.bf16.msra.mxu0 %v3356
        %3511 = vmatprep.subr.bf16.mxu0 %v3361
        %3512 = vmatpush1.bf16.msra.mxu0 %v3360
        %3513 = vmatprep.subr.bf16.mxu0 %v3365
        %3514 = vmatpush1.bf16.msra.mxu0 %v3364
        %3515 = vmatprep.subr.bf16.mxu0 %v3369
        %3516 = vmatpush1.bf16.msra.mxu0 %v3368
        %3517 = vmatprep.subr.bf16.mxu0 %v3373
        %3518 = vmatpush1.bf16.msra.mxu0 %v3372
        %3519 = vmatprep.subr.bf16.mxu0 %v3377
        %3520 = vmatpush1.bf16.msra.mxu0 %v3376
        %3521 = vmatprep.subr.bf16.mxu0 %v3381
        %3522 = vmatpush1.bf16.msra.mxu0 %v3380
        %3523 = vmatprep.subr.bf16.mxu0 %v3385
        %3524 = vmatpush1.bf16.msra.mxu0 %v3384
        %3525 = vmatprep.subr.bf16.mxu0 %v3389
        %3526 = vmatpush1.bf16.msra.mxu0 %v3388
        %3527 = vmatprep.mubr.bf16.mxu0 %v3047
        %3528 = vmatmul.mubr.bf16.gmra.mrb[0].mxu0 %v3046
        %v3529 = vpop.f32.mrb[0].mxu0
        %v3530 = vadd.f32 %v3125, %v3529
        %v3531 = vpop.f32.mrb[0].mxu0
        %v3532 = vadd.f32 %v3129, %v3531
        %v3533 = vpop.f32.mrb[0].mxu0
        %v3534 = vpop.f32.mrb[0].mxu0
        %3535 = vdwg.mxu0
        %v3536 = vmax.f32 %v3489, 0.0
        %v3537 = vmax.f32 %v3491, 0.0
        %v3538 = vmax.f32 %v3530, 0.0
        %v3539 = vmax.f32 %v3532, 0.0
        %v3540 = vpack.c.bf16 %v3536, %v3536
        %v3541 = vpack.c.bf16 %v3537, %v3537
        %v3542 = vpack.c.bf16 %v3538, %v3538
        %v3543 = vpack.c.bf16 %v3539, %v3539
        %v3544 = vld [vmem:[%s1124] sm:$0xff]
        %v3545 = vld [vmem:[%s1124 + $0x8] sm:$0xff]
        %v3546 = vld [vmem:[%s1124 + $0x10] sm:$0xff]
        %v3547 = vld [vmem:[%s1124 + $0x18] sm:$0xff]
        %v3548 = vld [vmem:[%s1124 + $0x20] sm:$0xff]
        %v3549 = vld [vmem:[%s1124 + $0x28] sm:$0xff]
        %v3550 = vld [vmem:[%s1124 + $0x30] sm:$0xff]
        %v3551 = vld [vmem:[%s1124 + $0x38] sm:$0xff]
        %v3552 = vld [vmem:[%s1124 + $0x40] sm:$0xff]
        %v3553 = vld [vmem:[%s1124 + $0x48] sm:$0xff]
        %v3554 = vld [vmem:[%s1124 + $0x50] sm:$0xff]
        %v3555 = vld [vmem:[%s1124 + $0x58] sm:$0xff]
        %v3556 = vld [vmem:[%s1124 + $0x60] sm:$0xff]
        %v3557 = vld [vmem:[%s1124 + $0x68] sm:$0xff]
        %v3558 = vld [vmem:[%s1124 + $0x70] sm:$0xff]
        %v3559 = vld [vmem:[%s1124 + $0x78] sm:$0xff]
        %v3560 = vld [vmem:[%s1124 + $0x80] sm:$0xff]
        %v3561 = vld [vmem:[%s1124 + $0x88] sm:$0xff]
        %v3562 = vld [vmem:[%s1124 + $0x90] sm:$0xff]
        %v3563 = vld [vmem:[%s1124 + $0x98] sm:$0xff]
        %v3564 = vld [vmem:[%s1124 + $0xa0] sm:$0xff]
        %v3565 = vld [vmem:[%s1124 + $0xa8] sm:$0xff]
        %v3566 = vld [vmem:[%s1124 + $0xb0] sm:$0xff]
        %v3567 = vld [vmem:[%s1124 + $0xb8] sm:$0xff]
        %v3568 = vld [vmem:[%s1124 + $0xc0] sm:$0xff]
        %v3569 = vld [vmem:[%s1124 + $0xc8] sm:$0xff]
        %v3570 = vld [vmem:[%s1124 + $0xd0] sm:$0xff]
        %v3571 = vld [vmem:[%s1124 + $0xd8] sm:$0xff]
        %v3572 = vld [vmem:[%s1124 + $0xe0] sm:$0xff]
        %v3573 = vld [vmem:[%s1124 + $0xe8] sm:$0xff]
        %v3574 = vld [vmem:[%s1124 + $0xf0] sm:$0xff]
        %v3575 = vld [vmem:[%s1124 + $0xf8] sm:$0xff]
        %v3576 = vld [vmem:[%s1124 + $0x100] sm:$0xff]
        %v3577 = vld [vmem:[%s1124 + $0x108] sm:$0xff]
        %v3578 = vld [vmem:[%s1124 + $0x110] sm:$0xff]
        %v3579 = vld [vmem:[%s1124 + $0x118] sm:$0xff]
        %v3580 = vld [vmem:[%s1124 + $0x120] sm:$0xff]
        %v3581 = vld [vmem:[%s1124 + $0x128] sm:$0xff]
        %v3582 = vld [vmem:[%s1124 + $0x130] sm:$0xff]
        %v3583 = vld [vmem:[%s1124 + $0x138] sm:$0xff]
        %v3584 = vld [vmem:[%s1124 + $0x140] sm:$0xff]
        %v3585 = vld [vmem:[%s1124 + $0x148] sm:$0xff]
        %v3586 = vld [vmem:[%s1124 + $0x150] sm:$0xff]
        %v3587 = vld [vmem:[%s1124 + $0x158] sm:$0xff]
        %v3588 = vld [vmem:[%s1124 + $0x160] sm:$0xff]
        %v3589 = vld [vmem:[%s1124 + $0x168] sm:$0xff]
        %v3590 = vld [vmem:[%s1124 + $0x170] sm:$0xff]
        %v3591 = vld [vmem:[%s1124 + $0x178] sm:$0xff]
        %v3592 = vld [vmem:[%s1124 + $0x180] sm:$0xff]
        %v3593 = vld [vmem:[%s1124 + $0x188] sm:$0xff]
        %v3594 = vld [vmem:[%s1124 + $0x190] sm:$0xff]
        %v3595 = vld [vmem:[%s1124 + $0x198] sm:$0xff]
        %v3596 = vld [vmem:[%s1124 + $0x1a0] sm:$0xff]
        %v3597 = vld [vmem:[%s1124 + $0x1a8] sm:$0xff]
        %v3598 = vld [vmem:[%s1124 + $0x1b0] sm:$0xff]
        %v3599 = vld [vmem:[%s1124 + $0x1b8] sm:$0xff]
        %v3600 = vld [vmem:[%s1124 + $0x1c0] sm:$0xff]
        %v3601 = vld [vmem:[%s1124 + $0x1c8] sm:$0xff]
        %v3602 = vld [vmem:[%s1124 + $0x1d0] sm:$0xff]
        %v3603 = vld [vmem:[%s1124 + $0x1d8] sm:$0xff]
        %v3604 = vld [vmem:[%s1124 + $0x1e0] sm:$0xff]
        %v3605 = vld [vmem:[%s1124 + $0x1e8] sm:$0xff]
        %v3606 = vld [vmem:[%s1124 + $0x1f0] sm:$0xff]
        %v3607 = vld [vmem:[%s1124 + $0x1f8] sm:$0xff]
        %v3608 = vld [vmem:[%s1133] sm:$0x3]
        %v3610 = vlaneseq
        %v3611 = vshrl.u32 %v3610, 7
        %v3612 = vsub.s32 0, %v3611
        %v3613 = vrot.slane %v3608, %v3612
        %v3614 = vlaneseq
        %v3615 = vshrl.u32 %v3614, 7
        %v3616 = vsub.s32 1, %v3615
        %v3617 = vrot.slane %v3608, %v3616
        %v3684 = vunpack.c.l.b16 %v3544
        %v3685 = vunpack.c.h.b16 %v3544
        %v3686 = vunpack.c.l.b16 %v3545
        %v3687 = vunpack.c.h.b16 %v3545
        %v3688 = vunpack.c.l.b16 %v3546
        %v3689 = vunpack.c.h.b16 %v3546
        %v3690 = vunpack.c.l.b16 %v3547
        %v3691 = vunpack.c.h.b16 %v3547
        %v3692 = vunpack.c.l.b16 %v3548
        %v3693 = vunpack.c.h.b16 %v3548
        %v3694 = vunpack.c.l.b16 %v3549
        %v3695 = vunpack.c.h.b16 %v3549
        %v3696 = vunpack.c.l.b16 %v3550
        %v3697 = vunpack.c.h.b16 %v3550
        %v3698 = vunpack.c.l.b16 %v3551
        %v3699 = vunpack.c.h.b16 %v3551
        %v3700 = vunpack.c.l.b16 %v3552
        %v3701 = vunpack.c.h.b16 %v3552
        %v3702 = vunpack.c.l.b16 %v3553
        %v3703 = vunpack.c.h.b16 %v3553
        %v3704 = vunpack.c.l.b16 %v3554
        %v3705 = vunpack.c.h.b16 %v3554
        %v3706 = vunpack.c.l.b16 %v3555
        %v3707 = vunpack.c.h.b16 %v3555
        %v3708 = vunpack.c.l.b16 %v3556
        %v3709 = vunpack.c.h.b16 %v3556
        %v3710 = vunpack.c.l.b16 %v3557
        %v3711 = vunpack.c.h.b16 %v3557
        %v3712 = vunpack.c.l.b16 %v3558
        %v3713 = vunpack.c.h.b16 %v3558
        %v3714 = vunpack.c.l.b16 %v3559
        %v3715 = vunpack.c.h.b16 %v3559
        %v3716 = vunpack.c.l.b16 %v3560
        %v3717 = vunpack.c.h.b16 %v3560
        %v3718 = vunpack.c.l.b16 %v3561
        %v3719 = vunpack.c.h.b16 %v3561
        %v3720 = vunpack.c.l.b16 %v3562
        %v3721 = vunpack.c.h.b16 %v3562
        %v3722 = vunpack.c.l.b16 %v3563
        %v3723 = vunpack.c.h.b16 %v3563
        %v3724 = vunpack.c.l.b16 %v3564
        %v3725 = vunpack.c.h.b16 %v3564
        %v3726 = vunpack.c.l.b16 %v3565
        %v3727 = vunpack.c.h.b16 %v3565
        %v3728 = vunpack.c.l.b16 %v3566
        %v3729 = vunpack.c.h.b16 %v3566
        %v3730 = vunpack.c.l.b16 %v3567
        %v3731 = vunpack.c.h.b16 %v3567
        %v3732 = vunpack.c.l.b16 %v3568
        %v3733 = vunpack.c.h.b16 %v3568
        %v3734 = vunpack.c.l.b16 %v3569
        %v3735 = vunpack.c.h.b16 %v3569
        %v3736 = vunpack.c.l.b16 %v3570
        %v3737 = vunpack.c.h.b16 %v3570
        %v3738 = vunpack.c.l.b16 %v3571
        %v3739 = vunpack.c.h.b16 %v3571
        %v3740 = vunpack.c.l.b16 %v3572
        %v3741 = vunpack.c.h.b16 %v3572
        %v3742 = vunpack.c.l.b16 %v3573
        %v3743 = vunpack.c.h.b16 %v3573
        %v3744 = vunpack.c.l.b16 %v3574
        %v3745 = vunpack.c.h.b16 %v3574
        %v3746 = vunpack.c.l.b16 %v3575
        %v3747 = vunpack.c.h.b16 %v3575
        %v3748 = vunpack.c.l.b16 %v3576
        %v3749 = vunpack.c.h.b16 %v3576
        %v3750 = vunpack.c.l.b16 %v3577
        %v3751 = vunpack.c.h.b16 %v3577
        %v3752 = vunpack.c.l.b16 %v3578
        %v3753 = vunpack.c.h.b16 %v3578
        %v3754 = vunpack.c.l.b16 %v3579
        %v3755 = vunpack.c.h.b16 %v3579
        %v3756 = vunpack.c.l.b16 %v3580
        %v3757 = vunpack.c.h.b16 %v3580
        %v3758 = vunpack.c.l.b16 %v3581
        %v3759 = vunpack.c.h.b16 %v3581
        %v3760 = vunpack.c.l.b16 %v3582
        %v3761 = vunpack.c.h.b16 %v3582
        %v3762 = vunpack.c.l.b16 %v3583
        %v3763 = vunpack.c.h.b16 %v3583
        %v3764 = vunpack.c.l.b16 %v3584
        %v3765 = vunpack.c.h.b16 %v3584
        %v3766 = vunpack.c.l.b16 %v3585
        %v3767 = vunpack.c.h.b16 %v3585
        %v3768 = vunpack.c.l.b16 %v3586
        %v3769 = vunpack.c.h.b16 %v3586
        %v3770 = vunpack.c.l.b16 %v3587
        %v3771 = vunpack.c.h.b16 %v3587
        %v3772 = vunpack.c.l.b16 %v3588
        %v3773 = vunpack.c.h.b16 %v3588
        %v3774 = vunpack.c.l.b16 %v3589
        %v3775 = vunpack.c.h.b16 %v3589
        %v3776 = vunpack.c.l.b16 %v3590
        %v3777 = vunpack.c.h.b16 %v3590
        %v3778 = vunpack.c.l.b16 %v3591
        %v3779 = vunpack.c.h.b16 %v3591
        %v3780 = vunpack.c.l.b16 %v3592
        %v3781 = vunpack.c.h.b16 %v3592
        %v3782 = vunpack.c.l.b16 %v3593
        %v3783 = vunpack.c.h.b16 %v3593
        %v3784 = vunpack.c.l.b16 %v3594
        %v3785 = vunpack.c.h.b16 %v3594
        %v3786 = vunpack.c.l.b16 %v3595
        %v3787 = vunpack.c.h.b16 %v3595
        %v3788 = vunpack.c.l.b16 %v3596
        %v3789 = vunpack.c.h.b16 %v3596
        %v3790 = vunpack.c.l.b16 %v3597
        %v3791 = vunpack.c.h.b16 %v3597
        %v3792 = vunpack.c.l.b16 %v3598
        %v3793 = vunpack.c.h.b16 %v3598
        %v3794 = vunpack.c.l.b16 %v3599
        %v3795 = vunpack.c.h.b16 %v3599
        %v3796 = vunpack.c.l.b16 %v3600
        %v3797 = vunpack.c.h.b16 %v3600
        %v3798 = vunpack.c.l.b16 %v3601
        %v3799 = vunpack.c.h.b16 %v3601
        %v3800 = vunpack.c.l.b16 %v3602
        %v3801 = vunpack.c.h.b16 %v3602
        %v3802 = vunpack.c.l.b16 %v3603
        %v3803 = vunpack.c.h.b16 %v3603
        %v3804 = vunpack.c.l.b16 %v3604
        %v3805 = vunpack.c.h.b16 %v3604
        %v3806 = vunpack.c.l.b16 %v3605
        %v3807 = vunpack.c.h.b16 %v3605
        %v3808 = vunpack.c.l.b16 %v3606
        %v3809 = vunpack.c.h.b16 %v3606
        %v3810 = vunpack.c.l.b16 %v3607
        %v3811 = vunpack.c.h.b16 %v3607
        %v3812 = vpack.c.b16 %v3686, %v3684
        %v3813 = vpack.c.b16 %v3687, %v3685
        %v3814 = vpack.c.b16 %v3690, %v3688
        %v3815 = vpack.c.b16 %v3691, %v3689
        %v3816 = vpack.c.b16 %v3694, %v3692
        %v3817 = vpack.c.b16 %v3695, %v3693
        %v3818 = vpack.c.b16 %v3698, %v3696
        %v3819 = vpack.c.b16 %v3699, %v3697
        %v3820 = vpack.c.b16 %v3702, %v3700
        %v3821 = vpack.c.b16 %v3703, %v3701
        %v3822 = vpack.c.b16 %v3706, %v3704
        %v3823 = vpack.c.b16 %v3707, %v3705
        %v3824 = vpack.c.b16 %v3710, %v3708
        %v3825 = vpack.c.b16 %v3711, %v3709
        %v3826 = vpack.c.b16 %v3714, %v3712
        %v3827 = vpack.c.b16 %v3715, %v3713
        %v3828 = vpack.c.b16 %v3718, %v3716
        %v3829 = vpack.c.b16 %v3719, %v3717
        %v3830 = vpack.c.b16 %v3722, %v3720
        %v3831 = vpack.c.b16 %v3723, %v3721
        %v3832 = vpack.c.b16 %v3726, %v3724
        %v3833 = vpack.c.b16 %v3727, %v3725
        %v3834 = vpack.c.b16 %v3730, %v3728
        %v3835 = vpack.c.b16 %v3731, %v3729
        %v3836 = vpack.c.b16 %v3734, %v3732
        %v3837 = vpack.c.b16 %v3735, %v3733
        %v3838 = vpack.c.b16 %v3738, %v3736
        %v3839 = vpack.c.b16 %v3739, %v3737
        %v3840 = vpack.c.b16 %v3742, %v3740
        %v3841 = vpack.c.b16 %v3743, %v3741
        %v3842 = vpack.c.b16 %v3746, %v3744
        %v3843 = vpack.c.b16 %v3747, %v3745
        %v3844 = vpack.c.b16 %v3750, %v3748
        %v3845 = vpack.c.b16 %v3751, %v3749
        %v3846 = vpack.c.b16 %v3754, %v3752
        %v3847 = vpack.c.b16 %v3755, %v3753
        %v3848 = vpack.c.b16 %v3758, %v3756
        %v3849 = vpack.c.b16 %v3759, %v3757
        %v3850 = vpack.c.b16 %v3762, %v3760
        %v3851 = vpack.c.b16 %v3763, %v3761
        %v3852 = vpack.c.b16 %v3766, %v3764
        %v3853 = vpack.c.b16 %v3767, %v3765
        %v3854 = vpack.c.b16 %v3770, %v3768
        %v3855 = vpack.c.b16 %v3771, %v3769
        %v3856 = vpack.c.b16 %v3774, %v3772
        %v3857 = vpack.c.b16 %v3775, %v3773
        %v3858 = vpack.c.b16 %v3778, %v3776
        %v3859 = vpack.c.b16 %v3779, %v3777
        %v3860 = vpack.c.b16 %v3782, %v3780
        %v3861 = vpack.c.b16 %v3783, %v3781
        %v3862 = vpack.c.b16 %v3786, %v3784
        %v3863 = vpack.c.b16 %v3787, %v3785
        %v3864 = vpack.c.b16 %v3790, %v3788
        %v3865 = vpack.c.b16 %v3791, %v3789
        %v3866 = vpack.c.b16 %v3794, %v3792
        %v3867 = vpack.c.b16 %v3795, %v3793
        %v3868 = vpack.c.b16 %v3798, %v3796
        %v3869 = vpack.c.b16 %v3799, %v3797
        %v3870 = vpack.c.b16 %v3802, %v3800
        %v3871 = vpack.c.b16 %v3803, %v3801
        %v3872 = vpack.c.b16 %v3806, %v3804
        %v3873 = vpack.c.b16 %v3807, %v3805
        %v3874 = vpack.c.b16 %v3810, %v3808
        %v3875 = vpack.c.b16 %v3811, %v3809
        %3940 = vmatprep.subr.bf16.mxu0 %v3813
        %3941 = vmatpush1.bf16.msra.mxu0 %v3812
        %3942 = vmatprep.subr.bf16.mxu0 %v3815
        %3943 = vmatpush1.bf16.msra.mxu0 %v3814
        %3944 = vmatprep.subr.bf16.mxu0 %v3817
        %3945 = vmatpush1.bf16.msra.mxu0 %v3816
        %3946 = vmatprep.subr.bf16.mxu0 %v3819
        %3947 = vmatpush1.bf16.msra.mxu0 %v3818
        %3948 = vmatprep.subr.bf16.mxu0 %v3821
        %3949 = vmatpush1.bf16.msra.mxu0 %v3820
        %3950 = vmatprep.subr.bf16.mxu0 %v3823
        %3951 = vmatpush1.bf16.msra.mxu0 %v3822
        %3952 = vmatprep.subr.bf16.mxu0 %v3825
        %3953 = vmatpush1.bf16.msra.mxu0 %v3824
        %3954 = vmatprep.subr.bf16.mxu0 %v3827
        %3955 = vmatpush1.bf16.msra.mxu0 %v3826
        %3956 = vmatprep.subr.bf16.mxu0 %v3829
        %3957 = vmatpush1.bf16.msra.mxu0 %v3828
        %3958 = vmatprep.subr.bf16.mxu0 %v3831
        %3959 = vmatpush1.bf16.msra.mxu0 %v3830
        %3960 = vmatprep.subr.bf16.mxu0 %v3833
        %3961 = vmatpush1.bf16.msra.mxu0 %v3832
        %3962 = vmatprep.subr.bf16.mxu0 %v3835
        %3963 = vmatpush1.bf16.msra.mxu0 %v3834
        %3964 = vmatprep.subr.bf16.mxu0 %v3837
        %3965 = vmatpush1.bf16.msra.mxu0 %v3836
        %3966 = vmatprep.subr.bf16.mxu0 %v3839
        %3967 = vmatpush1.bf16.msra.mxu0 %v3838
        %3968 = vmatprep.subr.bf16.mxu0 %v3841
        %3969 = vmatpush1.bf16.msra.mxu0 %v3840
        %3970 = vmatprep.subr.bf16.mxu0 %v3843
        %3971 = vmatpush1.bf16.msra.mxu0 %v3842
        %3972 = vmatprep.mubr.bf16.mxu0 %v3541
        %3973 = vmatmul.mubr.bf16.gmra.mrb[0].mxu0 %v3540
        %v3974 = vpop.f32.mrb[0].mxu0
        %v3975 = vadd.f32 %v3613, %v3974
        %v3976 = vpop.f32.mrb[0].mxu0
        %v3977 = vadd.f32 %v3617, %v3976
        %v3978 = vpop.f32.mrb[0].mxu0
        %v3979 = vpop.f32.mrb[0].mxu0
        %3980 = vdwg.mxu0
        %3981 = vmatprep.subr.bf16.mxu0 %v3845
        %3982 = vmatpush1.bf16.msra.mxu0 %v3844
        %3983 = vmatprep.subr.bf16.mxu0 %v3847
        %3984 = vmatpush1.bf16.msra.mxu0 %v3846
        %3985 = vmatprep.subr.bf16.mxu0 %v3849
        %3986 = vmatpush1.bf16.msra.mxu0 %v3848
        %3987 = vmatprep.subr.bf16.mxu0 %v3851
        %3988 = vmatpush1.bf16.msra.mxu0 %v3850
        %3989 = vmatprep.subr.bf16.mxu0 %v3853
        %3990 = vmatpush1.bf16.msra.mxu0 %v3852
        %3991 = vmatprep.subr.bf16.mxu0 %v3855
        %3992 = vmatpush1.bf16.msra.mxu0 %v3854
        %3993 = vmatprep.subr.bf16.mxu0 %v3857
        %3994 = vmatpush1.bf16.msra.mxu0 %v3856
        %3995 = vmatprep.subr.bf16.mxu0 %v3859
        %3996 = vmatpush1.bf16.msra.mxu0 %v3858
        %3997 = vmatprep.subr.bf16.mxu0 %v3861
        %3998 = vmatpush1.bf16.msra.mxu0 %v3860
        %3999 = vmatprep.subr.bf16.mxu0 %v3863
        %4000 = vmatpush1.bf16.msra.mxu0 %v3862
        %4001 = vmatprep.subr.bf16.mxu0 %v3865
        %4002 = vmatpush1.bf16.msra.mxu0 %v3864
        %4003 = vmatprep.subr.bf16.mxu0 %v3867
        %4004 = vmatpush1.bf16.msra.mxu0 %v3866
        %4005 = vmatprep.subr.bf16.mxu0 %v3869
        %4006 = vmatpush1.bf16.msra.mxu0 %v3868
        %4007 = vmatprep.subr.bf16.mxu0 %v3871
        %4008 = vmatpush1.bf16.msra.mxu0 %v3870
        %4009 = vmatprep.subr.bf16.mxu0 %v3873
        %4010 = vmatpush1.bf16.msra.mxu0 %v3872
        %4011 = vmatprep.subr.bf16.mxu0 %v3875
        %4012 = vmatpush1.bf16.msra.mxu0 %v3874
        %4013 = vmatprep.mubr.bf16.mxu0 %v3543
        %4014 = vmatmul.mubr.bf16.gmra.mrb[0].mxu0 %v3542
        %v4015 = vpop.f32.mrb[0].mxu0
        %v4016 = vadd.f32 %v3975, %v4015
        %v4017 = vpop.f32.mrb[0].mxu0
        %v4018 = vadd.f32 %v3977, %v4017
        %v4019 = vpop.f32.mrb[0].mxu0
        %v4020 = vpop.f32.mrb[0].mxu0
        %4021 = vdwg.mxu0
        %v4022 = vadd.f32 %v3044, %v4016
        %v4023 = vadd.f32 %v3045, %v4018
        %v4024 = vadd.f32 %v4022, %v4023
        %4025 = vadd.xlane.f32.xlu0 %v4024
        %v4026 = vpop.xlane.xlu0 %4025
        %v4027 = vmul.f32 %v4026, %v3004
        %v4028 = vsub.f32 %v4022, %v4027
        %v4029 = vsub.f32 %v4023, %v4027
        %v4030 = vmul.f32 %v4028, %v4028
        %v4031 = vmul.f32 %v4029, %v4029
        %v4032 = vadd.f32 %v4030, %v4031
        %4033 = vadd.xlane.f32.xlu0 %v4032
        %v4034 = vpop.xlane.xlu0 %4033
        %v4035 = vmul.f32 %v4034, %v3004
        %v4036 = vadd.f32 %v4035, 1e-05
        %v4037 = vrsqrt.pop %v4036
        %v4038 = vmul.f32 %v4028, %v4037
        %v4039 = vmul.f32 %v4029, %v4037
        %v4040 = vld [vmem:[%s1142] sm:$0x3]
        %v4042 = vlaneseq
        %v4043 = vshrl.u32 %v4042, 7
        %v4044 = vsub.s32 0, %v4043
        %v4045 = vrot.slane %v4040, %v4044
        %v4046 = vlaneseq
        %v4047 = vshrl.u32 %v4046, 7
        %v4048 = vsub.s32 1, %v4047
        %v4049 = vrot.slane %v4040, %v4048
        %v4052 = vmul.f32 %v4038, %v4045
        %v4053 = vmul.f32 %v4039, %v4049
        %v4054 = vld [vmem:[%s1151] sm:$0x3]
        %v4056 = vlaneseq
        %v4057 = vshrl.u32 %v4056, 7
        %v4058 = vsub.s32 0, %v4057
        %v4059 = vrot.slane %v4054, %v4058
        %v4060 = vlaneseq
        %v4061 = vshrl.u32 %v4060, 7
        %v4062 = vsub.s32 1, %v4061
        %v4063 = vrot.slane %v4054, %v4062
        %v4066 = vadd.f32 %v4052, %v4059
        %v4067 = vadd.f32 %v4053, %v4063
        %v4068 = vld [vmem:[%s1007] sm:$0xff]
        %vm4069 = vcmp.gt.f32.partialorder %v4068, 0.5
        %v4070 = vsel %vm4069, 1, 0
        %4071 = vset.pattern.permute.xlu0 0
        %4072 = vperm.xlu0 %4071, %v4070
        %v4073 = vpop.permute.xlu0 %4072
        %vm4074 = vcmp.eq.s32.totalorder %v4073, 1
        %v4075 = vsel %vm4074, -100000.0, %v4066
        %v4076 = vsel %vm4074, -100000.0, %v4067
        %4077 = vst [vmem:[#allocation2] sm:$0xff] %v4075
        %4078 = vst [vmem:[#allocation2 + $0x8] sm:$0xff] %v4076
        %p4079 = scmp.eq.s32.totalorder %s68, 1
        // Predicated region
        $region177: #{gpt_forward.2} parent=95 // pred_check
          %p4080 = pneg %p4079
        $region178: #{gpt_forward.2} parent=95 // pred_check_branch
          %4082 = sbr.rel (%p4080) target = $region180
        $region179: #{gpt_forward.2} parent=95 // pred_region
          %4083 = vst [vmem:[%s1294] sm:$0xff] %v4075
          %4084 = vst [vmem:[%s1294 + $0x8] sm:$0xff] %v4076
        $region180: #{gpt_forward.2} parent=95 // pred_fallthru
          _
        %s4085 = sand.u32 %s577, 1
        %s4086 = scalar_lea.sflag [#allocation7], %s4085
        %s4087 = sand.u32 %s577, 1
        %s4088 = smul.addr %s4087, 16
        %s4089 = scalar_lea.vmem [#allocation35], %s4088
        // Predicated region
        $region181: #{gpt_forward.2} parent=95 // pred_check
          %p4090 = pneg %p587
        $region182: #{gpt_forward.2} parent=95 // pred_check_branch
          %4092 = sbr.rel (%p4090) target = $region184
        $region183: #{gpt_forward.2} parent=95 // pred_region
          %s4094 = ssub.s32 256, 256
          %4095 = vsyncadd %s4086, %s4094
          %s4096 = smul.addr %s67, 2
          %s4097 = smul.addr %s4096, 128
          %s4098 = scalar_lea.hbm %s19, %s4097
          %s4100 = sshll.u32 %s4089, 4
          %s4101 = int_to_ptr.vmem [resolvable:$true] %s4100
          %4103 = dma.vmem_to_hbm [thread:$0]  %s4101, 256, %s4098, %s4086
        $region184: #{gpt_forward.2} parent=95 // pred_fallthru
          _
      $region96: #{gpt_forward.2} parent=5 // pred_fallthru
        _
      %p4104 = scmp.le.s32.totalorder 2, %s58
      // Predicated region
      $region185: #{gpt_forward.2} parent=5 // pred_check
        %p4105 = pneg %p4104
      $region186: #{gpt_forward.2} parent=5 // pred_check_branch
        %4107 = sbr.rel (%p4105) target = $region188
      $region187: #{gpt_forward.2} parent=5 // pred_region
        %s4108 = ssub.s32 %s58, 2
        // Predicated region
        $region189: #{gpt_forward.2} parent=187 // pred_check
          %p4109 = pneg %p593
        $region190: #{gpt_forward.2} parent=187 // pred_check_branch
          %4111 = sbr.rel (%p4109) target = $region192
        $region191: #{gpt_forward.2} parent=187 // pred_region
          %s4112 = sand.u32 %s578, 1
          %s4113 = scalar_lea.sflag [#allocation7], %s4112
          %s4114 = sand.u32 %s578, 1
          %s4115 = smul.addr %s4114, 16
          %s4116 = scalar_lea.vmem [#allocation35], %s4115
          %4117 = dma.done %s4113, 256
        $region192: #{gpt_forward.2} parent=187 // pred_fallthru
          _
      $region188: #{gpt_forward.2} parent=5 // pred_fallthru
        _
    $region6: #{gpt_forward.2} parent=1 // loop_footer
      %s62 = sadd.s32 1, %s58
    $region7: #{gpt_forward.2} parent=1 // loop_footer_branch
      %57 = sbr.rel target = $region3
    $region8: #{gpt_forward.2} parent=1 // loop_exit
      _
    %4118 = vsyncpa [#allocation6], 1
    %s4119 = scalar_lea.sflag [#allocation6], 1
    %4120 = vsyncpa %s4119, 1
    %4121 = vsyncpa [#allocation9], 1
    %s4122 = scalar_lea.sflag [#allocation9], 1
    %4123 = vsyncpa %s4122, 1
    %4124 = vsyncpa [#allocation12], 1
    %s4125 = scalar_lea.sflag [#allocation12], 1
    %4126 = vsyncpa %s4125, 1
    %4127 = vsyncpa [#allocation15], 1
    %s4128 = scalar_lea.sflag [#allocation15], 1
    %4129 = vsyncpa %s4128, 1
    %4130 = vsyncpa [#allocation18], 1
    %s4131 = scalar_lea.sflag [#allocation18], 1
    %4132 = vsyncpa %s4131, 1
    %4133 = vsyncpa [#allocation21], 1
    %s4134 = scalar_lea.sflag [#allocation21], 1
    %4135 = vsyncpa %s4134, 1
    %4136 = vsyncpa [#allocation24], 1
    %s4137 = scalar_lea.sflag [#allocation24], 1
    %4138 = vsyncpa %s4137, 1
    %4139 = vsyncpa [#allocation27], 1
    %s4140 = scalar_lea.sflag [#allocation27], 1
    %4141 = vsyncpa %s4140, 1
    %4142 = vsyncpa [#allocation30], 1
    %s4143 = scalar_lea.sflag [#allocation30], 1
    %4144 = vsyncpa %s4143, 1
    %4145 = vsyncpa [#allocation33], 1
    %s4146 = scalar_lea.sflag [#allocation33], 1
    %4147 = vsyncpa %s4146, 1
    %4148 = vsyncpa [#allocation7], 1
    %s4149 = scalar_lea.sflag [#allocation7], 1
    %4150 = vsyncpa %s4149, 1

</llo_original>
